<compile_context>
chip_gen: v5e
topology: v5e:2x2
jax: 0.10.0
libtpu: 0.0.40
codegen_flags: <defaults>
</compile_context>

<pallas_src>
import jax
import jax.numpy as jnp
from jax.experimental import pallas as pl
from jax.experimental.pallas import tpu as pltpu

EPS = 1e-5


def basic_block_kernel(x_ref, w1_ref, w2_ref, b_ref, o_ref, pad_ref):
    """One batch element per grid step (NHWC, channels padded to Cp).

    x_ref  : (H, W, Cp)      f32  unpadded input (also the residual identity)
    w1_ref : (9*Cp, Cp)      bf16 conv1 weights, im2col layout, BN1 scale folded
    w2_ref : (9*Cp, Cp)      bf16 conv2 weights, im2col layout, BN2 scale folded
    b_ref  : (2, Cp)         f32  folded BN biases (row 0: bn1, row 1: bn2)
    o_ref  : (H, W, Cp)      f32  output
    pad_ref: (H+2, W+2, Cp)  bf16 VMEM scratch: halo-padded conv input
                             (reused for conv1's input and conv2's input)
    """
    H, W, Cp = o_ref.shape
    K = 9 * Cp

    zrow = jnp.zeros((1, W + 2, Cp), jnp.bfloat16)
    zpix = jnp.zeros((H, 1, Cp), jnp.bfloat16)

    def write_padded(interior_bf16):
        # Build the zero halo in registers and write the whole padded buffer
        # with a single aligned store (no separate scratch zeroing and no
        # unaligned interior rewrite).
        core = jnp.concatenate([zpix, interior_bf16, zpix], axis=1)   # (H, W+2, Cp)
        pad_ref[...] = jnp.concatenate([zrow, core, zrow], axis=0)    # (H+2, W+2, Cp)

    def conv3x3(w_ref):
        # im2col: one deep contraction (K = 9*Cp) feeding the MXU per conv,
        # instead of nine shallow K=Cin matmuls.
        taps = [pad_ref[kh:kh + H, kw:kw + W, :]                      # (H, W, Cp) bf16
                for kh in range(3) for kw in range(3)]
        patches = jnp.concatenate(taps, axis=-1).reshape(H * W, K)    # (H*W, 9*Cp)
        return jnp.dot(patches, w_ref[...],
                       preferred_element_type=jnp.float32)            # (H*W, Cp) f32

    x = x_ref[...]                                                    # (H, W, Cp) f32
    write_padded(x.astype(jnp.bfloat16))

    # conv1 -> bn1 (scale folded into w1, bias added here) -> relu
    y1 = jnp.maximum(conv3x3(w1_ref) + b_ref[0:1, :], 0.0)            # (H*W, Cp)

    # Reuse the same padded scratch for conv2's input (y1 is fully computed,
    # so the WAR hazard is resolved by the value dependency).
    write_padded(y1.reshape(H, W, Cp).astype(jnp.bfloat16))

    # conv2 -> bn2 -> + identity (exact f32) -> relu
    y2 = conv3x3(w2_ref) + b_ref[1:2, :]
    out = jnp.maximum(y2 + x.reshape(H * W, Cp), 0.0)
    o_ref[...] = out.reshape(H, W, Cp).astype(o_ref.dtype)


def basic_block_pallas(x_nchw, w1_oihw, w2_oihw, bn1, bn2):
    """x_nchw: (B, C, H, W) f32.  w*_oihw: (C, C, 3, 3).  bn* = (gamma, beta, mean, var).

    Implements the stride=1 / downsample=None / in_channels == out_channels
    configuration of the PyTorch BasicBlock (eval-mode BatchNorm).
    """
    B, C, H, W = x_nchw.shape
    assert w1_oihw.shape == (C, C, 3, 3) and w2_oihw.shape == (C, C, 3, 3)
    Cp = ((C + 127) // 128) * 128                      # pad channels to lane width

    # NCHW -> NHWC; pad channels (identity stays f32 for an exact skip-add).
    x_nhwc = jnp.transpose(x_nchw, (0, 2, 3, 1))
    x_p = jnp.pad(x_nhwc, ((0, 0), (0, 0), (0, 0), (0, Cp - C))).astype(jnp.float32)

    def fold(bn):
        gamma, beta, mean, var = bn                    # eval-mode BN
        scale = gamma / jnp.sqrt(var + EPS)
        bias = beta - mean * scale
        return scale, bias

    s1, b1 = fold(bn1)
    s2, b2 = fold(bn2)

    def prep_w(w_oihw, scale):
        # OIHW -> HWIO, fold BN scale into output channels, zero-pad channels,
        # flatten to the im2col layout (9*Cp, Cp), cast to bf16 for the MXU.
        w = jnp.transpose(w_oihw, (2, 3, 1, 0)) * scale[None, None, None, :]
        w = jnp.pad(w, ((0, 0), (0, 0), (0, Cp - C), (0, Cp - C)))
        return w.reshape(9 * Cp, Cp).astype(jnp.bfloat16)

    w1 = prep_w(w1_oihw, s1)
    w2 = prep_w(w2_oihw, s2)
    b12 = jnp.stack([jnp.pad(b1, (0, Cp - C)),
                     jnp.pad(b2, (0, Cp - C))], axis=0).astype(jnp.float32)  # (2, Cp)

    out_nhwc = pl.pallas_call(
        basic_block_kernel,
        out_shape=jax.ShapeDtypeStruct((B, H, W, Cp), jnp.float32),
        grid_spec=pltpu.PrefetchScalarGridSpec(
            num_scalar_prefetch=0,
            grid=(B,),
            in_specs=[
                pl.BlockSpec((None, H, W, Cp), lambda b: (b, 0, 0, 0)),   # x (f32)
                pl.BlockSpec((9 * Cp, Cp), lambda b: (0, 0)),             # w1 (bf16)
                pl.BlockSpec((9 * Cp, Cp), lambda b: (0, 0)),             # w2 (bf16)
                pl.BlockSpec((2, Cp), lambda b: (0, 0)),                  # folded biases
            ],
            out_specs=pl.BlockSpec((None, H, W, Cp), lambda b: (b, 0, 0, 0)),
            scratch_shapes=[
                pltpu.VMEM((H + 2, W + 2, Cp), jnp.bfloat16),             # shared padded buffer
            ],
        ),
        compiler_params=pltpu.CompilerParams(
            dimension_semantics=("parallel",)),        # v7x: shard batch over 2 TCs
    )(x_p, w1, w2, b12)

    # drop padded channels, back to NCHW
    return jnp.transpose(out_nhwc[..., :C], (0, 3, 1, 2))


def basic_block_reference(x, w1, w2, bn1, bn2):
    """Pure-JAX f32 NCHW reference (eval-mode BN), matching PyTorch semantics."""
    def conv(inp, w):
        return jax.lax.conv_general_dilated(
            inp, w, window_strides=(1, 1), padding="SAME",
            dimension_numbers=("NCHW", "OIHW", "NCHW"))

    def bn(y, p):
        gamma, beta, mean, var = p
        rs = lambda v: v.reshape(1, -1, 1, 1)
        return (y - rs(mean)) / jnp.sqrt(rs(var) + EPS) * rs(gamma) + rs(beta)

    out = jax.nn.relu(bn(conv(x, w1), bn1))
    out = bn(conv(out, w2), bn2)
    return jax.nn.relu(out + x)


if __name__ == "__main__":
    B, C, H, W = 2, 4, 16, 16   # in_channels == out_channels, stride=1, no downsample

    key = jax.random.PRNGKey(0)
    keys = jax.random.split(key, 9)
    x = jax.random.normal(keys[0], (B, C, H, W), jnp.float32)
    w1 = jax.random.normal(keys[1], (C, C, 3, 3), jnp.float32) * 0.2
    w2 = jax.random.normal(keys[2], (C, C, 3, 3), jnp.float32) * 0.2
    bn1 = (1.0 + 0.1 * jax.random.normal(keys[3], (C,), jnp.float32),            # gamma
           0.1 * jax.random.normal(keys[4], (C,), jnp.float32),                  # beta
           0.1 * jax.random.normal(keys[5], (C,), jnp.float32),                  # running_mean
           1.0 + 0.1 * jnp.abs(jax.random.normal(keys[6], (C,), jnp.float32)))   # running_var
    bn2 = (1.0 + 0.1 * jax.random.normal(keys[7], (C,), jnp.float32),
           0.1 * jax.random.normal(keys[8], (C,), jnp.float32),
           jnp.zeros((C,), jnp.float32),
           jnp.ones((C,), jnp.float32))

    out = jax.block_until_ready(basic_block_pallas(x, w1, w2, bn1, bn2))
    ref = jax.block_until_ready(basic_block_reference(x, w1, w2, bn1, bn2))

    assert out.shape == (B, C, H, W), out.shape
    # Tolerance accounts for bf16 MXU operands (f32 accumulation, f32 identity).
    assert jnp.allclose(out, ref, atol=3e-2, rtol=3e-2), \
        float(jnp.max(jnp.abs(out - ref)))

    print("KERNEL_OK")
</pallas_src>

<mosaic_0001>
module attributes {stable_mosaic.version = 11 : i64} {
  func.func @basic_block_kernel(%arg0: i32, %arg1: memref<1x16x16x128xf32, #tpu.memory_space<vmem>>, %arg2: memref<1152x128xbf16, #tpu.memory_space<vmem>>, %arg3: memref<1152x128xbf16, #tpu.memory_space<vmem>>, %arg4: memref<2x128xf32, #tpu.memory_space<vmem>>, %arg5: memref<1x16x16x128xf32, #tpu.memory_space<vmem>>, %arg6: memref<18x18x128xbf16, #tpu.memory_space<vmem>>) attributes {dimension_semantics = [#tpu.dimension_semantics<parallel>], iteration_bounds = array<i64: 2>, scalar_prefetch = 0 : i64, scratch_operands = 1 : i64, tpu.core_type = #tpu.core_type<tc>, window_params = [{transform_indices = @transform_0, window_bounds = array<i64: 1, 16, 16, 128>}, {pipeline_mode = #tpu.pipeline_mode<synchronous>, transform_indices = @transform_1, window_bounds = array<i64: 1152, 128>}, {pipeline_mode = #tpu.pipeline_mode<synchronous>, transform_indices = @transform_2, window_bounds = array<i64: 1152, 128>}, {pipeline_mode = #tpu.pipeline_mode<synchronous>, transform_indices = @transform_3, window_bounds = array<i64: 2, 128>}, {transform_indices = @transform_4, window_bounds = array<i64: 1, 16, 16, 128>}]} {
    %cst = arith.constant 0.000000e+00 : bf16
    %0 = vector.broadcast %cst : bf16 to vector<1x18x128xbf16>
    %cst_0 = arith.constant 0.000000e+00 : bf16
    %1 = vector.broadcast %cst_0 : bf16 to vector<16x1x128xbf16>
    %c0 = arith.constant 0 : index
    %c0_1 = arith.constant 0 : index
    %c0_2 = arith.constant 0 : index
    %c0_3 = arith.constant 0 : index
    %2 = vector.load %arg1[%c0, %c0_1, %c0_2, %c0_3] : memref<1x16x16x128xf32, #tpu.memory_space<vmem>>, vector<1x16x16x128xf32>
    %3 = vector.shape_cast %2 : vector<1x16x16x128xf32> to vector<16x16x128xf32>
    %4 = arith.truncf %3 : vector<16x16x128xf32> to vector<16x16x128xbf16>
    %5 = tpu.concatenate %1, %4, %1 in 1 : vector<16x1x128xbf16>, vector<16x16x128xbf16>, vector<16x1x128xbf16> -> vector<16x18x128xbf16>
    %6 = tpu.concatenate %0, %5, %0 in 0 : vector<1x18x128xbf16>, vector<16x18x128xbf16>, vector<1x18x128xbf16> -> vector<18x18x128xbf16>
    %c0_4 = arith.constant 0 : index
    %c0_5 = arith.constant 0 : index
    %c0_6 = arith.constant 0 : index
    %7 = vector.load %arg6[%c0_4, %c0_5, %c0_6] : memref<18x18x128xbf16, #tpu.memory_space<vmem>>, vector<18x18x128xbf16>
    tpu.vector_store %arg6[%c0_4, %c0_5, %c0_6], %6 {strides = array<i32>} : memref<18x18x128xbf16, #tpu.memory_space<vmem>>, vector<18x18x128xbf16>,
    %c0_7 = arith.constant 0 : index
    %c0_8 = arith.constant 0 : index
    %c0_9 = arith.constant 0 : index
    %8 = vector.load %arg6[%c0_7, %c0_8, %c0_9] : memref<18x18x128xbf16, #tpu.memory_space<vmem>>, vector<16x16x128xbf16>
    %c0_10 = arith.constant 0 : index
    %c1 = arith.constant 1 : index
    %c0_11 = arith.constant 0 : index
    %9 = vector.load %arg6[%c0_10, %c1, %c0_11] : memref<18x18x128xbf16, #tpu.memory_space<vmem>>, vector<16x16x128xbf16>
    %c0_12 = arith.constant 0 : index
    %c2 = arith.constant 2 : index
    %c0_13 = arith.constant 0 : index
    %10 = vector.load %arg6[%c0_12, %c2, %c0_13] : memref<18x18x128xbf16, #tpu.memory_space<vmem>>, vector<16x16x128xbf16>
    %c1_14 = arith.constant 1 : index
    %c0_15 = arith.constant 0 : index
    %c0_16 = arith.constant 0 : index
    %11 = vector.load %arg6[%c1_14, %c0_15, %c0_16] : memref<18x18x128xbf16, #tpu.memory_space<vmem>>, vector<16x16x128xbf16>
    %c1_17 = arith.constant 1 : index
    %c1_18 = arith.constant 1 : index
    %c0_19 = arith.constant 0 : index
    %12 = vector.load %arg6[%c1_17, %c1_18, %c0_19] : memref<18x18x128xbf16, #tpu.memory_space<vmem>>, vector<16x16x128xbf16>
    %c1_20 = arith.constant 1 : index
    %c2_21 = arith.constant 2 : index
    %c0_22 = arith.constant 0 : index
    %13 = vector.load %arg6[%c1_20, %c2_21, %c0_22] : memref<18x18x128xbf16, #tpu.memory_space<vmem>>, vector<16x16x128xbf16>
    %c2_23 = arith.constant 2 : index
    %c0_24 = arith.constant 0 : index
    %c0_25 = arith.constant 0 : index
    %14 = vector.load %arg6[%c2_23, %c0_24, %c0_25] : memref<18x18x128xbf16, #tpu.memory_space<vmem>>, vector<16x16x128xbf16>
    %c2_26 = arith.constant 2 : index
    %c1_27 = arith.constant 1 : index
    %c0_28 = arith.constant 0 : index
    %15 = vector.load %arg6[%c2_26, %c1_27, %c0_28] : memref<18x18x128xbf16, #tpu.memory_space<vmem>>, vector<16x16x128xbf16>
    %c2_29 = arith.constant 2 : index
    %c2_30 = arith.constant 2 : index
    %c0_31 = arith.constant 0 : index
    %16 = vector.load %arg6[%c2_29, %c2_30, %c0_31] : memref<18x18x128xbf16, #tpu.memory_space<vmem>>, vector<16x16x128xbf16>
    %17 = tpu.concatenate %8, %9, %10, %11, %12, %13, %14, %15, %16 in 2 : vector<16x16x128xbf16>, vector<16x16x128xbf16>, vector<16x16x128xbf16>, vector<16x16x128xbf16>, vector<16x16x128xbf16>, vector<16x16x128xbf16>, vector<16x16x128xbf16>, vector<16x16x128xbf16>, vector<16x16x128xbf16> -> vector<16x16x1152xbf16>
    %18 = vector.shape_cast %17 : vector<16x16x1152xbf16> to vector<256x1152xbf16>
    %c0_32 = arith.constant 0 : index
    %c0_33 = arith.constant 0 : index
    %19 = vector.load %arg2[%c0_32, %c0_33] : memref<1152x128xbf16, #tpu.memory_space<vmem>>, vector<1152x128xbf16>
    %cst_34 = arith.constant dense<0.000000e+00> : vector<256x128xf32>
    %20 = tpu.matmul %18, %19, %cst_34 {dimension_numbers = #tpu.dot_dimension_numbers<[1], [0], [0], [1], [0, 0, 1, 1], [], []>} : vector<256x1152xbf16>, vector<1152x128xbf16>, vector<256x128xf32> -> vector<256x128xf32>
    %c0_35 = arith.constant 0 : index
    %c0_36 = arith.constant 0 : index
    %21 = vector.load %arg4[%c0_35, %c0_36] : memref<2x128xf32, #tpu.memory_space<vmem>>, vector<1x128xf32>
    %22 = vector.broadcast %21 : vector<1x128xf32> to vector<256x128xf32>
    %23 = arith.addf %20, %22 : vector<256x128xf32>
    %cst_37 = arith.constant 0.000000e+00 : f32
    %24 = vector.broadcast %cst_37 : f32 to vector<256x128xf32>
    %25 = arith.maximumf %23, %24 : vector<256x128xf32>
    %26 = vector.shape_cast %25 : vector<256x128xf32> to vector<16x16x128xf32>
    %27 = arith.truncf %26 : vector<16x16x128xf32> to vector<16x16x128xbf16>
    %28 = tpu.concatenate %1, %27, %1 in 1 : vector<16x1x128xbf16>, vector<16x16x128xbf16>, vector<16x1x128xbf16> -> vector<16x18x128xbf16>
    %29 = tpu.concatenate %0, %28, %0 in 0 : vector<1x18x128xbf16>, vector<16x18x128xbf16>, vector<1x18x128xbf16> -> vector<18x18x128xbf16>
    %c0_38 = arith.constant 0 : index
    %c0_39 = arith.constant 0 : index
    %c0_40 = arith.constant 0 : index
    %30 = vector.load %arg6[%c0_38, %c0_39, %c0_40] : memref<18x18x128xbf16, #tpu.memory_space<vmem>>, vector<18x18x128xbf16>
    tpu.vector_store %arg6[%c0_38, %c0_39, %c0_40], %29 {strides = array<i32>} : memref<18x18x128xbf16, #tpu.memory_space<vmem>>, vector<18x18x128xbf16>,
    %c0_41 = arith.constant 0 : index
    %c0_42 = arith.constant 0 : index
    %c0_43 = arith.constant 0 : index
    %31 = vector.load %arg6[%c0_41, %c0_42, %c0_43] : memref<18x18x128xbf16, #tpu.memory_space<vmem>>, vector<16x16x128xbf16>
    %c0_44 = arith.constant 0 : index
    %c1_45 = arith.constant 1 : index
    %c0_46 = arith.constant 0 : index
    %32 = vector.load %arg6[%c0_44, %c1_45, %c0_46] : memref<18x18x128xbf16, #tpu.memory_space<vmem>>, vector<16x16x128xbf16>
    %c0_47 = arith.constant 0 : index
    %c2_48 = arith.constant 2 : index
    %c0_49 = arith.constant 0 : index
    %33 = vector.load %arg6[%c0_47, %c2_48, %c0_49] : memref<18x18x128xbf16, #tpu.memory_space<vmem>>, vector<16x16x128xbf16>
    %c1_50 = arith.constant 1 : index
    %c0_51 = arith.constant 0 : index
    %c0_52 = arith.constant 0 : index
    %34 = vector.load %arg6[%c1_50, %c0_51, %c0_52] : memref<18x18x128xbf16, #tpu.memory_space<vmem>>, vector<16x16x128xbf16>
    %c1_53 = arith.constant 1 : index
    %c1_54 = arith.constant 1 : index
    %c0_55 = arith.constant 0 : index
    %35 = vector.load %arg6[%c1_53, %c1_54, %c0_55] : memref<18x18x128xbf16, #tpu.memory_space<vmem>>, vector<16x16x128xbf16>
    %c1_56 = arith.constant 1 : index
    %c2_57 = arith.constant 2 : index
    %c0_58 = arith.constant 0 : index
    %36 = vector.load %arg6[%c1_56, %c2_57, %c0_58] : memref<18x18x128xbf16, #tpu.memory_space<vmem>>, vector<16x16x128xbf16>
    %c2_59 = arith.constant 2 : index
    %c0_60 = arith.constant 0 : index
    %c0_61 = arith.constant 0 : index
    %37 = vector.load %arg6[%c2_59, %c0_60, %c0_61] : memref<18x18x128xbf16, #tpu.memory_space<vmem>>, vector<16x16x128xbf16>
    %c2_62 = arith.constant 2 : index
    %c1_63 = arith.constant 1 : index
    %c0_64 = arith.constant 0 : index
    %38 = vector.load %arg6[%c2_62, %c1_63, %c0_64] : memref<18x18x128xbf16, #tpu.memory_space<vmem>>, vector<16x16x128xbf16>
    %c2_65 = arith.constant 2 : index
    %c2_66 = arith.constant 2 : index
    %c0_67 = arith.constant 0 : index
    %39 = vector.load %arg6[%c2_65, %c2_66, %c0_67] : memref<18x18x128xbf16, #tpu.memory_space<vmem>>, vector<16x16x128xbf16>
    %40 = tpu.concatenate %31, %32, %33, %34, %35, %36, %37, %38, %39 in 2 : vector<16x16x128xbf16>, vector<16x16x128xbf16>, vector<16x16x128xbf16>, vector<16x16x128xbf16>, vector<16x16x128xbf16>, vector<16x16x128xbf16>, vector<16x16x128xbf16>, vector<16x16x128xbf16>, vector<16x16x128xbf16> -> vector<16x16x1152xbf16>
    %41 = vector.shape_cast %40 : vector<16x16x1152xbf16> to vector<256x1152xbf16>
    %c0_68 = arith.constant 0 : index
    %c0_69 = arith.constant 0 : index
    %42 = vector.load %arg3[%c0_68, %c0_69] : memref<1152x128xbf16, #tpu.memory_space<vmem>>, vector<1152x128xbf16>
    %cst_70 = arith.constant dense<0.000000e+00> : vector<256x128xf32>
    %43 = tpu.matmul %41, %42, %cst_70 {dimension_numbers = #tpu.dot_dimension_numbers<[1], [0], [0], [1], [0, 0, 1, 1], [], []>} : vector<256x1152xbf16>, vector<1152x128xbf16>, vector<256x128xf32> -> vector<256x128xf32>
    %c1_71 = arith.constant 1 : index
    %c0_72 = arith.constant 0 : index
    %44 = vector.load %arg4[%c1_71, %c0_72] : memref<2x128xf32, #tpu.memory_space<vmem>>, vector<1x128xf32>
    %45 = vector.broadcast %44 : vector<1x128xf32> to vector<256x128xf32>
    %46 = arith.addf %43, %45 : vector<256x128xf32>
    %47 = vector.shape_cast %3 : vector<16x16x128xf32> to vector<256x128xf32>
    %48 = arith.addf %46, %47 : vector<256x128xf32>
    %cst_73 = arith.constant 0.000000e+00 : f32
    %49 = vector.broadcast %cst_73 : f32 to vector<256x128xf32>
    %50 = arith.maximumf %48, %49 : vector<256x128xf32>
    %51 = vector.shape_cast %50 : vector<256x128xf32> to vector<16x16x128xf32>
    %c0_74 = arith.constant 0 : index
    %c0_75 = arith.constant 0 : index
    %c0_76 = arith.constant 0 : index
    %c0_77 = arith.constant 0 : index
    %52 = vector.load %arg5[%c0_74, %c0_75, %c0_76, %c0_77] : memref<1x16x16x128xf32, #tpu.memory_space<vmem>>, vector<1x16x16x128xf32>
    %53 = vector.shape_cast %52 : vector<1x16x16x128xf32> to vector<16x16x128xf32>
    %54 = vector.shape_cast %51 : vector<16x16x128xf32> to vector<1x16x16x128xf32>
    tpu.vector_store %arg5[%c0_74, %c0_75, %c0_76, %c0_77], %54 {strides = array<i32>} : memref<1x16x16x128xf32, #tpu.memory_space<vmem>>, vector<1x16x16x128xf32>,
    return
  }
  func.func @transform_0(%arg0: i32) -> (i32, i32, i32, i32) {
    %c0_i32 = arith.constant 0 : i32
    %c0_i32_0 = arith.constant 0 : i32
    %c0_i32_1 = arith.constant 0 : i32
    %c0_i32_2 = arith.constant 0 : i32
    return %arg0, %c0_i32, %c0_i32_0, %c0_i32_1 : i32, i32, i32, i32
  }
  func.func @transform_1(%arg0: i32) -> (i32, i32) {
    %c0_i32 = arith.constant 0 : i32
    %c0_i32_0 = arith.constant 0 : i32
    %c0_i32_1 = arith.constant 0 : i32
    return %c0_i32, %c0_i32_0 : i32, i32
  }
  func.func @transform_2(%arg0: i32) -> (i32, i32) {
    %c0_i32 = arith.constant 0 : i32
    %c0_i32_0 = arith.constant 0 : i32
    %c0_i32_1 = arith.constant 0 : i32
    return %c0_i32, %c0_i32_0 : i32, i32
  }
  func.func @transform_3(%arg0: i32) -> (i32, i32) {
    %c0_i32 = arith.constant 0 : i32
    %c0_i32_0 = arith.constant 0 : i32
    %c0_i32_1 = arith.constant 0 : i32
    return %c0_i32, %c0_i32_0 : i32, i32
  }
  func.func @transform_4(%arg0: i32) -> (i32, i32, i32, i32) {
    %c0_i32 = arith.constant 0 : i32
    %c0_i32_0 = arith.constant 0 : i32
    %c0_i32_1 = arith.constant 0 : i32
    %c0_i32_2 = arith.constant 0 : i32
    return %arg0, %c0_i32, %c0_i32_0, %c0_i32_1 : i32, i32, i32, i32
  }
}

</mosaic_0001>

<llo_original>
// kernel: tpu_custom_call.1
$region0: #{tpu_custom_call.1}
  #allocation0 [shape = 'u32[]', space=smem, size = 0x4, offset = 0x4, fixed_abs, tag = 'smem constant byte address 0x4 - core index']
  #allocation1 [shape = 'u32[72,128]{1,0:T(1,128)}', space=vmem, size = 0x9000, scoped, tag = 'internal scratch']
  #allocation2 [shape = 'bf16[18,18,128]{2,1,0:T(8,128)(2,1)}', space=vmem, size = 0x1b000, scoped, tag = 'scratch operand']
  %s0 = inlined_call_operand.hbm [shape: f32[2,16,16,128], index: 0, kind: input, shape index: {}]
  %s1 = inlined_call_operand.hbm [shape: bf16[1152,128], index: 1, kind: input, shape index: {}]
  %s2 = inlined_call_operand.hbm [shape: bf16[1152,128], index: 2, kind: input, shape index: {}]
  %s3 = inlined_call_operand.vmem [shape: f32[2,128], index: 3, kind: input, shape index: {}]
  %s4 = inlined_call_operand.hbm [shape: f32[2,16,16,128], index: 4, kind: output, shape index: {}]
  %s5 = sld [smem:[#allocation0]]
  $region61: #{tpu_custom_call.1} parent=0
    _
  %s7 = ssub.s32 1, %s5
  %s8 = scalar_select 0, %s7, %s5
  $region1: #{tpu_custom_call.1} parent=0
    #allocation3 [shape = 'u8[262144]{0}', space=vmem, size = 0x40000, scoped, tag = 'input window, operand 0']
    #allocation4 [shape = 's32[2]{0}', space=sflag, size = 0x8, scoped, tag = 'scoped memory for tpu_custom_call.1']
    #allocation5 [shape = 's32[2]{0}', space=sflag, size = 0x8, scoped, tag = 'scoped memory for tpu_custom_call.1']
    #allocation6 [shape = 'u8[294912]{0}', space=vmem, size = 0x48000, scoped, tag = 'input window, operand 1, single buffered']
    #allocation7 [shape = 's32[1]{0}', space=sflag, size = 0x4, scoped, tag = 'scoped memory for tpu_custom_call.1']
    #allocation8 [shape = 'u8[294912]{0}', space=vmem, size = 0x48000, scoped, tag = 'input window, operand 2, single buffered']
    #allocation9 [shape = 'u8[262144]{0}', space=vmem, size = 0x40000, scoped, tag = 'output window, operand 0']
    %9 = vsyncpa [#allocation4], 0
    %s10 = scalar_lea.sflag [#allocation4], 1
    %11 = vsyncpa %s10, 0
    %12 = vsyncpa [#allocation7], 0
    %13 = vsyncpa [#allocation5], 0
    %s14 = scalar_lea.sflag [#allocation5], 1
    %15 = vsyncpa %s14, 0
    loop: start=0, step=1, limit=4
    $region2: #{tpu_custom_call.1} parent=1 // loop_pre_header
      _
    $region3: #{tpu_custom_call.1} parent=1 // loop_header
      %s17 = sphi 0, %s21
      %p18 = scmp.ge.s32.totalorder %s17, 4
      %s27 = sphi 0, %s29
      %s30 = sphi 0, %s27
      %s31 = sphi 0, %s30
      %s47 = sphi 0, %s31
      %s51 = sphi 0, %s51
      %s53 = sphi 0, %s51
      %s54 = sphi 0, %s53
      %s68 = sphi 0, %s54
      %s72 = sphi 0, %s72
      %s74 = sphi 0, %s72
      %s75 = sphi 0, %s74
      %s89 = sphi 0, %s75
      %s93 = sphi 0, %s93
      %s95 = sphi 0, %s93
      %s96 = sphi 0, %s95
      %s110 = sphi 0, %s96
      %s116 = sphi 0, %s118
      %s119 = sphi 0, %s116
      %s120 = sphi 0, %s119
      %s136 = sphi 0, %s120
    $region4: #{tpu_custom_call.1} parent=1 // loop_header_branch
      %20 = sbr.rel (%p18) target = $region8
    $region5: #{tpu_custom_call.1} parent=1 // loop_body
      %s22 = ssub.s32 %s17, 1
      %s23 = ssub.s32 %s17, 2
      %s24 = sadd.s32 %s17, 1
      %s25 = ssub.s32 %s17, %s24
      %p26 = scmp.eq.s32.totalorder %s25, 0
      %s28 = sadd.s32 %s27, 1
      %s29 = scalar_select %p26, %s27, %s28
      %p32 = pneg %p26
      %p33 = scmp.eq.s32.totalorder %s17, 1
      %p34 = por %p32, %p33
      %p35 = scmp.ne.s32.totalorder %s27, %s30
      %p36 = scmp.eq.s32.totalorder %s17, 0
      %p37 = por %p35, %p36
      %p38 = scmp.ne.s32.totalorder %s27, %s30
      %p39 = scmp.eq.s32.totalorder %s22, 1
      %p40 = por %p38, %p39
      %p41 = scmp.ne.s32.totalorder %s30, %s31
      %p42 = scmp.eq.s32.totalorder %s22, 0
      %p43 = por %p41, %p42
      %p44 = scmp.ne.s32.totalorder %s30, %s31
      %p45 = scmp.eq.s32.totalorder %s23, 1
      %p46 = por %p44, %p45
      %p48 = scmp.ne.s32.totalorder %s31, %s47
      %p49 = scmp.eq.s32.totalorder %s23, 0
      %p50 = por %p48, %p49
      %s52 = sadd.s32 %s51, 1
      %p55 = scmp.eq.s32.totalorder %s17, 1
      %p56 = scmp.ne.s32.totalorder %s51, %s53
      %p57 = scmp.eq.s32.totalorder %s17, 0
      %p58 = por %p56, %p57
      %p59 = scmp.ne.s32.totalorder %s51, %s53
      %p60 = scmp.eq.s32.totalorder %s22, 1
      %p61 = por %p59, %p60
      %p62 = scmp.ne.s32.totalorder %s53, %s54
      %p63 = scmp.eq.s32.totalorder %s22, 0
      %p64 = por %p62, %p63
      %p65 = scmp.ne.s32.totalorder %s53, %s54
      %p66 = scmp.eq.s32.totalorder %s23, 1
      %p67 = por %p65, %p66
      %p69 = scmp.ne.s32.totalorder %s54, %s68
      %p70 = scmp.eq.s32.totalorder %s23, 0
      %p71 = por %p69, %p70
      %s73 = sadd.s32 %s72, 1
      %p76 = scmp.eq.s32.totalorder %s17, 1
      %p77 = scmp.ne.s32.totalorder %s72, %s74
      %p78 = scmp.eq.s32.totalorder %s17, 0
      %p79 = por %p77, %p78
      %p80 = scmp.ne.s32.totalorder %s72, %s74
      %p81 = scmp.eq.s32.totalorder %s22, 1
      %p82 = por %p80, %p81
      %p83 = scmp.ne.s32.totalorder %s74, %s75
      %p84 = scmp.eq.s32.totalorder %s22, 0
      %p85 = por %p83, %p84
      %p86 = scmp.ne.s32.totalorder %s74, %s75
      %p87 = scmp.eq.s32.totalorder %s23, 1
      %p88 = por %p86, %p87
      %p90 = scmp.ne.s32.totalorder %s75, %s89
      %p91 = scmp.eq.s32.totalorder %s23, 0
      %p92 = por %p90, %p91
      %s94 = sadd.s32 %s93, 1
      %p97 = scmp.eq.s32.totalorder %s17, 1
      %p98 = scmp.ne.s32.totalorder %s93, %s95
      %p99 = scmp.eq.s32.totalorder %s17, 0
      %p100 = por %p98, %p99
      %p101 = scmp.ne.s32.totalorder %s93, %s95
      %p102 = scmp.eq.s32.totalorder %s22, 1
      %p103 = por %p101, %p102
      %p104 = scmp.ne.s32.totalorder %s95, %s96
      %p105 = scmp.eq.s32.totalorder %s22, 0
      %p106 = por %p104, %p105
      %p107 = scmp.ne.s32.totalorder %s95, %s96
      %p108 = scmp.eq.s32.totalorder %s23, 1
      %p109 = por %p107, %p108
      %p111 = scmp.ne.s32.totalorder %s96, %s110
      %p112 = scmp.eq.s32.totalorder %s23, 0
      %p113 = por %p111, %p112
      %s114 = ssub.s32 %s17, %s24
      %p115 = scmp.eq.s32.totalorder %s114, 0
      %s117 = sadd.s32 %s116, 1
      %s118 = scalar_select %p115, %s116, %s117
      %p121 = pneg %p115
      %p122 = scmp.eq.s32.totalorder %s17, 1
      %p123 = por %p121, %p122
      %p124 = scmp.ne.s32.totalorder %s116, %s119
      %p125 = scmp.eq.s32.totalorder %s17, 0
      %p126 = por %p124, %p125
      %p127 = scmp.ne.s32.totalorder %s116, %s119
      %p128 = scmp.eq.s32.totalorder %s22, 1
      %p129 = por %p127, %p128
      %p130 = scmp.ne.s32.totalorder %s119, %s120
      %p131 = scmp.eq.s32.totalorder %s22, 0
      %p132 = por %p130, %p131
      %p133 = scmp.ne.s32.totalorder %s119, %s120
      %p134 = scmp.eq.s32.totalorder %s23, 1
      %p135 = por %p133, %p134
      %p137 = scmp.ne.s32.totalorder %s120, %s136
      %p138 = scmp.eq.s32.totalorder %s23, 0
      %p139 = por %p137, %p138
      %p140 = scmp.le.s32.totalorder 1, %s17
      %p141 = scmp.lt.s32.totalorder %s17, 3
      %p142 = pnand %p140, %p141
      %p143 = pneg %p142
      // Predicated region
      $region9: #{tpu_custom_call.1} parent=5 // pred_check
        _
      $region10: #{tpu_custom_call.1} parent=5 // pred_check_branch
        %145 = sbr.rel (%p142) target = $region12
      $region11: #{tpu_custom_call.1} parent=5 // pred_region
        %s146 = ssub.s32 %s17, 1
        // Predicated region
        $region13: #{tpu_custom_call.1} parent=11 // pred_check
          %p147 = pneg %p64
        $region14: #{tpu_custom_call.1} parent=11 // pred_check_branch
          %149 = sbr.rel (%p147) target = $region16
        $region15: #{tpu_custom_call.1} parent=11 // pred_region
          %151 = vsyncadd [#allocation7], 0
          %s152 = sshll.u32 %s1, 4
          %s153 = int_to_ptr.hbm [resolvable:$true] %s152
          %s154 = sshll.u32 [#allocation6], 4
          %s155 = int_to_ptr.vmem [resolvable:$true] %s154
          %160 = dma.hbm_to_vmem [thread:$0]  %s153, 9216, %s155, [#allocation7], 64, 64, 4
        $region16: #{tpu_custom_call.1} parent=11 // pred_fallthru
          _
        // Predicated region
        $region17: #{tpu_custom_call.1} parent=11 // pred_check
          %p161 = pneg %p85
        $region18: #{tpu_custom_call.1} parent=11 // pred_check_branch
          %163 = sbr.rel (%p161) target = $region20
        $region19: #{tpu_custom_call.1} parent=11 // pred_region
          %165 = vsyncadd [#allocation7], 0
          %s166 = sshll.u32 %s2, 4
          %s167 = int_to_ptr.hbm [resolvable:$true] %s166
          %s168 = sshll.u32 [#allocation8], 4
          %s169 = int_to_ptr.vmem [resolvable:$true] %s168
          %174 = dma.hbm_to_vmem [thread:$0]  %s167, 9216, %s169, [#allocation7], 64, 64, 4
        $region20: #{tpu_custom_call.1} parent=11 // pred_fallthru
          _
        // Predicated region
        $region21: #{tpu_custom_call.1} parent=11 // pred_check
          %p175 = pneg %p106
        $region22: #{tpu_custom_call.1} parent=11 // pred_check_branch
          %177 = sbr.rel (%p175) target = $region24
        $region23: #{tpu_custom_call.1} parent=11 // pred_region
          _
        $region24: #{tpu_custom_call.1} parent=11 // pred_fallthru
          _
      $region12: #{tpu_custom_call.1} parent=5 // pred_fallthru
        _
      %p178 = scmp.lt.s32.totalorder %s17, 2
      // Predicated region
      $region25: #{tpu_custom_call.1} parent=5 // pred_check
        %p179 = pneg %p178
      $region26: #{tpu_custom_call.1} parent=5 // pred_check_branch
        %181 = sbr.rel (%p179) target = $region28
      $region27: #{tpu_custom_call.1} parent=5 // pred_region
        // Predicated region
        $region29: #{tpu_custom_call.1} parent=27 // pred_check
          %p182 = pneg %p37
        $region30: #{tpu_custom_call.1} parent=27 // pred_check_branch
          %184 = sbr.rel (%p182) target = $region32
        $region31: #{tpu_custom_call.1} parent=27 // pred_region
          %s185 = sand.u32 %s27, 1
          %s186 = scalar_lea.sflag [#allocation4], %s185
          %s187 = sand.u32 %s27, 1
          %s188 = smul.addr %s187, 256
          %s189 = scalar_lea.vmem [#allocation3], %s188
          %191 = vsyncadd %s186, 0
          %s192 = smul.addr %s17, 32
          %s193 = smul.addr %s192, 8
          %s194 = scalar_lea.hbm %s0, %s193
          %s195 = sshll.u32 %s194, 4
          %s196 = int_to_ptr.hbm [resolvable:$true] %s195
          %s197 = sshll.u32 %s189, 4
          %s198 = int_to_ptr.vmem [resolvable:$true] %s197
          %203 = dma.hbm_to_vmem [thread:$0]  %s196, 4096, %s198, %s186, 128, 128, 8
        $region32: #{tpu_custom_call.1} parent=27 // pred_fallthru
          _
      $region28: #{tpu_custom_call.1} parent=5 // pred_fallthru
        _
      %p204 = scmp.le.s32.totalorder 1, %s17
      %p205 = scmp.lt.s32.totalorder %s17, 3
      %p206 = pnand %p204, %p205
      %p207 = pneg %p206
      // Predicated region
      $region33: #{tpu_custom_call.1} parent=5 // pred_check
        _
      $region34: #{tpu_custom_call.1} parent=5 // pred_check_branch
        %209 = sbr.rel (%p206) target = $region36
      $region35: #{tpu_custom_call.1} parent=5 // pred_region
        %s210 = ssub.s32 %s17, 1
        %s211 = sand.u32 %s30, 1
        %s212 = scalar_lea.sflag [#allocation4], %s211
        %s213 = sand.u32 %s30, 1
        %s214 = smul.addr %s213, 256
        %s215 = scalar_lea.vmem [#allocation3], %s214
        // Predicated region
        $region37: #{tpu_custom_call.1} parent=35 // pred_check
          %p216 = pneg %p43
        $region38: #{tpu_custom_call.1} parent=35 // pred_check_branch
          %218 = sbr.rel (%p216) target = $region40
        $region39: #{tpu_custom_call.1} parent=35 // pred_region
          %220 = dma.done %s212, 4096
        $region40: #{tpu_custom_call.1} parent=35 // pred_fallthru
          _
        // Predicated region
        $region41: #{tpu_custom_call.1} parent=35 // pred_check
          %p221 = pneg %p64
        $region42: #{tpu_custom_call.1} parent=35 // pred_check_branch
          %223 = sbr.rel (%p221) target = $region44
        $region43: #{tpu_custom_call.1} parent=35 // pred_region
          %225 = dma.done [#allocation7], 9216
        $region44: #{tpu_custom_call.1} parent=35 // pred_fallthru
          _
        // Predicated region
        $region45: #{tpu_custom_call.1} parent=35 // pred_check
          %p226 = pneg %p85
        $region46: #{tpu_custom_call.1} parent=35 // pred_check_branch
          %228 = sbr.rel (%p226) target = $region48
        $region47: #{tpu_custom_call.1} parent=35 // pred_region
          %230 = dma.done [#allocation7], 9216
        $region48: #{tpu_custom_call.1} parent=35 // pred_fallthru
          _
        %s231 = sand.u32 %s30, 1
        %s232 = scalar_lea.sflag [#allocation4], %s231
        %s233 = sand.u32 %s30, 1
        %s234 = smul.addr %s233, 256
        %s235 = scalar_lea.vmem [#allocation3], %s234
        %p236 = pneg %p43
        %p237 = pneg %p40
        %p238 = pneg %p64
        %p239 = pneg %p61
        %p240 = pneg %p85
        %p241 = pneg %p82
        %p242 = pneg %p106
        %p243 = pneg %p103
        %p244 = pneg %p132
        %p245 = pneg %p129
        %s246 = sand.u32 %s119, 1
        %s247 = scalar_lea.sflag [#allocation5], %s246
        %s248 = sand.u32 %s119, 1
        %s249 = smul.addr %s248, 256
        %s250 = scalar_lea.vmem [#allocation9], %s249
        %v252 = vld [vmem:[%s215] sm:$0xff]
        %v253 = vld [vmem:[%s215 + $0x8] sm:$0xff]
        %v254 = vld [vmem:[%s215 + $0x10] sm:$0xff]
        %v255 = vld [vmem:[%s215 + $0x18] sm:$0xff]
        %v256 = vld [vmem:[%s215 + $0x20] sm:$0xff]
        %v257 = vld [vmem:[%s215 + $0x28] sm:$0xff]
        %v258 = vld [vmem:[%s215 + $0x30] sm:$0xff]
        %v259 = vld [vmem:[%s215 + $0x38] sm:$0xff]
        %v260 = vld [vmem:[%s215 + $0x40] sm:$0xff]
        %v261 = vld [vmem:[%s215 + $0x48] sm:$0xff]
        %v262 = vld [vmem:[%s215 + $0x50] sm:$0xff]
        %v263 = vld [vmem:[%s215 + $0x58] sm:$0xff]
        %v264 = vld [vmem:[%s215 + $0x60] sm:$0xff]
        %v265 = vld [vmem:[%s215 + $0x68] sm:$0xff]
        %v266 = vld [vmem:[%s215 + $0x70] sm:$0xff]
        %v267 = vld [vmem:[%s215 + $0x78] sm:$0xff]
        %v268 = vld [vmem:[%s215 + $0x80] sm:$0xff]
        %v269 = vld [vmem:[%s215 + $0x88] sm:$0xff]
        %v270 = vld [vmem:[%s215 + $0x90] sm:$0xff]
        %v271 = vld [vmem:[%s215 + $0x98] sm:$0xff]
        %v272 = vld [vmem:[%s215 + $0xa0] sm:$0xff]
        %v273 = vld [vmem:[%s215 + $0xa8] sm:$0xff]
        %v274 = vld [vmem:[%s215 + $0xb0] sm:$0xff]
        %v275 = vld [vmem:[%s215 + $0xb8] sm:$0xff]
        %v276 = vld [vmem:[%s215 + $0xc0] sm:$0xff]
        %v277 = vld [vmem:[%s215 + $0xc8] sm:$0xff]
        %v278 = vld [vmem:[%s215 + $0xd0] sm:$0xff]
        %v279 = vld [vmem:[%s215 + $0xd8] sm:$0xff]
        %v280 = vld [vmem:[%s215 + $0xe0] sm:$0xff]
        %v281 = vld [vmem:[%s215 + $0xe8] sm:$0xff]
        %v282 = vld [vmem:[%s215 + $0xf0] sm:$0xff]
        %v283 = vld [vmem:[%s215 + $0xf8] sm:$0xff]
        %v284 = vpack.c.bf16 %v252, %v252
        %v285 = vpack.c.bf16 %v253, %v253
        %v286 = vpack.c.bf16 %v254, %v254
        %v287 = vpack.c.bf16 %v255, %v255
        %v288 = vpack.c.bf16 %v256, %v256
        %v289 = vpack.c.bf16 %v257, %v257
        %v290 = vpack.c.bf16 %v258, %v258
        %v291 = vpack.c.bf16 %v259, %v259
        %v292 = vpack.c.bf16 %v260, %v260
        %v293 = vpack.c.bf16 %v261, %v261
        %v294 = vpack.c.bf16 %v262, %v262
        %v295 = vpack.c.bf16 %v263, %v263
        %v296 = vpack.c.bf16 %v264, %v264
        %v297 = vpack.c.bf16 %v265, %v265
        %v298 = vpack.c.bf16 %v266, %v266
        %v299 = vpack.c.bf16 %v267, %v267
        %v300 = vpack.c.bf16 %v268, %v268
        %v301 = vpack.c.bf16 %v269, %v269
        %v302 = vpack.c.bf16 %v270, %v270
        %v303 = vpack.c.bf16 %v271, %v271
        %v304 = vpack.c.bf16 %v272, %v272
        %v305 = vpack.c.bf16 %v273, %v273
        %v306 = vpack.c.bf16 %v274, %v274
        %v307 = vpack.c.bf16 %v275, %v275
        %v308 = vpack.c.bf16 %v276, %v276
        %v309 = vpack.c.bf16 %v277, %v277
        %v310 = vpack.c.bf16 %v278, %v278
        %v311 = vpack.c.bf16 %v279, %v279
        %v312 = vpack.c.bf16 %v280, %v280
        %v313 = vpack.c.bf16 %v281, %v281
        %v314 = vpack.c.bf16 %v282, %v282
        %v315 = vpack.c.bf16 %v283, %v283
        %v348 = vunpack.c.l.b16 %v284
        %v349 = vunpack.c.l.b16 %v285
        %v350 = vunpack.c.l.b16 %v286
        %v351 = vunpack.c.l.b16 %v287
        %v352 = vunpack.c.l.b16 %v288
        %v353 = vunpack.c.l.b16 %v289
        %v354 = vunpack.c.l.b16 %v290
        %v355 = vunpack.c.l.b16 %v291
        %v356 = vunpack.c.l.b16 %v292
        %v357 = vunpack.c.l.b16 %v293
        %v358 = vunpack.c.l.b16 %v294
        %v359 = vunpack.c.l.b16 %v295
        %v360 = vunpack.c.l.b16 %v296
        %v361 = vunpack.c.l.b16 %v297
        %v362 = vunpack.c.l.b16 %v298
        %v363 = vunpack.c.l.b16 %v299
        %v364 = vunpack.c.l.b16 %v300
        %v365 = vunpack.c.l.b16 %v301
        %v366 = vunpack.c.l.b16 %v302
        %v367 = vunpack.c.l.b16 %v303
        %v368 = vunpack.c.l.b16 %v304
        %v369 = vunpack.c.l.b16 %v305
        %v370 = vunpack.c.l.b16 %v306
        %v371 = vunpack.c.l.b16 %v307
        %v372 = vunpack.c.l.b16 %v308
        %v373 = vunpack.c.l.b16 %v309
        %v374 = vunpack.c.l.b16 %v310
        %v375 = vunpack.c.l.b16 %v311
        %v376 = vunpack.c.l.b16 %v312
        %v377 = vunpack.c.l.b16 %v313
        %v378 = vunpack.c.l.b16 %v314
        %v379 = vunpack.c.l.b16 %v315
        %v380 = vpack.c.b16 %v349, %v348
        %v381 = vpack.c.b16 %v351, %v350
        %v382 = vpack.c.b16 %v353, %v352
        %v383 = vpack.c.b16 %v355, %v354
        %v384 = vpack.c.b16 %v357, %v356
        %v385 = vpack.c.b16 %v359, %v358
        %v386 = vpack.c.b16 %v361, %v360
        %v387 = vpack.c.b16 %v363, %v362
        %v388 = vpack.c.b16 %v365, %v364
        %v389 = vpack.c.b16 %v367, %v366
        %v390 = vpack.c.b16 %v369, %v368
        %v391 = vpack.c.b16 %v371, %v370
        %v392 = vpack.c.b16 %v373, %v372
        %v393 = vpack.c.b16 %v375, %v374
        %v394 = vpack.c.b16 %v377, %v376
        %v395 = vpack.c.b16 %v379, %v378
        %v397 = vshrl.u32 %v380, 16
        %v399 = vrot.slane %v397, 7
        %v400 = vshll.u32 %v380, 16
        %v402 = vor.u32 %v399, %v400
        %v404 = vshrl.u32 %v381, 16
        %v406 = vrot.slane %v404, 7
        %v407 = vshll.u32 %v381, 16
        %v409 = vor.u32 %v406, %v407
        %v411 = vshrl.u32 %v382, 16
        %v413 = vrot.slane %v411, 7
        %v414 = vshll.u32 %v382, 16
        %v416 = vor.u32 %v413, %v414
        %v418 = vshrl.u32 %v383, 16
        %v420 = vrot.slane %v418, 7
        %v421 = vshll.u32 %v383, 16
        %v423 = vor.u32 %v420, %v421
        %v425 = vshrl.u32 %v384, 16
        %v427 = vrot.slane %v425, 7
        %v428 = vshll.u32 %v384, 16
        %v430 = vor.u32 %v427, %v428
        %v432 = vshrl.u32 %v385, 16
        %v434 = vrot.slane %v432, 7
        %v435 = vshll.u32 %v385, 16
        %v437 = vor.u32 %v434, %v435
        %v439 = vshrl.u32 %v386, 16
        %v441 = vrot.slane %v439, 7
        %v442 = vshll.u32 %v386, 16
        %v444 = vor.u32 %v441, %v442
        %v446 = vshrl.u32 %v387, 16
        %v448 = vrot.slane %v446, 7
        %v449 = vshll.u32 %v387, 16
        %v451 = vor.u32 %v448, %v449
        %v453 = vshrl.u32 %v388, 16
        %v455 = vrot.slane %v453, 7
        %v456 = vshll.u32 %v388, 16
        %v458 = vor.u32 %v455, %v456
        %v460 = vshrl.u32 %v389, 16
        %v462 = vrot.slane %v460, 7
        %v463 = vshll.u32 %v389, 16
        %v465 = vor.u32 %v462, %v463
        %v467 = vshrl.u32 %v390, 16
        %v469 = vrot.slane %v467, 7
        %v470 = vshll.u32 %v390, 16
        %v472 = vor.u32 %v469, %v470
        %v474 = vshrl.u32 %v391, 16
        %v476 = vrot.slane %v474, 7
        %v477 = vshll.u32 %v391, 16
        %v479 = vor.u32 %v476, %v477
        %v481 = vshrl.u32 %v392, 16
        %v483 = vrot.slane %v481, 7
        %v484 = vshll.u32 %v392, 16
        %v486 = vor.u32 %v483, %v484
        %v488 = vshrl.u32 %v393, 16
        %v490 = vrot.slane %v488, 7
        %v491 = vshll.u32 %v393, 16
        %v493 = vor.u32 %v490, %v491
        %v495 = vshrl.u32 %v394, 16
        %v497 = vrot.slane %v495, 7
        %v498 = vshll.u32 %v394, 16
        %v500 = vor.u32 %v497, %v498
        %v502 = vshrl.u32 %v395, 16
        %v504 = vrot.slane %v502, 7
        %v505 = vshll.u32 %v395, 16
        %v507 = vor.u32 %v504, %v505
        %vm540 = vcmask 1040384
        %vm541 = vsmask.f32 256
        %vm542 = vmand %vm540, %vm541
        %v543 = vsel %vm542, 0, %v402
        %v544 = vsel %vm542, 0, %v409
        %v545 = vsel %vm542, 0, %v416
        %v546 = vsel %vm542, 0, %v423
        %v547 = vsel %vm542, 0, %v430
        %v548 = vsel %vm542, 0, %v437
        %v549 = vsel %vm542, 0, %v444
        %v550 = vsel %vm542, 0, %v451
        %v551 = vsel %vm542, 0, %v458
        %v552 = vsel %vm542, 0, %v465
        %v553 = vsel %vm542, 0, %v472
        %v554 = vsel %vm542, 0, %v479
        %v555 = vsel %vm542, 0, %v486
        %v556 = vsel %vm542, 0, %v493
        %v557 = vsel %vm542, 0, %v500
        %v558 = vsel %vm542, 0, %v507
        %v559 = vsel %vm542, %v399, 0
        %v560 = vsel %vm542, %v406, 0
        %v561 = vsel %vm542, %v413, 0
        %v562 = vsel %vm542, %v420, 0
        %v563 = vsel %vm542, %v427, 0
        %v564 = vsel %vm542, %v434, 0
        %v565 = vsel %vm542, %v441, 0
        %v566 = vsel %vm542, %v448, 0
        %v567 = vsel %vm542, %v455, 0
        %v568 = vsel %vm542, %v462, 0
        %v569 = vsel %vm542, %v469, 0
        %v570 = vsel %vm542, %v476, 0
        %v571 = vsel %vm542, %v483, 0
        %v572 = vsel %vm542, %v490, 0
        %v573 = vsel %vm542, %v497, 0
        %v574 = vsel %vm542, %v504, 0
        %v608 = vunpack.c.l.b16 0
        %v609 = vunpack.c.h.b16 0
        %v610 = vunpack.c.l.b16 %v543
        %v611 = vunpack.c.h.b16 %v543
        %v612 = vunpack.c.l.b16 %v559
        %v613 = vunpack.c.l.b16 %v544
        %v614 = vunpack.c.h.b16 %v544
        %v615 = vunpack.c.l.b16 %v560
        %v616 = vunpack.c.l.b16 %v545
        %v617 = vunpack.c.h.b16 %v545
        %v618 = vunpack.c.l.b16 %v561
        %v619 = vunpack.c.l.b16 %v546
        %v620 = vunpack.c.h.b16 %v546
        %v621 = vunpack.c.l.b16 %v562
        %v622 = vunpack.c.l.b16 %v547
        %v623 = vunpack.c.h.b16 %v547
        %v624 = vunpack.c.l.b16 %v563
        %v625 = vunpack.c.l.b16 %v548
        %v626 = vunpack.c.h.b16 %v548
        %v627 = vunpack.c.l.b16 %v564
        %v628 = vunpack.c.l.b16 %v549
        %v629 = vunpack.c.h.b16 %v549
        %v630 = vunpack.c.l.b16 %v565
        %v631 = vunpack.c.l.b16 %v550
        %v632 = vunpack.c.h.b16 %v550
        %v633 = vunpack.c.l.b16 %v566
        %v634 = vunpack.c.l.b16 %v551
        %v635 = vunpack.c.h.b16 %v551
        %v636 = vunpack.c.l.b16 %v567
        %v637 = vunpack.c.l.b16 %v552
        %v638 = vunpack.c.h.b16 %v552
        %v639 = vunpack.c.l.b16 %v568
        %v640 = vunpack.c.l.b16 %v553
        %v641 = vunpack.c.h.b16 %v553
        %v642 = vunpack.c.l.b16 %v569
        %v643 = vunpack.c.l.b16 %v554
        %v644 = vunpack.c.h.b16 %v554
        %v645 = vunpack.c.l.b16 %v570
        %v646 = vunpack.c.l.b16 %v555
        %v647 = vunpack.c.h.b16 %v555
        %v648 = vunpack.c.l.b16 %v571
        %v649 = vunpack.c.l.b16 %v556
        %v650 = vunpack.c.h.b16 %v556
        %v651 = vunpack.c.l.b16 %v572
        %v652 = vunpack.c.l.b16 %v557
        %v653 = vunpack.c.h.b16 %v557
        %v654 = vunpack.c.l.b16 %v573
        %v655 = vunpack.c.l.b16 %v558
        %v656 = vunpack.c.h.b16 %v558
        %v657 = vunpack.c.l.b16 %v574
        %v658 = vpack.c.b16 %v608, %v608
        %v659 = vpack.c.b16 %v609, %v609
        %v660 = vpack.c.b16 %v610, %v610
        %v661 = vpack.c.b16 %v611, %v611
        %v662 = vpack.c.b16 %v612, %v612
        %v663 = vpack.c.b16 %v613, %v613
        %v664 = vpack.c.b16 %v614, %v614
        %v665 = vpack.c.b16 %v615, %v615
        %v666 = vpack.c.b16 %v616, %v616
        %v667 = vpack.c.b16 %v617, %v617
        %v668 = vpack.c.b16 %v618, %v618
        %v669 = vpack.c.b16 %v619, %v619
        %v670 = vpack.c.b16 %v620, %v620
        %v671 = vpack.c.b16 %v621, %v621
        %v672 = vpack.c.b16 %v622, %v622
        %v673 = vpack.c.b16 %v623, %v623
        %v674 = vpack.c.b16 %v624, %v624
        %v675 = vpack.c.b16 %v625, %v625
        %v676 = vpack.c.b16 %v626, %v626
        %v677 = vpack.c.b16 %v627, %v627
        %v678 = vpack.c.b16 %v628, %v628
        %v679 = vpack.c.b16 %v629, %v629
        %v680 = vpack.c.b16 %v630, %v630
        %v681 = vpack.c.b16 %v631, %v631
        %v682 = vpack.c.b16 %v632, %v632
        %v683 = vpack.c.b16 %v633, %v633
        %v684 = vpack.c.b16 %v634, %v634
        %v685 = vpack.c.b16 %v635, %v635
        %v686 = vpack.c.b16 %v636, %v636
        %v687 = vpack.c.b16 %v637, %v637
        %v688 = vpack.c.b16 %v638, %v638
        %v689 = vpack.c.b16 %v639, %v639
        %v690 = vpack.c.b16 %v640, %v640
        %v691 = vpack.c.b16 %v641, %v641
        %v692 = vpack.c.b16 %v642, %v642
        %v693 = vpack.c.b16 %v643, %v643
        %v694 = vpack.c.b16 %v644, %v644
        %v695 = vpack.c.b16 %v645, %v645
        %v696 = vpack.c.b16 %v646, %v646
        %v697 = vpack.c.b16 %v647, %v647
        %v698 = vpack.c.b16 %v648, %v648
        %v699 = vpack.c.b16 %v649, %v649
        %v700 = vpack.c.b16 %v650, %v650
        %v701 = vpack.c.b16 %v651, %v651
        %v702 = vpack.c.b16 %v652, %v652
        %v703 = vpack.c.b16 %v653, %v653
        %v704 = vpack.c.b16 %v654, %v654
        %v705 = vpack.c.b16 %v655, %v655
        %v706 = vpack.c.b16 %v656, %v656
        %v707 = vpack.c.b16 %v657, %v657
        %758 = vst [vmem:[#allocation2] sm:$0xf] %v658
        %759 = vst [vmem:[#allocation2 + $0x4] sm:$0xf] %v659
        %760 = vst [vmem:[#allocation2 + $0x8] sm:$0x1] %v658
        %761 = vst [vmem:[#allocation2 + $0xc] sm:$0xf] %v660
        %762 = vst [vmem:[#allocation2 + $0x10] sm:$0xf] %v661
        %763 = vst [vmem:[#allocation2 + $0x14] sm:$0x1] %v662
        %764 = vst [vmem:[#allocation2 + $0x18] sm:$0xf] %v663
        %765 = vst [vmem:[#allocation2 + $0x1c] sm:$0xf] %v664
        %766 = vst [vmem:[#allocation2 + $0x20] sm:$0x1] %v665
        %767 = vst [vmem:[#allocation2 + $0x24] sm:$0xf] %v666
        %768 = vst [vmem:[#allocation2 + $0x28] sm:$0xf] %v667
        %769 = vst [vmem:[#allocation2 + $0x2c] sm:$0x1] %v668
        %770 = vst [vmem:[#allocation2 + $0x30] sm:$0xf] %v669
        %771 = vst [vmem:[#allocation2 + $0x34] sm:$0xf] %v670
        %772 = vst [vmem:[#allocation2 + $0x38] sm:$0x1] %v671
        %773 = vst [vmem:[#allocation2 + $0x3c] sm:$0xf] %v672
        %774 = vst [vmem:[#allocation2 + $0x40] sm:$0xf] %v673
        %775 = vst [vmem:[#allocation2 + $0x44] sm:$0x1] %v674
        %776 = vst [vmem:[#allocation2 + $0x48] sm:$0xf] %v675
        %777 = vst [vmem:[#allocation2 + $0x4c] sm:$0xf] %v676
        %778 = vst [vmem:[#allocation2 + $0x50] sm:$0x1] %v677
        %779 = vst [vmem:[#allocation2 + $0x54] sm:$0xf] %v678
        %780 = vst [vmem:[#allocation2 + $0x58] sm:$0xf] %v679
        %781 = vst [vmem:[#allocation2 + $0x5c] sm:$0x1] %v680
        %782 = vst [vmem:[#allocation2 + $0x60] sm:$0xf] %v681
        %783 = vst [vmem:[#allocation2 + $0x64] sm:$0xf] %v682
        %784 = vst [vmem:[#allocation2 + $0x68] sm:$0x1] %v683
        %785 = vst [vmem:[#allocation2 + $0x6c] sm:$0xf] %v684
        %786 = vst [vmem:[#allocation2 + $0x70] sm:$0xf] %v685
        %787 = vst [vmem:[#allocation2 + $0x74] sm:$0x1] %v686
        %788 = vst [vmem:[#allocation2 + $0x78] sm:$0xf] %v687
        %789 = vst [vmem:[#allocation2 + $0x7c] sm:$0xf] %v688
        %790 = vst [vmem:[#allocation2 + $0x80] sm:$0x1] %v689
        %791 = vst [vmem:[#allocation2 + $0x84] sm:$0xf] %v690
        %792 = vst [vmem:[#allocation2 + $0x88] sm:$0xf] %v691
        %793 = vst [vmem:[#allocation2 + $0x8c] sm:$0x1] %v692
        %794 = vst [vmem:[#allocation2 + $0x90] sm:$0xf] %v693
        %795 = vst [vmem:[#allocation2 + $0x94] sm:$0xf] %v694
        %796 = vst [vmem:[#allocation2 + $0x98] sm:$0x1] %v695
        %797 = vst [vmem:[#allocation2 + $0x9c] sm:$0xf] %v696
        %798 = vst [vmem:[#allocation2 + $0xa0] sm:$0xf] %v697
        %799 = vst [vmem:[#allocation2 + $0xa4] sm:$0x1] %v698
        %800 = vst [vmem:[#allocation2 + $0xa8] sm:$0xf] %v699
        %801 = vst [vmem:[#allocation2 + $0xac] sm:$0xf] %v700
        %802 = vst [vmem:[#allocation2 + $0xb0] sm:$0x1] %v701
        %803 = vst [vmem:[#allocation2 + $0xb4] sm:$0xf] %v702
        %804 = vst [vmem:[#allocation2 + $0xb8] sm:$0xf] %v703
        %805 = vst [vmem:[#allocation2 + $0xbc] sm:$0x1] %v704
        %806 = vst [vmem:[#allocation2 + $0xc0] sm:$0xf] %v705
        %807 = vst [vmem:[#allocation2 + $0xc4] sm:$0xf] %v706
        %808 = vst [vmem:[#allocation2 + $0xc8] sm:$0x1] %v707
        %809 = vst [vmem:[#allocation2 + $0xcc] sm:$0xf] %v658
        %810 = vst [vmem:[#allocation2 + $0xd0] sm:$0xf] %v659
        %811 = vst [vmem:[#allocation2 + $0xd4] sm:$0x1] %v658
        %v812 = vld [vmem:[#allocation2] sm:$0xf]
        %v813 = vld [vmem:[#allocation2 + $0x4] sm:$0xf]
        %v814 = vld [vmem:[#allocation2 + $0xc] sm:$0xf]
        %v815 = vld [vmem:[#allocation2 + $0x10] sm:$0xf]
        %v816 = vld [vmem:[#allocation2 + $0x18] sm:$0xf]
        %v817 = vld [vmem:[#allocation2 + $0x1c] sm:$0xf]
        %v818 = vld [vmem:[#allocation2 + $0x24] sm:$0xf]
        %v819 = vld [vmem:[#allocation2 + $0x28] sm:$0xf]
        %v820 = vld [vmem:[#allocation2 + $0x30] sm:$0xf]
        %v821 = vld [vmem:[#allocation2 + $0x34] sm:$0xf]
        %v822 = vld [vmem:[#allocation2 + $0x3c] sm:$0xf]
        %v823 = vld [vmem:[#allocation2 + $0x40] sm:$0xf]
        %v824 = vld [vmem:[#allocation2 + $0x48] sm:$0xf]
        %v825 = vld [vmem:[#allocation2 + $0x4c] sm:$0xf]
        %v826 = vld [vmem:[#allocation2 + $0x54] sm:$0xf]
        %v827 = vld [vmem:[#allocation2 + $0x58] sm:$0xf]
        %v828 = vld [vmem:[#allocation2 + $0x60] sm:$0xf]
        %v829 = vld [vmem:[#allocation2 + $0x64] sm:$0xf]
        %v830 = vld [vmem:[#allocation2 + $0x6c] sm:$0xf]
        %v831 = vld [vmem:[#allocation2 + $0x70] sm:$0xf]
        %v832 = vld [vmem:[#allocation2 + $0x78] sm:$0xf]
        %v833 = vld [vmem:[#allocation2 + $0x7c] sm:$0xf]
        %v834 = vld [vmem:[#allocation2 + $0x84] sm:$0xf]
        %v835 = vld [vmem:[#allocation2 + $0x88] sm:$0xf]
        %v836 = vld [vmem:[#allocation2 + $0x90] sm:$0xf]
        %v837 = vld [vmem:[#allocation2 + $0x94] sm:$0xf]
        %v838 = vld [vmem:[#allocation2 + $0x9c] sm:$0xf]
        %v839 = vld [vmem:[#allocation2 + $0xa0] sm:$0xf]
        %v840 = vld [vmem:[#allocation2 + $0xa8] sm:$0xf]
        %v841 = vld [vmem:[#allocation2 + $0xac] sm:$0xf]
        %v842 = vld [vmem:[#allocation2 + $0xb4] sm:$0xf]
        %v843 = vld [vmem:[#allocation2 + $0xb8] sm:$0xf]
        %v844 = vld [vmem:[#allocation2 + $0x8] sm:$0x1]
        %v845 = vld [vmem:[#allocation2 + $0x14] sm:$0x1]
        %v846 = vld [vmem:[#allocation2 + $0x20] sm:$0x1]
        %v847 = vld [vmem:[#allocation2 + $0x2c] sm:$0x1]
        %v848 = vld [vmem:[#allocation2 + $0x38] sm:$0x1]
        %v849 = vld [vmem:[#allocation2 + $0x44] sm:$0x1]
        %v850 = vld [vmem:[#allocation2 + $0x50] sm:$0x1]
        %v851 = vld [vmem:[#allocation2 + $0x5c] sm:$0x1]
        %v852 = vld [vmem:[#allocation2 + $0x68] sm:$0x1]
        %v853 = vld [vmem:[#allocation2 + $0x74] sm:$0x1]
        %v854 = vld [vmem:[#allocation2 + $0x80] sm:$0x1]
        %v855 = vld [vmem:[#allocation2 + $0x8c] sm:$0x1]
        %v856 = vld [vmem:[#allocation2 + $0x98] sm:$0x1]
        %v857 = vld [vmem:[#allocation2 + $0xa4] sm:$0x1]
        %v858 = vld [vmem:[#allocation2 + $0xb0] sm:$0x1]
        %v859 = vld [vmem:[#allocation2 + $0xbc] sm:$0x1]
        %v860 = vld [vmem:[#allocation2] sm:$0xe]
        %v861 = vld [vmem:[#allocation2 + $0xc] sm:$0xe]
        %v862 = vld [vmem:[#allocation2 + $0x18] sm:$0xe]
        %v863 = vld [vmem:[#allocation2 + $0x24] sm:$0xe]
        %v864 = vld [vmem:[#allocation2 + $0x30] sm:$0xe]
        %v865 = vld [vmem:[#allocation2 + $0x3c] sm:$0xe]
        %v866 = vld [vmem:[#allocation2 + $0x48] sm:$0xe]
        %v867 = vld [vmem:[#allocation2 + $0x54] sm:$0xe]
        %v868 = vld [vmem:[#allocation2 + $0x60] sm:$0xe]
        %v869 = vld [vmem:[#allocation2 + $0x6c] sm:$0xe]
        %v870 = vld [vmem:[#allocation2 + $0x78] sm:$0xe]
        %v871 = vld [vmem:[#allocation2 + $0x84] sm:$0xe]
        %v872 = vld [vmem:[#allocation2 + $0x90] sm:$0xe]
        %v873 = vld [vmem:[#allocation2 + $0x9c] sm:$0xe]
        %v874 = vld [vmem:[#allocation2 + $0xa8] sm:$0xe]
        %v875 = vld [vmem:[#allocation2 + $0xb4] sm:$0xe]
        %s876 = scalar_lea.vmem [#allocation2], 12
        %v877 = vld [vmem:[%s876] sm:$0xf]
        %v878 = vld [vmem:[%s876 + $0x4] sm:$0xf]
        %v879 = vld [vmem:[%s876 + $0xc] sm:$0xf]
        %v880 = vld [vmem:[%s876 + $0x10] sm:$0xf]
        %v881 = vld [vmem:[%s876 + $0x18] sm:$0xf]
        %v882 = vld [vmem:[%s876 + $0x1c] sm:$0xf]
        %v883 = vld [vmem:[%s876 + $0x24] sm:$0xf]
        %v884 = vld [vmem:[%s876 + $0x28] sm:$0xf]
        %v885 = vld [vmem:[%s876 + $0x30] sm:$0xf]
        %v886 = vld [vmem:[%s876 + $0x34] sm:$0xf]
        %v887 = vld [vmem:[%s876 + $0x3c] sm:$0xf]
        %v888 = vld [vmem:[%s876 + $0x40] sm:$0xf]
        %v889 = vld [vmem:[%s876 + $0x48] sm:$0xf]
        %v890 = vld [vmem:[%s876 + $0x4c] sm:$0xf]
        %v891 = vld [vmem:[%s876 + $0x54] sm:$0xf]
        %v892 = vld [vmem:[%s876 + $0x58] sm:$0xf]
        %v893 = vld [vmem:[%s876 + $0x60] sm:$0xf]
        %v894 = vld [vmem:[%s876 + $0x64] sm:$0xf]
        %v895 = vld [vmem:[%s876 + $0x6c] sm:$0xf]
        %v896 = vld [vmem:[%s876 + $0x70] sm:$0xf]
        %v897 = vld [vmem:[%s876 + $0x78] sm:$0xf]
        %v898 = vld [vmem:[%s876 + $0x7c] sm:$0xf]
        %v899 = vld [vmem:[%s876 + $0x84] sm:$0xf]
        %v900 = vld [vmem:[%s876 + $0x88] sm:$0xf]
        %v901 = vld [vmem:[%s876 + $0x90] sm:$0xf]
        %v902 = vld [vmem:[%s876 + $0x94] sm:$0xf]
        %v903 = vld [vmem:[%s876 + $0x9c] sm:$0xf]
        %v904 = vld [vmem:[%s876 + $0xa0] sm:$0xf]
        %v905 = vld [vmem:[%s876 + $0xa8] sm:$0xf]
        %v906 = vld [vmem:[%s876 + $0xac] sm:$0xf]
        %v907 = vld [vmem:[%s876 + $0xb4] sm:$0xf]
        %v908 = vld [vmem:[%s876 + $0xb8] sm:$0xf]
        %v909 = vld [vmem:[%s876 + $0x8] sm:$0x1]
        %v910 = vld [vmem:[%s876 + $0x14] sm:$0x1]
        %v911 = vld [vmem:[%s876 + $0x20] sm:$0x1]
        %v912 = vld [vmem:[%s876 + $0x2c] sm:$0x1]
        %v913 = vld [vmem:[%s876 + $0x38] sm:$0x1]
        %v914 = vld [vmem:[%s876 + $0x44] sm:$0x1]
        %v915 = vld [vmem:[%s876 + $0x50] sm:$0x1]
        %v916 = vld [vmem:[%s876 + $0x5c] sm:$0x1]
        %v917 = vld [vmem:[%s876 + $0x68] sm:$0x1]
        %v918 = vld [vmem:[%s876 + $0x74] sm:$0x1]
        %v919 = vld [vmem:[%s876 + $0x80] sm:$0x1]
        %v920 = vld [vmem:[%s876 + $0x8c] sm:$0x1]
        %v921 = vld [vmem:[%s876 + $0x98] sm:$0x1]
        %v922 = vld [vmem:[%s876 + $0xa4] sm:$0x1]
        %v923 = vld [vmem:[%s876 + $0xb0] sm:$0x1]
        %v924 = vld [vmem:[%s876 + $0xbc] sm:$0x1]
        %v925 = vld [vmem:[%s876] sm:$0xe]
        %v926 = vld [vmem:[%s876 + $0xc] sm:$0xe]
        %v927 = vld [vmem:[%s876 + $0x18] sm:$0xe]
        %v928 = vld [vmem:[%s876 + $0x24] sm:$0xe]
        %v929 = vld [vmem:[%s876 + $0x30] sm:$0xe]
        %v930 = vld [vmem:[%s876 + $0x3c] sm:$0xe]
        %v931 = vld [vmem:[%s876 + $0x48] sm:$0xe]
        %v932 = vld [vmem:[%s876 + $0x54] sm:$0xe]
        %v933 = vld [vmem:[%s876 + $0x60] sm:$0xe]
        %v934 = vld [vmem:[%s876 + $0x6c] sm:$0xe]
        %v935 = vld [vmem:[%s876 + $0x78] sm:$0xe]
        %v936 = vld [vmem:[%s876 + $0x84] sm:$0xe]
        %v937 = vld [vmem:[%s876 + $0x90] sm:$0xe]
        %v938 = vld [vmem:[%s876 + $0x9c] sm:$0xe]
        %v939 = vld [vmem:[%s876 + $0xa8] sm:$0xe]
        %v940 = vld [vmem:[%s876 + $0xb4] sm:$0xe]
        %s941 = scalar_lea.vmem [#allocation2], 24
        %v942 = vld [vmem:[%s941] sm:$0xf]
        %v943 = vld [vmem:[%s941 + $0x4] sm:$0xf]
        %v944 = vld [vmem:[%s941 + $0xc] sm:$0xf]
        %v945 = vld [vmem:[%s941 + $0x10] sm:$0xf]
        %v946 = vld [vmem:[%s941 + $0x18] sm:$0xf]
        %v947 = vld [vmem:[%s941 + $0x1c] sm:$0xf]
        %v948 = vld [vmem:[%s941 + $0x24] sm:$0xf]
        %v949 = vld [vmem:[%s941 + $0x28] sm:$0xf]
        %v950 = vld [vmem:[%s941 + $0x30] sm:$0xf]
        %v951 = vld [vmem:[%s941 + $0x34] sm:$0xf]
        %v952 = vld [vmem:[%s941 + $0x3c] sm:$0xf]
        %v953 = vld [vmem:[%s941 + $0x40] sm:$0xf]
        %v954 = vld [vmem:[%s941 + $0x48] sm:$0xf]
        %v955 = vld [vmem:[%s941 + $0x4c] sm:$0xf]
        %v956 = vld [vmem:[%s941 + $0x54] sm:$0xf]
        %v957 = vld [vmem:[%s941 + $0x58] sm:$0xf]
        %v958 = vld [vmem:[%s941 + $0x60] sm:$0xf]
        %v959 = vld [vmem:[%s941 + $0x64] sm:$0xf]
        %v960 = vld [vmem:[%s941 + $0x6c] sm:$0xf]
        %v961 = vld [vmem:[%s941 + $0x70] sm:$0xf]
        %v962 = vld [vmem:[%s941 + $0x78] sm:$0xf]
        %v963 = vld [vmem:[%s941 + $0x7c] sm:$0xf]
        %v964 = vld [vmem:[%s941 + $0x84] sm:$0xf]
        %v965 = vld [vmem:[%s941 + $0x88] sm:$0xf]
        %v966 = vld [vmem:[%s941 + $0x90] sm:$0xf]
        %v967 = vld [vmem:[%s941 + $0x94] sm:$0xf]
        %v968 = vld [vmem:[%s941 + $0x9c] sm:$0xf]
        %v969 = vld [vmem:[%s941 + $0xa0] sm:$0xf]
        %v970 = vld [vmem:[%s941 + $0xa8] sm:$0xf]
        %v971 = vld [vmem:[%s941 + $0xac] sm:$0xf]
        %v972 = vld [vmem:[%s941 + $0xb4] sm:$0xf]
        %v973 = vld [vmem:[%s941 + $0xb8] sm:$0xf]
        %v974 = vld [vmem:[%s941 + $0x8] sm:$0x1]
        %v975 = vld [vmem:[%s941 + $0x14] sm:$0x1]
        %v976 = vld [vmem:[%s941 + $0x20] sm:$0x1]
        %v977 = vld [vmem:[%s941 + $0x2c] sm:$0x1]
        %v978 = vld [vmem:[%s941 + $0x38] sm:$0x1]
        %v979 = vld [vmem:[%s941 + $0x44] sm:$0x1]
        %v980 = vld [vmem:[%s941 + $0x50] sm:$0x1]
        %v981 = vld [vmem:[%s941 + $0x5c] sm:$0x1]
        %v982 = vld [vmem:[%s941 + $0x68] sm:$0x1]
        %v983 = vld [vmem:[%s941 + $0x74] sm:$0x1]
        %v984 = vld [vmem:[%s941 + $0x80] sm:$0x1]
        %v985 = vld [vmem:[%s941 + $0x8c] sm:$0x1]
        %v986 = vld [vmem:[%s941 + $0x98] sm:$0x1]
        %v987 = vld [vmem:[%s941 + $0xa4] sm:$0x1]
        %v988 = vld [vmem:[%s941 + $0xb0] sm:$0x1]
        %v989 = vld [vmem:[%s941 + $0xbc] sm:$0x1]
        %v990 = vld [vmem:[%s941] sm:$0xe]
        %v991 = vld [vmem:[%s941 + $0xc] sm:$0xe]
        %v992 = vld [vmem:[%s941 + $0x18] sm:$0xe]
        %v993 = vld [vmem:[%s941 + $0x24] sm:$0xe]
        %v994 = vld [vmem:[%s941 + $0x30] sm:$0xe]
        %v995 = vld [vmem:[%s941 + $0x3c] sm:$0xe]
        %v996 = vld [vmem:[%s941 + $0x48] sm:$0xe]
        %v997 = vld [vmem:[%s941 + $0x54] sm:$0xe]
        %v998 = vld [vmem:[%s941 + $0x60] sm:$0xe]
        %v999 = vld [vmem:[%s941 + $0x6c] sm:$0xe]
        %v1000 = vld [vmem:[%s941 + $0x78] sm:$0xe]
        %v1001 = vld [vmem:[%s941 + $0x84] sm:$0xe]
        %v1002 = vld [vmem:[%s941 + $0x90] sm:$0xe]
        %v1003 = vld [vmem:[%s941 + $0x9c] sm:$0xe]
        %v1004 = vld [vmem:[%s941 + $0xa8] sm:$0xe]
        %v1005 = vld [vmem:[%s941 + $0xb4] sm:$0xe]
        %v1038 = vunpack.c.l.b16 %v812
        %v1039 = vunpack.c.l.b16 %v813
        %v1040 = vunpack.c.l.b16 %v814
        %v1041 = vunpack.c.l.b16 %v815
        %v1042 = vunpack.c.l.b16 %v816
        %v1043 = vunpack.c.l.b16 %v817
        %v1044 = vunpack.c.l.b16 %v818
        %v1045 = vunpack.c.l.b16 %v819
        %v1046 = vunpack.c.l.b16 %v820
        %v1047 = vunpack.c.l.b16 %v821
        %v1048 = vunpack.c.l.b16 %v822
        %v1049 = vunpack.c.l.b16 %v823
        %v1050 = vunpack.c.l.b16 %v824
        %v1051 = vunpack.c.l.b16 %v825
        %v1052 = vunpack.c.l.b16 %v826
        %v1053 = vunpack.c.l.b16 %v827
        %v1054 = vunpack.c.l.b16 %v828
        %v1055 = vunpack.c.l.b16 %v829
        %v1056 = vunpack.c.l.b16 %v830
        %v1057 = vunpack.c.l.b16 %v831
        %v1058 = vunpack.c.l.b16 %v832
        %v1059 = vunpack.c.l.b16 %v833
        %v1060 = vunpack.c.l.b16 %v834
        %v1061 = vunpack.c.l.b16 %v835
        %v1062 = vunpack.c.l.b16 %v836
        %v1063 = vunpack.c.l.b16 %v837
        %v1064 = vunpack.c.l.b16 %v838
        %v1065 = vunpack.c.l.b16 %v839
        %v1066 = vunpack.c.l.b16 %v840
        %v1067 = vunpack.c.l.b16 %v841
        %v1068 = vunpack.c.l.b16 %v842
        %v1069 = vunpack.c.l.b16 %v843
        %v1070 = vpack.c.b16 %v1039, %v1038
        %v1071 = vpack.c.b16 %v1041, %v1040
        %v1072 = vpack.c.b16 %v1043, %v1042
        %v1073 = vpack.c.b16 %v1045, %v1044
        %v1074 = vpack.c.b16 %v1047, %v1046
        %v1075 = vpack.c.b16 %v1049, %v1048
        %v1076 = vpack.c.b16 %v1051, %v1050
        %v1077 = vpack.c.b16 %v1053, %v1052
        %v1078 = vpack.c.b16 %v1055, %v1054
        %v1079 = vpack.c.b16 %v1057, %v1056
        %v1080 = vpack.c.b16 %v1059, %v1058
        %v1081 = vpack.c.b16 %v1061, %v1060
        %v1082 = vpack.c.b16 %v1063, %v1062
        %v1083 = vpack.c.b16 %v1065, %v1064
        %v1084 = vpack.c.b16 %v1067, %v1066
        %v1085 = vpack.c.b16 %v1069, %v1068
        %v1118 = vunpack.c.l.b16 %v844
        %v1119 = vunpack.c.l.b16 %v845
        %v1120 = vunpack.c.l.b16 %v846
        %v1121 = vunpack.c.l.b16 %v847
        %v1122 = vunpack.c.l.b16 %v848
        %v1123 = vunpack.c.l.b16 %v849
        %v1124 = vunpack.c.l.b16 %v850
        %v1125 = vunpack.c.l.b16 %v851
        %v1126 = vunpack.c.l.b16 %v852
        %v1127 = vunpack.c.l.b16 %v853
        %v1128 = vunpack.c.l.b16 %v854
        %v1129 = vunpack.c.l.b16 %v855
        %v1130 = vunpack.c.l.b16 %v856
        %v1131 = vunpack.c.l.b16 %v857
        %v1132 = vunpack.c.l.b16 %v858
        %v1133 = vunpack.c.l.b16 %v859
        %v1134 = vpack.c.b16 %v1118, %v1118
        %v1135 = vpack.c.b16 %v1119, %v1119
        %v1136 = vpack.c.b16 %v1120, %v1120
        %v1137 = vpack.c.b16 %v1121, %v1121
        %v1138 = vpack.c.b16 %v1122, %v1122
        %v1139 = vpack.c.b16 %v1123, %v1123
        %v1140 = vpack.c.b16 %v1124, %v1124
        %v1141 = vpack.c.b16 %v1125, %v1125
        %v1142 = vpack.c.b16 %v1126, %v1126
        %v1143 = vpack.c.b16 %v1127, %v1127
        %v1144 = vpack.c.b16 %v1128, %v1128
        %v1145 = vpack.c.b16 %v1129, %v1129
        %v1146 = vpack.c.b16 %v1130, %v1130
        %v1147 = vpack.c.b16 %v1131, %v1131
        %v1148 = vpack.c.b16 %v1132, %v1132
        %v1149 = vpack.c.b16 %v1133, %v1133
        %vm1150 = vsmask.f32 7424
        %v1152 = vshrl.u32 %v1070, 16
        %v1154 = vshll.u32 %v1070, 16
        %v1156 = vrot.slane %v1154, 1
        %v1157 = vor.u32 %v1152, %v1156
        %v1159 = vshll.u32 %v1134, 16
        %v1161 = vrot.slane %v1159, 1
        %v1162 = vsel %vm1150, %v1157, %v1161
        %v1164 = vshrl.u32 %v1071, 16
        %v1166 = vshll.u32 %v1071, 16
        %v1168 = vrot.slane %v1166, 1
        %v1169 = vor.u32 %v1164, %v1168
        %v1171 = vshll.u32 %v1135, 16
        %v1173 = vrot.slane %v1171, 1
        %v1174 = vsel %vm1150, %v1169, %v1173
        %v1176 = vshrl.u32 %v1072, 16
        %v1178 = vshll.u32 %v1072, 16
        %v1180 = vrot.slane %v1178, 1
        %v1181 = vor.u32 %v1176, %v1180
        %v1183 = vshll.u32 %v1136, 16
        %v1185 = vrot.slane %v1183, 1
        %v1186 = vsel %vm1150, %v1181, %v1185
        %v1188 = vshrl.u32 %v1073, 16
        %v1190 = vshll.u32 %v1073, 16
        %v1192 = vrot.slane %v1190, 1
        %v1193 = vor.u32 %v1188, %v1192
        %v1195 = vshll.u32 %v1137, 16
        %v1197 = vrot.slane %v1195, 1
        %v1198 = vsel %vm1150, %v1193, %v1197
        %v1200 = vshrl.u32 %v1074, 16
        %v1202 = vshll.u32 %v1074, 16
        %v1204 = vrot.slane %v1202, 1
        %v1205 = vor.u32 %v1200, %v1204
        %v1207 = vshll.u32 %v1138, 16
        %v1209 = vrot.slane %v1207, 1
        %v1210 = vsel %vm1150, %v1205, %v1209
        %v1212 = vshrl.u32 %v1075, 16
        %v1214 = vshll.u32 %v1075, 16
        %v1216 = vrot.slane %v1214, 1
        %v1217 = vor.u32 %v1212, %v1216
        %v1219 = vshll.u32 %v1139, 16
        %v1221 = vrot.slane %v1219, 1
        %v1222 = vsel %vm1150, %v1217, %v1221
        %v1224 = vshrl.u32 %v1076, 16
        %v1226 = vshll.u32 %v1076, 16
        %v1228 = vrot.slane %v1226, 1
        %v1229 = vor.u32 %v1224, %v1228
        %v1231 = vshll.u32 %v1140, 16
        %v1233 = vrot.slane %v1231, 1
        %v1234 = vsel %vm1150, %v1229, %v1233
        %v1236 = vshrl.u32 %v1077, 16
        %v1238 = vshll.u32 %v1077, 16
        %v1240 = vrot.slane %v1238, 1
        %v1241 = vor.u32 %v1236, %v1240
        %v1243 = vshll.u32 %v1141, 16
        %v1245 = vrot.slane %v1243, 1
        %v1246 = vsel %vm1150, %v1241, %v1245
        %v1248 = vshrl.u32 %v1078, 16
        %v1250 = vshll.u32 %v1078, 16
        %v1252 = vrot.slane %v1250, 1
        %v1253 = vor.u32 %v1248, %v1252
        %v1255 = vshll.u32 %v1142, 16
        %v1257 = vrot.slane %v1255, 1
        %v1258 = vsel %vm1150, %v1253, %v1257
        %v1260 = vshrl.u32 %v1079, 16
        %v1262 = vshll.u32 %v1079, 16
        %v1264 = vrot.slane %v1262, 1
        %v1265 = vor.u32 %v1260, %v1264
        %v1267 = vshll.u32 %v1143, 16
        %v1269 = vrot.slane %v1267, 1
        %v1270 = vsel %vm1150, %v1265, %v1269
        %v1272 = vshrl.u32 %v1080, 16
        %v1274 = vshll.u32 %v1080, 16
        %v1276 = vrot.slane %v1274, 1
        %v1277 = vor.u32 %v1272, %v1276
        %v1279 = vshll.u32 %v1144, 16
        %v1281 = vrot.slane %v1279, 1
        %v1282 = vsel %vm1150, %v1277, %v1281
        %v1284 = vshrl.u32 %v1081, 16
        %v1286 = vshll.u32 %v1081, 16
        %v1288 = vrot.slane %v1286, 1
        %v1289 = vor.u32 %v1284, %v1288
        %v1291 = vshll.u32 %v1145, 16
        %v1293 = vrot.slane %v1291, 1
        %v1294 = vsel %vm1150, %v1289, %v1293
        %v1296 = vshrl.u32 %v1082, 16
        %v1298 = vshll.u32 %v1082, 16
        %v1300 = vrot.slane %v1298, 1
        %v1301 = vor.u32 %v1296, %v1300
        %v1303 = vshll.u32 %v1146, 16
        %v1305 = vrot.slane %v1303, 1
        %v1306 = vsel %vm1150, %v1301, %v1305
        %v1308 = vshrl.u32 %v1083, 16
        %v1310 = vshll.u32 %v1083, 16
        %v1312 = vrot.slane %v1310, 1
        %v1313 = vor.u32 %v1308, %v1312
        %v1315 = vshll.u32 %v1147, 16
        %v1317 = vrot.slane %v1315, 1
        %v1318 = vsel %vm1150, %v1313, %v1317
        %v1320 = vshrl.u32 %v1084, 16
        %v1322 = vshll.u32 %v1084, 16
        %v1324 = vrot.slane %v1322, 1
        %v1325 = vor.u32 %v1320, %v1324
        %v1327 = vshll.u32 %v1148, 16
        %v1329 = vrot.slane %v1327, 1
        %v1330 = vsel %vm1150, %v1325, %v1329
        %v1332 = vshrl.u32 %v1085, 16
        %v1334 = vshll.u32 %v1085, 16
        %v1336 = vrot.slane %v1334, 1
        %v1337 = vor.u32 %v1332, %v1336
        %v1339 = vshll.u32 %v1149, 16
        %v1341 = vrot.slane %v1339, 1
        %v1342 = vsel %vm1150, %v1337, %v1341
        %v1375 = vunpack.c.l.b16 %v860
        %v1376 = vunpack.c.l.b16 %v861
        %v1377 = vunpack.c.l.b16 %v862
        %v1378 = vunpack.c.l.b16 %v863
        %v1379 = vunpack.c.l.b16 %v864
        %v1380 = vunpack.c.l.b16 %v865
        %v1381 = vunpack.c.l.b16 %v866
        %v1382 = vunpack.c.l.b16 %v867
        %v1383 = vunpack.c.l.b16 %v868
        %v1384 = vunpack.c.l.b16 %v869
        %v1385 = vunpack.c.l.b16 %v870
        %v1386 = vunpack.c.l.b16 %v871
        %v1387 = vunpack.c.l.b16 %v872
        %v1388 = vunpack.c.l.b16 %v873
        %v1389 = vunpack.c.l.b16 %v874
        %v1390 = vunpack.c.l.b16 %v875
        %v1391 = vpack.c.b16 %v1039, %v1375
        %v1392 = vpack.c.b16 %v1041, %v1376
        %v1393 = vpack.c.b16 %v1043, %v1377
        %v1394 = vpack.c.b16 %v1045, %v1378
        %v1395 = vpack.c.b16 %v1047, %v1379
        %v1396 = vpack.c.b16 %v1049, %v1380
        %v1397 = vpack.c.b16 %v1051, %v1381
        %v1398 = vpack.c.b16 %v1053, %v1382
        %v1399 = vpack.c.b16 %v1055, %v1383
        %v1400 = vpack.c.b16 %v1057, %v1384
        %v1401 = vpack.c.b16 %v1059, %v1385
        %v1402 = vpack.c.b16 %v1061, %v1386
        %v1403 = vpack.c.b16 %v1063, %v1387
        %v1404 = vpack.c.b16 %v1065, %v1388
        %v1405 = vpack.c.b16 %v1067, %v1389
        %v1406 = vpack.c.b16 %v1069, %v1390
        %vm1407 = vcmask 1046528
        %v1408 = vrot.slane %v1391, 1
        %v1409 = vrot.slane %v1134, 1
        %v1410 = vsel %vm1407, %v1408, %v1409
        %v1411 = vrot.slane %v1392, 1
        %v1412 = vrot.slane %v1135, 1
        %v1413 = vsel %vm1407, %v1411, %v1412
        %v1414 = vrot.slane %v1393, 1
        %v1415 = vrot.slane %v1136, 1
        %v1416 = vsel %vm1407, %v1414, %v1415
        %v1417 = vrot.slane %v1394, 1
        %v1418 = vrot.slane %v1137, 1
        %v1419 = vsel %vm1407, %v1417, %v1418
        %v1420 = vrot.slane %v1395, 1
        %v1421 = vrot.slane %v1138, 1
        %v1422 = vsel %vm1407, %v1420, %v1421
        %v1423 = vrot.slane %v1396, 1
        %v1424 = vrot.slane %v1139, 1
        %v1425 = vsel %vm1407, %v1423, %v1424
        %v1426 = vrot.slane %v1397, 1
        %v1427 = vrot.slane %v1140, 1
        %v1428 = vsel %vm1407, %v1426, %v1427
        %v1429 = vrot.slane %v1398, 1
        %v1430 = vrot.slane %v1141, 1
        %v1431 = vsel %vm1407, %v1429, %v1430
        %v1432 = vrot.slane %v1399, 1
        %v1433 = vrot.slane %v1142, 1
        %v1434 = vsel %vm1407, %v1432, %v1433
        %v1435 = vrot.slane %v1400, 1
        %v1436 = vrot.slane %v1143, 1
        %v1437 = vsel %vm1407, %v1435, %v1436
        %v1438 = vrot.slane %v1401, 1
        %v1439 = vrot.slane %v1144, 1
        %v1440 = vsel %vm1407, %v1438, %v1439
        %v1441 = vrot.slane %v1402, 1
        %v1442 = vrot.slane %v1145, 1
        %v1443 = vsel %vm1407, %v1441, %v1442
        %v1444 = vrot.slane %v1403, 1
        %v1445 = vrot.slane %v1146, 1
        %v1446 = vsel %vm1407, %v1444, %v1445
        %v1447 = vrot.slane %v1404, 1
        %v1448 = vrot.slane %v1147, 1
        %v1449 = vsel %vm1407, %v1447, %v1448
        %v1450 = vrot.slane %v1405, 1
        %v1451 = vrot.slane %v1148, 1
        %v1452 = vsel %vm1407, %v1450, %v1451
        %v1453 = vrot.slane %v1406, 1
        %v1454 = vrot.slane %v1149, 1
        %v1455 = vsel %vm1407, %v1453, %v1454
        %v1504 = vunpack.c.l.b16 %v877
        %v1505 = vunpack.c.l.b16 %v878
        %v1506 = vunpack.c.l.b16 %v879
        %v1507 = vunpack.c.l.b16 %v880
        %v1508 = vunpack.c.l.b16 %v881
        %v1509 = vunpack.c.l.b16 %v882
        %v1510 = vunpack.c.l.b16 %v883
        %v1511 = vunpack.c.l.b16 %v884
        %v1512 = vunpack.c.l.b16 %v885
        %v1513 = vunpack.c.l.b16 %v886
        %v1514 = vunpack.c.l.b16 %v887
        %v1515 = vunpack.c.l.b16 %v888
        %v1516 = vunpack.c.l.b16 %v889
        %v1517 = vunpack.c.l.b16 %v890
        %v1518 = vunpack.c.l.b16 %v891
        %v1519 = vunpack.c.l.b16 %v892
        %v1520 = vunpack.c.l.b16 %v893
        %v1521 = vunpack.c.l.b16 %v894
        %v1522 = vunpack.c.l.b16 %v895
        %v1523 = vunpack.c.l.b16 %v896
        %v1524 = vunpack.c.l.b16 %v897
        %v1525 = vunpack.c.l.b16 %v898
        %v1526 = vunpack.c.l.b16 %v899
        %v1527 = vunpack.c.l.b16 %v900
        %v1528 = vunpack.c.l.b16 %v901
        %v1529 = vunpack.c.l.b16 %v902
        %v1530 = vunpack.c.l.b16 %v903
        %v1531 = vunpack.c.l.b16 %v904
        %v1532 = vunpack.c.l.b16 %v905
        %v1533 = vunpack.c.l.b16 %v906
        %v1534 = vunpack.c.l.b16 %v907
        %v1535 = vunpack.c.l.b16 %v908
        %v1536 = vpack.c.b16 %v1505, %v1504
        %v1537 = vpack.c.b16 %v1507, %v1506
        %v1538 = vpack.c.b16 %v1509, %v1508
        %v1539 = vpack.c.b16 %v1511, %v1510
        %v1540 = vpack.c.b16 %v1513, %v1512
        %v1541 = vpack.c.b16 %v1515, %v1514
        %v1542 = vpack.c.b16 %v1517, %v1516
        %v1543 = vpack.c.b16 %v1519, %v1518
        %v1544 = vpack.c.b16 %v1521, %v1520
        %v1545 = vpack.c.b16 %v1523, %v1522
        %v1546 = vpack.c.b16 %v1525, %v1524
        %v1547 = vpack.c.b16 %v1527, %v1526
        %v1548 = vpack.c.b16 %v1529, %v1528
        %v1549 = vpack.c.b16 %v1531, %v1530
        %v1550 = vpack.c.b16 %v1533, %v1532
        %v1551 = vpack.c.b16 %v1535, %v1534
        %v1584 = vunpack.c.l.b16 %v909
        %v1585 = vunpack.c.l.b16 %v910
        %v1586 = vunpack.c.l.b16 %v911
        %v1587 = vunpack.c.l.b16 %v912
        %v1588 = vunpack.c.l.b16 %v913
        %v1589 = vunpack.c.l.b16 %v914
        %v1590 = vunpack.c.l.b16 %v915
        %v1591 = vunpack.c.l.b16 %v916
        %v1592 = vunpack.c.l.b16 %v917
        %v1593 = vunpack.c.l.b16 %v918
        %v1594 = vunpack.c.l.b16 %v919
        %v1595 = vunpack.c.l.b16 %v920
        %v1596 = vunpack.c.l.b16 %v921
        %v1597 = vunpack.c.l.b16 %v922
        %v1598 = vunpack.c.l.b16 %v923
        %v1599 = vunpack.c.l.b16 %v924
        %v1600 = vpack.c.b16 %v1584, %v1584
        %v1601 = vpack.c.b16 %v1585, %v1585
        %v1602 = vpack.c.b16 %v1586, %v1586
        %v1603 = vpack.c.b16 %v1587, %v1587
        %v1604 = vpack.c.b16 %v1588, %v1588
        %v1605 = vpack.c.b16 %v1589, %v1589
        %v1606 = vpack.c.b16 %v1590, %v1590
        %v1607 = vpack.c.b16 %v1591, %v1591
        %v1608 = vpack.c.b16 %v1592, %v1592
        %v1609 = vpack.c.b16 %v1593, %v1593
        %v1610 = vpack.c.b16 %v1594, %v1594
        %v1611 = vpack.c.b16 %v1595, %v1595
        %v1612 = vpack.c.b16 %v1596, %v1596
        %v1613 = vpack.c.b16 %v1597, %v1597
        %v1614 = vpack.c.b16 %v1598, %v1598
        %v1615 = vpack.c.b16 %v1599, %v1599
        %v1617 = vshrl.u32 %v1536, 16
        %v1619 = vshll.u32 %v1536, 16
        %v1621 = vrot.slane %v1619, 1
        %v1622 = vor.u32 %v1617, %v1621
        %v1624 = vshll.u32 %v1600, 16
        %v1626 = vrot.slane %v1624, 1
        %v1627 = vsel %vm1150, %v1622, %v1626
        %v1629 = vshrl.u32 %v1537, 16
        %v1631 = vshll.u32 %v1537, 16
        %v1633 = vrot.slane %v1631, 1
        %v1634 = vor.u32 %v1629, %v1633
        %v1636 = vshll.u32 %v1601, 16
        %v1638 = vrot.slane %v1636, 1
        %v1639 = vsel %vm1150, %v1634, %v1638
        %v1641 = vshrl.u32 %v1538, 16
        %v1643 = vshll.u32 %v1538, 16
        %v1645 = vrot.slane %v1643, 1
        %v1646 = vor.u32 %v1641, %v1645
        %v1648 = vshll.u32 %v1602, 16
        %v1650 = vrot.slane %v1648, 1
        %v1651 = vsel %vm1150, %v1646, %v1650
        %v1653 = vshrl.u32 %v1539, 16
        %v1655 = vshll.u32 %v1539, 16
        %v1657 = vrot.slane %v1655, 1
        %v1658 = vor.u32 %v1653, %v1657
        %v1660 = vshll.u32 %v1603, 16
        %v1662 = vrot.slane %v1660, 1
        %v1663 = vsel %vm1150, %v1658, %v1662
        %v1665 = vshrl.u32 %v1540, 16
        %v1667 = vshll.u32 %v1540, 16
        %v1669 = vrot.slane %v1667, 1
        %v1670 = vor.u32 %v1665, %v1669
        %v1672 = vshll.u32 %v1604, 16
        %v1674 = vrot.slane %v1672, 1
        %v1675 = vsel %vm1150, %v1670, %v1674
        %v1677 = vshrl.u32 %v1541, 16
        %v1679 = vshll.u32 %v1541, 16
        %v1681 = vrot.slane %v1679, 1
        %v1682 = vor.u32 %v1677, %v1681
        %v1684 = vshll.u32 %v1605, 16
        %v1686 = vrot.slane %v1684, 1
        %v1687 = vsel %vm1150, %v1682, %v1686
        %v1689 = vshrl.u32 %v1542, 16
        %v1691 = vshll.u32 %v1542, 16
        %v1693 = vrot.slane %v1691, 1
        %v1694 = vor.u32 %v1689, %v1693
        %v1696 = vshll.u32 %v1606, 16
        %v1698 = vrot.slane %v1696, 1
        %v1699 = vsel %vm1150, %v1694, %v1698
        %v1701 = vshrl.u32 %v1543, 16
        %v1703 = vshll.u32 %v1543, 16
        %v1705 = vrot.slane %v1703, 1
        %v1706 = vor.u32 %v1701, %v1705
        %v1708 = vshll.u32 %v1607, 16
        %v1710 = vrot.slane %v1708, 1
        %v1711 = vsel %vm1150, %v1706, %v1710
        %v1713 = vshrl.u32 %v1544, 16
        %v1715 = vshll.u32 %v1544, 16
        %v1717 = vrot.slane %v1715, 1
        %v1718 = vor.u32 %v1713, %v1717
        %v1720 = vshll.u32 %v1608, 16
        %v1722 = vrot.slane %v1720, 1
        %v1723 = vsel %vm1150, %v1718, %v1722
        %v1725 = vshrl.u32 %v1545, 16
        %v1727 = vshll.u32 %v1545, 16
        %v1729 = vrot.slane %v1727, 1
        %v1730 = vor.u32 %v1725, %v1729
        %v1732 = vshll.u32 %v1609, 16
        %v1734 = vrot.slane %v1732, 1
        %v1735 = vsel %vm1150, %v1730, %v1734
        %v1737 = vshrl.u32 %v1546, 16
        %v1739 = vshll.u32 %v1546, 16
        %v1741 = vrot.slane %v1739, 1
        %v1742 = vor.u32 %v1737, %v1741
        %v1744 = vshll.u32 %v1610, 16
        %v1746 = vrot.slane %v1744, 1
        %v1747 = vsel %vm1150, %v1742, %v1746
        %v1749 = vshrl.u32 %v1547, 16
        %v1751 = vshll.u32 %v1547, 16
        %v1753 = vrot.slane %v1751, 1
        %v1754 = vor.u32 %v1749, %v1753
        %v1756 = vshll.u32 %v1611, 16
        %v1758 = vrot.slane %v1756, 1
        %v1759 = vsel %vm1150, %v1754, %v1758
        %v1761 = vshrl.u32 %v1548, 16
        %v1763 = vshll.u32 %v1548, 16
        %v1765 = vrot.slane %v1763, 1
        %v1766 = vor.u32 %v1761, %v1765
        %v1768 = vshll.u32 %v1612, 16
        %v1770 = vrot.slane %v1768, 1
        %v1771 = vsel %vm1150, %v1766, %v1770
        %v1773 = vshrl.u32 %v1549, 16
        %v1775 = vshll.u32 %v1549, 16
        %v1777 = vrot.slane %v1775, 1
        %v1778 = vor.u32 %v1773, %v1777
        %v1780 = vshll.u32 %v1613, 16
        %v1782 = vrot.slane %v1780, 1
        %v1783 = vsel %vm1150, %v1778, %v1782
        %v1785 = vshrl.u32 %v1550, 16
        %v1787 = vshll.u32 %v1550, 16
        %v1789 = vrot.slane %v1787, 1
        %v1790 = vor.u32 %v1785, %v1789
        %v1792 = vshll.u32 %v1614, 16
        %v1794 = vrot.slane %v1792, 1
        %v1795 = vsel %vm1150, %v1790, %v1794
        %v1797 = vshrl.u32 %v1551, 16
        %v1799 = vshll.u32 %v1551, 16
        %v1801 = vrot.slane %v1799, 1
        %v1802 = vor.u32 %v1797, %v1801
        %v1804 = vshll.u32 %v1615, 16
        %v1806 = vrot.slane %v1804, 1
        %v1807 = vsel %vm1150, %v1802, %v1806
        %v1840 = vunpack.c.l.b16 %v925
        %v1841 = vunpack.c.l.b16 %v926
        %v1842 = vunpack.c.l.b16 %v927
        %v1843 = vunpack.c.l.b16 %v928
        %v1844 = vunpack.c.l.b16 %v929
        %v1845 = vunpack.c.l.b16 %v930
        %v1846 = vunpack.c.l.b16 %v931
        %v1847 = vunpack.c.l.b16 %v932
        %v1848 = vunpack.c.l.b16 %v933
        %v1849 = vunpack.c.l.b16 %v934
        %v1850 = vunpack.c.l.b16 %v935
        %v1851 = vunpack.c.l.b16 %v936
        %v1852 = vunpack.c.l.b16 %v937
        %v1853 = vunpack.c.l.b16 %v938
        %v1854 = vunpack.c.l.b16 %v939
        %v1855 = vunpack.c.l.b16 %v940
        %v1856 = vpack.c.b16 %v1505, %v1840
        %v1857 = vpack.c.b16 %v1507, %v1841
        %v1858 = vpack.c.b16 %v1509, %v1842
        %v1859 = vpack.c.b16 %v1511, %v1843
        %v1860 = vpack.c.b16 %v1513, %v1844
        %v1861 = vpack.c.b16 %v1515, %v1845
        %v1862 = vpack.c.b16 %v1517, %v1846
        %v1863 = vpack.c.b16 %v1519, %v1847
        %v1864 = vpack.c.b16 %v1521, %v1848
        %v1865 = vpack.c.b16 %v1523, %v1849
        %v1866 = vpack.c.b16 %v1525, %v1850
        %v1867 = vpack.c.b16 %v1527, %v1851
        %v1868 = vpack.c.b16 %v1529, %v1852
        %v1869 = vpack.c.b16 %v1531, %v1853
        %v1870 = vpack.c.b16 %v1533, %v1854
        %v1871 = vpack.c.b16 %v1535, %v1855
        %v1872 = vrot.slane %v1856, 1
        %v1873 = vrot.slane %v1600, 1
        %v1874 = vsel %vm1407, %v1872, %v1873
        %v1875 = vrot.slane %v1857, 1
        %v1876 = vrot.slane %v1601, 1
        %v1877 = vsel %vm1407, %v1875, %v1876
        %v1878 = vrot.slane %v1858, 1
        %v1879 = vrot.slane %v1602, 1
        %v1880 = vsel %vm1407, %v1878, %v1879
        %v1881 = vrot.slane %v1859, 1
        %v1882 = vrot.slane %v1603, 1
        %v1883 = vsel %vm1407, %v1881, %v1882
        %v1884 = vrot.slane %v1860, 1
        %v1885 = vrot.slane %v1604, 1
        %v1886 = vsel %vm1407, %v1884, %v1885
        %v1887 = vrot.slane %v1861, 1
        %v1888 = vrot.slane %v1605, 1
        %v1889 = vsel %vm1407, %v1887, %v1888
        %v1890 = vrot.slane %v1862, 1
        %v1891 = vrot.slane %v1606, 1
        %v1892 = vsel %vm1407, %v1890, %v1891
        %v1893 = vrot.slane %v1863, 1
        %v1894 = vrot.slane %v1607, 1
        %v1895 = vsel %vm1407, %v1893, %v1894
        %v1896 = vrot.slane %v1864, 1
        %v1897 = vrot.slane %v1608, 1
        %v1898 = vsel %vm1407, %v1896, %v1897
        %v1899 = vrot.slane %v1865, 1
        %v1900 = vrot.slane %v1609, 1
        %v1901 = vsel %vm1407, %v1899, %v1900
        %v1902 = vrot.slane %v1866, 1
        %v1903 = vrot.slane %v1610, 1
        %v1904 = vsel %vm1407, %v1902, %v1903
        %v1905 = vrot.slane %v1867, 1
        %v1906 = vrot.slane %v1611, 1
        %v1907 = vsel %vm1407, %v1905, %v1906
        %v1908 = vrot.slane %v1868, 1
        %v1909 = vrot.slane %v1612, 1
        %v1910 = vsel %vm1407, %v1908, %v1909
        %v1911 = vrot.slane %v1869, 1
        %v1912 = vrot.slane %v1613, 1
        %v1913 = vsel %vm1407, %v1911, %v1912
        %v1914 = vrot.slane %v1870, 1
        %v1915 = vrot.slane %v1614, 1
        %v1916 = vsel %vm1407, %v1914, %v1915
        %v1917 = vrot.slane %v1871, 1
        %v1918 = vrot.slane %v1615, 1
        %v1919 = vsel %vm1407, %v1917, %v1918
        %v1968 = vunpack.c.l.b16 %v942
        %v1969 = vunpack.c.l.b16 %v943
        %v1970 = vunpack.c.l.b16 %v944
        %v1971 = vunpack.c.l.b16 %v945
        %v1972 = vunpack.c.l.b16 %v946
        %v1973 = vunpack.c.l.b16 %v947
        %v1974 = vunpack.c.l.b16 %v948
        %v1975 = vunpack.c.l.b16 %v949
        %v1976 = vunpack.c.l.b16 %v950
        %v1977 = vunpack.c.l.b16 %v951
        %v1978 = vunpack.c.l.b16 %v952
        %v1979 = vunpack.c.l.b16 %v953
        %v1980 = vunpack.c.l.b16 %v954
        %v1981 = vunpack.c.l.b16 %v955
        %v1982 = vunpack.c.l.b16 %v956
        %v1983 = vunpack.c.l.b16 %v957
        %v1984 = vunpack.c.l.b16 %v958
        %v1985 = vunpack.c.l.b16 %v959
        %v1986 = vunpack.c.l.b16 %v960
        %v1987 = vunpack.c.l.b16 %v961
        %v1988 = vunpack.c.l.b16 %v962
        %v1989 = vunpack.c.l.b16 %v963
        %v1990 = vunpack.c.l.b16 %v964
        %v1991 = vunpack.c.l.b16 %v965
        %v1992 = vunpack.c.l.b16 %v966
        %v1993 = vunpack.c.l.b16 %v967
        %v1994 = vunpack.c.l.b16 %v968
        %v1995 = vunpack.c.l.b16 %v969
        %v1996 = vunpack.c.l.b16 %v970
        %v1997 = vunpack.c.l.b16 %v971
        %v1998 = vunpack.c.l.b16 %v972
        %v1999 = vunpack.c.l.b16 %v973
        %v2000 = vpack.c.b16 %v1969, %v1968
        %v2001 = vpack.c.b16 %v1971, %v1970
        %v2002 = vpack.c.b16 %v1973, %v1972
        %v2003 = vpack.c.b16 %v1975, %v1974
        %v2004 = vpack.c.b16 %v1977, %v1976
        %v2005 = vpack.c.b16 %v1979, %v1978
        %v2006 = vpack.c.b16 %v1981, %v1980
        %v2007 = vpack.c.b16 %v1983, %v1982
        %v2008 = vpack.c.b16 %v1985, %v1984
        %v2009 = vpack.c.b16 %v1987, %v1986
        %v2010 = vpack.c.b16 %v1989, %v1988
        %v2011 = vpack.c.b16 %v1991, %v1990
        %v2012 = vpack.c.b16 %v1993, %v1992
        %v2013 = vpack.c.b16 %v1995, %v1994
        %v2014 = vpack.c.b16 %v1997, %v1996
        %v2015 = vpack.c.b16 %v1999, %v1998
        %v2048 = vunpack.c.l.b16 %v974
        %v2049 = vunpack.c.l.b16 %v975
        %v2050 = vunpack.c.l.b16 %v976
        %v2051 = vunpack.c.l.b16 %v977
        %v2052 = vunpack.c.l.b16 %v978
        %v2053 = vunpack.c.l.b16 %v979
        %v2054 = vunpack.c.l.b16 %v980
        %v2055 = vunpack.c.l.b16 %v981
        %v2056 = vunpack.c.l.b16 %v982
        %v2057 = vunpack.c.l.b16 %v983
        %v2058 = vunpack.c.l.b16 %v984
        %v2059 = vunpack.c.l.b16 %v985
        %v2060 = vunpack.c.l.b16 %v986
        %v2061 = vunpack.c.l.b16 %v987
        %v2062 = vunpack.c.l.b16 %v988
        %v2063 = vunpack.c.l.b16 %v989
        %v2064 = vpack.c.b16 %v2048, %v2048
        %v2065 = vpack.c.b16 %v2049, %v2049
        %v2066 = vpack.c.b16 %v2050, %v2050
        %v2067 = vpack.c.b16 %v2051, %v2051
        %v2068 = vpack.c.b16 %v2052, %v2052
        %v2069 = vpack.c.b16 %v2053, %v2053
        %v2070 = vpack.c.b16 %v2054, %v2054
        %v2071 = vpack.c.b16 %v2055, %v2055
        %v2072 = vpack.c.b16 %v2056, %v2056
        %v2073 = vpack.c.b16 %v2057, %v2057
        %v2074 = vpack.c.b16 %v2058, %v2058
        %v2075 = vpack.c.b16 %v2059, %v2059
        %v2076 = vpack.c.b16 %v2060, %v2060
        %v2077 = vpack.c.b16 %v2061, %v2061
        %v2078 = vpack.c.b16 %v2062, %v2062
        %v2079 = vpack.c.b16 %v2063, %v2063
        %v2081 = vshrl.u32 %v2000, 16
        %v2083 = vshll.u32 %v2000, 16
        %v2085 = vrot.slane %v2083, 1
        %v2086 = vor.u32 %v2081, %v2085
        %v2088 = vshll.u32 %v2064, 16
        %v2090 = vrot.slane %v2088, 1
        %v2091 = vsel %vm1150, %v2086, %v2090
        %v2093 = vshrl.u32 %v2001, 16
        %v2095 = vshll.u32 %v2001, 16
        %v2097 = vrot.slane %v2095, 1
        %v2098 = vor.u32 %v2093, %v2097
        %v2100 = vshll.u32 %v2065, 16
        %v2102 = vrot.slane %v2100, 1
        %v2103 = vsel %vm1150, %v2098, %v2102
        %v2105 = vshrl.u32 %v2002, 16
        %v2107 = vshll.u32 %v2002, 16
        %v2109 = vrot.slane %v2107, 1
        %v2110 = vor.u32 %v2105, %v2109
        %v2112 = vshll.u32 %v2066, 16
        %v2114 = vrot.slane %v2112, 1
        %v2115 = vsel %vm1150, %v2110, %v2114
        %v2117 = vshrl.u32 %v2003, 16
        %v2119 = vshll.u32 %v2003, 16
        %v2121 = vrot.slane %v2119, 1
        %v2122 = vor.u32 %v2117, %v2121
        %v2124 = vshll.u32 %v2067, 16
        %v2126 = vrot.slane %v2124, 1
        %v2127 = vsel %vm1150, %v2122, %v2126
        %v2129 = vshrl.u32 %v2004, 16
        %v2131 = vshll.u32 %v2004, 16
        %v2133 = vrot.slane %v2131, 1
        %v2134 = vor.u32 %v2129, %v2133
        %v2136 = vshll.u32 %v2068, 16
        %v2138 = vrot.slane %v2136, 1
        %v2139 = vsel %vm1150, %v2134, %v2138
        %v2141 = vshrl.u32 %v2005, 16
        %v2143 = vshll.u32 %v2005, 16
        %v2145 = vrot.slane %v2143, 1
        %v2146 = vor.u32 %v2141, %v2145
        %v2148 = vshll.u32 %v2069, 16
        %v2150 = vrot.slane %v2148, 1
        %v2151 = vsel %vm1150, %v2146, %v2150
        %v2153 = vshrl.u32 %v2006, 16
        %v2155 = vshll.u32 %v2006, 16
        %v2157 = vrot.slane %v2155, 1
        %v2158 = vor.u32 %v2153, %v2157
        %v2160 = vshll.u32 %v2070, 16
        %v2162 = vrot.slane %v2160, 1
        %v2163 = vsel %vm1150, %v2158, %v2162
        %v2165 = vshrl.u32 %v2007, 16
        %v2167 = vshll.u32 %v2007, 16
        %v2169 = vrot.slane %v2167, 1
        %v2170 = vor.u32 %v2165, %v2169
        %v2172 = vshll.u32 %v2071, 16
        %v2174 = vrot.slane %v2172, 1
        %v2175 = vsel %vm1150, %v2170, %v2174
        %v2177 = vshrl.u32 %v2008, 16
        %v2179 = vshll.u32 %v2008, 16
        %v2181 = vrot.slane %v2179, 1
        %v2182 = vor.u32 %v2177, %v2181
        %v2184 = vshll.u32 %v2072, 16
        %v2186 = vrot.slane %v2184, 1
        %v2187 = vsel %vm1150, %v2182, %v2186
        %v2189 = vshrl.u32 %v2009, 16
        %v2191 = vshll.u32 %v2009, 16
        %v2193 = vrot.slane %v2191, 1
        %v2194 = vor.u32 %v2189, %v2193
        %v2196 = vshll.u32 %v2073, 16
        %v2198 = vrot.slane %v2196, 1
        %v2199 = vsel %vm1150, %v2194, %v2198
        %v2201 = vshrl.u32 %v2010, 16
        %v2203 = vshll.u32 %v2010, 16
        %v2205 = vrot.slane %v2203, 1
        %v2206 = vor.u32 %v2201, %v2205
        %v2208 = vshll.u32 %v2074, 16
        %v2210 = vrot.slane %v2208, 1
        %v2211 = vsel %vm1150, %v2206, %v2210
        %v2213 = vshrl.u32 %v2011, 16
        %v2215 = vshll.u32 %v2011, 16
        %v2217 = vrot.slane %v2215, 1
        %v2218 = vor.u32 %v2213, %v2217
        %v2220 = vshll.u32 %v2075, 16
        %v2222 = vrot.slane %v2220, 1
        %v2223 = vsel %vm1150, %v2218, %v2222
        %v2225 = vshrl.u32 %v2012, 16
        %v2227 = vshll.u32 %v2012, 16
        %v2229 = vrot.slane %v2227, 1
        %v2230 = vor.u32 %v2225, %v2229
        %v2232 = vshll.u32 %v2076, 16
        %v2234 = vrot.slane %v2232, 1
        %v2235 = vsel %vm1150, %v2230, %v2234
        %v2237 = vshrl.u32 %v2013, 16
        %v2239 = vshll.u32 %v2013, 16
        %v2241 = vrot.slane %v2239, 1
        %v2242 = vor.u32 %v2237, %v2241
        %v2244 = vshll.u32 %v2077, 16
        %v2246 = vrot.slane %v2244, 1
        %v2247 = vsel %vm1150, %v2242, %v2246
        %v2249 = vshrl.u32 %v2014, 16
        %v2251 = vshll.u32 %v2014, 16
        %v2253 = vrot.slane %v2251, 1
        %v2254 = vor.u32 %v2249, %v2253
        %v2256 = vshll.u32 %v2078, 16
        %v2258 = vrot.slane %v2256, 1
        %v2259 = vsel %vm1150, %v2254, %v2258
        %v2261 = vshrl.u32 %v2015, 16
        %v2263 = vshll.u32 %v2015, 16
        %v2265 = vrot.slane %v2263, 1
        %v2266 = vor.u32 %v2261, %v2265
        %v2268 = vshll.u32 %v2079, 16
        %v2270 = vrot.slane %v2268, 1
        %v2271 = vsel %vm1150, %v2266, %v2270
        %v2304 = vunpack.c.l.b16 %v990
        %v2305 = vunpack.c.l.b16 %v991
        %v2306 = vunpack.c.l.b16 %v992
        %v2307 = vunpack.c.l.b16 %v993
        %v2308 = vunpack.c.l.b16 %v994
        %v2309 = vunpack.c.l.b16 %v995
        %v2310 = vunpack.c.l.b16 %v996
        %v2311 = vunpack.c.l.b16 %v997
        %v2312 = vunpack.c.l.b16 %v998
        %v2313 = vunpack.c.l.b16 %v999
        %v2314 = vunpack.c.l.b16 %v1000
        %v2315 = vunpack.c.l.b16 %v1001
        %v2316 = vunpack.c.l.b16 %v1002
        %v2317 = vunpack.c.l.b16 %v1003
        %v2318 = vunpack.c.l.b16 %v1004
        %v2319 = vunpack.c.l.b16 %v1005
        %v2320 = vpack.c.b16 %v1969, %v2304
        %v2321 = vpack.c.b16 %v1971, %v2305
        %v2322 = vpack.c.b16 %v1973, %v2306
        %v2323 = vpack.c.b16 %v1975, %v2307
        %v2324 = vpack.c.b16 %v1977, %v2308
        %v2325 = vpack.c.b16 %v1979, %v2309
        %v2326 = vpack.c.b16 %v1981, %v2310
        %v2327 = vpack.c.b16 %v1983, %v2311
        %v2328 = vpack.c.b16 %v1985, %v2312
        %v2329 = vpack.c.b16 %v1987, %v2313
        %v2330 = vpack.c.b16 %v1989, %v2314
        %v2331 = vpack.c.b16 %v1991, %v2315
        %v2332 = vpack.c.b16 %v1993, %v2316
        %v2333 = vpack.c.b16 %v1995, %v2317
        %v2334 = vpack.c.b16 %v1997, %v2318
        %v2335 = vpack.c.b16 %v1999, %v2319
        %v2336 = vrot.slane %v2320, 1
        %v2337 = vrot.slane %v2064, 1
        %v2338 = vsel %vm1407, %v2336, %v2337
        %v2339 = vrot.slane %v2321, 1
        %v2340 = vrot.slane %v2065, 1
        %v2341 = vsel %vm1407, %v2339, %v2340
        %v2342 = vrot.slane %v2322, 1
        %v2343 = vrot.slane %v2066, 1
        %v2344 = vsel %vm1407, %v2342, %v2343
        %v2345 = vrot.slane %v2323, 1
        %v2346 = vrot.slane %v2067, 1
        %v2347 = vsel %vm1407, %v2345, %v2346
        %v2348 = vrot.slane %v2324, 1
        %v2349 = vrot.slane %v2068, 1
        %v2350 = vsel %vm1407, %v2348, %v2349
        %v2351 = vrot.slane %v2325, 1
        %v2352 = vrot.slane %v2069, 1
        %v2353 = vsel %vm1407, %v2351, %v2352
        %v2354 = vrot.slane %v2326, 1
        %v2355 = vrot.slane %v2070, 1
        %v2356 = vsel %vm1407, %v2354, %v2355
        %v2357 = vrot.slane %v2327, 1
        %v2358 = vrot.slane %v2071, 1
        %v2359 = vsel %vm1407, %v2357, %v2358
        %v2360 = vrot.slane %v2328, 1
        %v2361 = vrot.slane %v2072, 1
        %v2362 = vsel %vm1407, %v2360, %v2361
        %v2363 = vrot.slane %v2329, 1
        %v2364 = vrot.slane %v2073, 1
        %v2365 = vsel %vm1407, %v2363, %v2364
        %v2366 = vrot.slane %v2330, 1
        %v2367 = vrot.slane %v2074, 1
        %v2368 = vsel %vm1407, %v2366, %v2367
        %v2369 = vrot.slane %v2331, 1
        %v2370 = vrot.slane %v2075, 1
        %v2371 = vsel %vm1407, %v2369, %v2370
        %v2372 = vrot.slane %v2332, 1
        %v2373 = vrot.slane %v2076, 1
        %v2374 = vsel %vm1407, %v2372, %v2373
        %v2375 = vrot.slane %v2333, 1
        %v2376 = vrot.slane %v2077, 1
        %v2377 = vsel %vm1407, %v2375, %v2376
        %v2378 = vrot.slane %v2334, 1
        %v2379 = vrot.slane %v2078, 1
        %v2380 = vsel %vm1407, %v2378, %v2379
        %v2381 = vrot.slane %v2335, 1
        %v2382 = vrot.slane %v2079, 1
        %v2383 = vsel %vm1407, %v2381, %v2382
        %v2400 = vld [vmem:[#allocation6] sm:$0xf]
        %v2401 = vld [vmem:[#allocation6 + $0x4] sm:$0xf]
        %v2402 = vld [vmem:[#allocation6 + $0x8] sm:$0xf]
        %v2403 = vld [vmem:[#allocation6 + $0xc] sm:$0xf]
        %v2404 = vld [vmem:[#allocation6 + $0x10] sm:$0xf]
        %v2405 = vld [vmem:[#allocation6 + $0x14] sm:$0xf]
        %v2406 = vld [vmem:[#allocation6 + $0x18] sm:$0xf]
        %v2407 = vld [vmem:[#allocation6 + $0x1c] sm:$0xf]
        %v2408 = vld [vmem:[#allocation6 + $0x20] sm:$0xf]
        %v2409 = vld [vmem:[#allocation6 + $0x24] sm:$0xf]
        %v2410 = vld [vmem:[#allocation6 + $0x28] sm:$0xf]
        %v2411 = vld [vmem:[#allocation6 + $0x2c] sm:$0xf]
        %v2412 = vld [vmem:[#allocation6 + $0x30] sm:$0xf]
        %v2413 = vld [vmem:[#allocation6 + $0x34] sm:$0xf]
        %v2414 = vld [vmem:[#allocation6 + $0x38] sm:$0xf]
        %v2415 = vld [vmem:[#allocation6 + $0x3c] sm:$0xf]
        %v2416 = vld [vmem:[#allocation6 + $0x40] sm:$0xf]
        %v2417 = vld [vmem:[#allocation6 + $0x44] sm:$0xf]
        %v2418 = vld [vmem:[#allocation6 + $0x48] sm:$0xf]
        %v2419 = vld [vmem:[#allocation6 + $0x4c] sm:$0xf]
        %v2420 = vld [vmem:[#allocation6 + $0x50] sm:$0xf]
        %v2421 = vld [vmem:[#allocation6 + $0x54] sm:$0xf]
        %v2422 = vld [vmem:[#allocation6 + $0x58] sm:$0xf]
        %v2423 = vld [vmem:[#allocation6 + $0x5c] sm:$0xf]
        %v2424 = vld [vmem:[#allocation6 + $0x60] sm:$0xf]
        %v2425 = vld [vmem:[#allocation6 + $0x64] sm:$0xf]
        %v2426 = vld [vmem:[#allocation6 + $0x68] sm:$0xf]
        %v2427 = vld [vmem:[#allocation6 + $0x6c] sm:$0xf]
        %v2428 = vld [vmem:[#allocation6 + $0x70] sm:$0xf]
        %v2429 = vld [vmem:[#allocation6 + $0x74] sm:$0xf]
        %v2430 = vld [vmem:[#allocation6 + $0x78] sm:$0xf]
        %v2431 = vld [vmem:[#allocation6 + $0x7c] sm:$0xf]
        %v2432 = vld [vmem:[#allocation6 + $0x80] sm:$0xf]
        %v2433 = vld [vmem:[#allocation6 + $0x84] sm:$0xf]
        %v2434 = vld [vmem:[#allocation6 + $0x88] sm:$0xf]
        %v2435 = vld [vmem:[#allocation6 + $0x8c] sm:$0xf]
        %v2436 = vld [vmem:[#allocation6 + $0x90] sm:$0xf]
        %v2437 = vld [vmem:[#allocation6 + $0x94] sm:$0xf]
        %v2438 = vld [vmem:[#allocation6 + $0x98] sm:$0xf]
        %v2439 = vld [vmem:[#allocation6 + $0x9c] sm:$0xf]
        %v2440 = vld [vmem:[#allocation6 + $0xa0] sm:$0xf]
        %v2441 = vld [vmem:[#allocation6 + $0xa4] sm:$0xf]
        %v2442 = vld [vmem:[#allocation6 + $0xa8] sm:$0xf]
        %v2443 = vld [vmem:[#allocation6 + $0xac] sm:$0xf]
        %v2444 = vld [vmem:[#allocation6 + $0xb0] sm:$0xf]
        %v2445 = vld [vmem:[#allocation6 + $0xb4] sm:$0xf]
        %v2446 = vld [vmem:[#allocation6 + $0xb8] sm:$0xf]
        %v2447 = vld [vmem:[#allocation6 + $0xbc] sm:$0xf]
        %v2448 = vld [vmem:[#allocation6 + $0xc0] sm:$0xf]
        %v2449 = vld [vmem:[#allocation6 + $0xc4] sm:$0xf]
        %v2450 = vld [vmem:[#allocation6 + $0xc8] sm:$0xf]
        %v2451 = vld [vmem:[#allocation6 + $0xcc] sm:$0xf]
        %v2452 = vld [vmem:[#allocation6 + $0xd0] sm:$0xf]
        %v2453 = vld [vmem:[#allocation6 + $0xd4] sm:$0xf]
        %v2454 = vld [vmem:[#allocation6 + $0xd8] sm:$0xf]
        %v2455 = vld [vmem:[#allocation6 + $0xdc] sm:$0xf]
        %v2456 = vld [vmem:[#allocation6 + $0xe0] sm:$0xf]
        %v2457 = vld [vmem:[#allocation6 + $0xe4] sm:$0xf]
        %v2458 = vld [vmem:[#allocation6 + $0xe8] sm:$0xf]
        %v2459 = vld [vmem:[#allocation6 + $0xec] sm:$0xf]
        %v2460 = vld [vmem:[#allocation6 + $0xf0] sm:$0xf]
        %v2461 = vld [vmem:[#allocation6 + $0xf4] sm:$0xf]
        %v2462 = vld [vmem:[#allocation6 + $0xf8] sm:$0xf]
        %v2463 = vld [vmem:[#allocation6 + $0xfc] sm:$0xf]
        %v2464 = vld [vmem:[#allocation6 + $0x100] sm:$0xf]
        %v2465 = vld [vmem:[#allocation6 + $0x104] sm:$0xf]
        %v2466 = vld [vmem:[#allocation6 + $0x108] sm:$0xf]
        %v2467 = vld [vmem:[#allocation6 + $0x10c] sm:$0xf]
        %v2468 = vld [vmem:[#allocation6 + $0x110] sm:$0xf]
        %v2469 = vld [vmem:[#allocation6 + $0x114] sm:$0xf]
        %v2470 = vld [vmem:[#allocation6 + $0x118] sm:$0xf]
        %v2471 = vld [vmem:[#allocation6 + $0x11c] sm:$0xf]
        %v2472 = vld [vmem:[#allocation6 + $0x120] sm:$0xf]
        %v2473 = vld [vmem:[#allocation6 + $0x124] sm:$0xf]
        %v2474 = vld [vmem:[#allocation6 + $0x128] sm:$0xf]
        %v2475 = vld [vmem:[#allocation6 + $0x12c] sm:$0xf]
        %v2476 = vld [vmem:[#allocation6 + $0x130] sm:$0xf]
        %v2477 = vld [vmem:[#allocation6 + $0x134] sm:$0xf]
        %v2478 = vld [vmem:[#allocation6 + $0x138] sm:$0xf]
        %v2479 = vld [vmem:[#allocation6 + $0x13c] sm:$0xf]
        %v2480 = vld [vmem:[#allocation6 + $0x140] sm:$0xf]
        %v2481 = vld [vmem:[#allocation6 + $0x144] sm:$0xf]
        %v2482 = vld [vmem:[#allocation6 + $0x148] sm:$0xf]
        %v2483 = vld [vmem:[#allocation6 + $0x14c] sm:$0xf]
        %v2484 = vld [vmem:[#allocation6 + $0x150] sm:$0xf]
        %v2485 = vld [vmem:[#allocation6 + $0x154] sm:$0xf]
        %v2486 = vld [vmem:[#allocation6 + $0x158] sm:$0xf]
        %v2487 = vld [vmem:[#allocation6 + $0x15c] sm:$0xf]
        %v2488 = vld [vmem:[#allocation6 + $0x160] sm:$0xf]
        %v2489 = vld [vmem:[#allocation6 + $0x164] sm:$0xf]
        %v2490 = vld [vmem:[#allocation6 + $0x168] sm:$0xf]
        %v2491 = vld [vmem:[#allocation6 + $0x16c] sm:$0xf]
        %v2492 = vld [vmem:[#allocation6 + $0x170] sm:$0xf]
        %v2493 = vld [vmem:[#allocation6 + $0x174] sm:$0xf]
        %v2494 = vld [vmem:[#allocation6 + $0x178] sm:$0xf]
        %v2495 = vld [vmem:[#allocation6 + $0x17c] sm:$0xf]
        %v2496 = vld [vmem:[#allocation6 + $0x180] sm:$0xf]
        %v2497 = vld [vmem:[#allocation6 + $0x184] sm:$0xf]
        %v2498 = vld [vmem:[#allocation6 + $0x188] sm:$0xf]
        %v2499 = vld [vmem:[#allocation6 + $0x18c] sm:$0xf]
        %v2500 = vld [vmem:[#allocation6 + $0x190] sm:$0xf]
        %v2501 = vld [vmem:[#allocation6 + $0x194] sm:$0xf]
        %v2502 = vld [vmem:[#allocation6 + $0x198] sm:$0xf]
        %v2503 = vld [vmem:[#allocation6 + $0x19c] sm:$0xf]
        %v2504 = vld [vmem:[#allocation6 + $0x1a0] sm:$0xf]
        %v2505 = vld [vmem:[#allocation6 + $0x1a4] sm:$0xf]
        %v2506 = vld [vmem:[#allocation6 + $0x1a8] sm:$0xf]
        %v2507 = vld [vmem:[#allocation6 + $0x1ac] sm:$0xf]
        %v2508 = vld [vmem:[#allocation6 + $0x1b0] sm:$0xf]
        %v2509 = vld [vmem:[#allocation6 + $0x1b4] sm:$0xf]
        %v2510 = vld [vmem:[#allocation6 + $0x1b8] sm:$0xf]
        %v2511 = vld [vmem:[#allocation6 + $0x1bc] sm:$0xf]
        %v2512 = vld [vmem:[#allocation6 + $0x1c0] sm:$0xf]
        %v2513 = vld [vmem:[#allocation6 + $0x1c4] sm:$0xf]
        %v2514 = vld [vmem:[#allocation6 + $0x1c8] sm:$0xf]
        %v2515 = vld [vmem:[#allocation6 + $0x1cc] sm:$0xf]
        %v2516 = vld [vmem:[#allocation6 + $0x1d0] sm:$0xf]
        %v2517 = vld [vmem:[#allocation6 + $0x1d4] sm:$0xf]
        %v2518 = vld [vmem:[#allocation6 + $0x1d8] sm:$0xf]
        %v2519 = vld [vmem:[#allocation6 + $0x1dc] sm:$0xf]
        %v2520 = vld [vmem:[#allocation6 + $0x1e0] sm:$0xf]
        %v2521 = vld [vmem:[#allocation6 + $0x1e4] sm:$0xf]
        %v2522 = vld [vmem:[#allocation6 + $0x1e8] sm:$0xf]
        %v2523 = vld [vmem:[#allocation6 + $0x1ec] sm:$0xf]
        %v2524 = vld [vmem:[#allocation6 + $0x1f0] sm:$0xf]
        %v2525 = vld [vmem:[#allocation6 + $0x1f4] sm:$0xf]
        %v2526 = vld [vmem:[#allocation6 + $0x1f8] sm:$0xf]
        %v2527 = vld [vmem:[#allocation6 + $0x1fc] sm:$0xf]
        %v2528 = vld [vmem:[#allocation6 + $0x200] sm:$0xf]
        %v2529 = vld [vmem:[#allocation6 + $0x204] sm:$0xf]
        %v2530 = vld [vmem:[#allocation6 + $0x208] sm:$0xf]
        %v2531 = vld [vmem:[#allocation6 + $0x20c] sm:$0xf]
        %v2532 = vld [vmem:[#allocation6 + $0x210] sm:$0xf]
        %v2533 = vld [vmem:[#allocation6 + $0x214] sm:$0xf]
        %v2534 = vld [vmem:[#allocation6 + $0x218] sm:$0xf]
        %v2535 = vld [vmem:[#allocation6 + $0x21c] sm:$0xf]
        %v2536 = vld [vmem:[#allocation6 + $0x220] sm:$0xf]
        %v2537 = vld [vmem:[#allocation6 + $0x224] sm:$0xf]
        %v2538 = vld [vmem:[#allocation6 + $0x228] sm:$0xf]
        %v2539 = vld [vmem:[#allocation6 + $0x22c] sm:$0xf]
        %v2540 = vld [vmem:[#allocation6 + $0x230] sm:$0xf]
        %v2541 = vld [vmem:[#allocation6 + $0x234] sm:$0xf]
        %v2542 = vld [vmem:[#allocation6 + $0x238] sm:$0xf]
        %v2543 = vld [vmem:[#allocation6 + $0x23c] sm:$0xf]
        %v2544 = vld [vmem:[%s3] sm:$0x1]
        %v2545 = vperm.slane %v2544, 0
        %v2690 = vunpack.c.l.b16 %v2400
        %v2691 = vunpack.c.l.b16 %v2401
        %v2692 = vunpack.c.l.b16 %v2402
        %v2693 = vunpack.c.l.b16 %v2403
        %v2694 = vunpack.c.l.b16 %v2404
        %v2695 = vunpack.c.l.b16 %v2405
        %v2696 = vunpack.c.l.b16 %v2406
        %v2697 = vunpack.c.l.b16 %v2407
        %v2698 = vunpack.c.l.b16 %v2408
        %v2699 = vunpack.c.l.b16 %v2409
        %v2700 = vunpack.c.l.b16 %v2410
        %v2701 = vunpack.c.l.b16 %v2411
        %v2702 = vunpack.c.l.b16 %v2412
        %v2703 = vunpack.c.l.b16 %v2413
        %v2704 = vunpack.c.l.b16 %v2414
        %v2705 = vunpack.c.l.b16 %v2415
        %v2706 = vunpack.c.l.b16 %v2416
        %v2707 = vunpack.c.l.b16 %v2417
        %v2708 = vunpack.c.l.b16 %v2418
        %v2709 = vunpack.c.l.b16 %v2419
        %v2710 = vunpack.c.l.b16 %v2420
        %v2711 = vunpack.c.l.b16 %v2421
        %v2712 = vunpack.c.l.b16 %v2422
        %v2713 = vunpack.c.l.b16 %v2423
        %v2714 = vunpack.c.l.b16 %v2424
        %v2715 = vunpack.c.l.b16 %v2425
        %v2716 = vunpack.c.l.b16 %v2426
        %v2717 = vunpack.c.l.b16 %v2427
        %v2718 = vunpack.c.l.b16 %v2428
        %v2719 = vunpack.c.l.b16 %v2429
        %v2720 = vunpack.c.l.b16 %v2430
        %v2721 = vunpack.c.l.b16 %v2431
        %v2722 = vunpack.c.l.b16 %v2432
        %v2723 = vunpack.c.l.b16 %v2433
        %v2724 = vunpack.c.l.b16 %v2434
        %v2725 = vunpack.c.l.b16 %v2435
        %v2726 = vunpack.c.l.b16 %v2436
        %v2727 = vunpack.c.l.b16 %v2437
        %v2728 = vunpack.c.l.b16 %v2438
        %v2729 = vunpack.c.l.b16 %v2439
        %v2730 = vunpack.c.l.b16 %v2440
        %v2731 = vunpack.c.l.b16 %v2441
        %v2732 = vunpack.c.l.b16 %v2442
        %v2733 = vunpack.c.l.b16 %v2443
        %v2734 = vunpack.c.l.b16 %v2444
        %v2735 = vunpack.c.l.b16 %v2445
        %v2736 = vunpack.c.l.b16 %v2446
        %v2737 = vunpack.c.l.b16 %v2447
        %v2738 = vunpack.c.l.b16 %v2448
        %v2739 = vunpack.c.l.b16 %v2449
        %v2740 = vunpack.c.l.b16 %v2450
        %v2741 = vunpack.c.l.b16 %v2451
        %v2742 = vunpack.c.l.b16 %v2452
        %v2743 = vunpack.c.l.b16 %v2453
        %v2744 = vunpack.c.l.b16 %v2454
        %v2745 = vunpack.c.l.b16 %v2455
        %v2746 = vunpack.c.l.b16 %v2456
        %v2747 = vunpack.c.l.b16 %v2457
        %v2748 = vunpack.c.l.b16 %v2458
        %v2749 = vunpack.c.l.b16 %v2459
        %v2750 = vunpack.c.l.b16 %v2460
        %v2751 = vunpack.c.l.b16 %v2461
        %v2752 = vunpack.c.l.b16 %v2462
        %v2753 = vunpack.c.l.b16 %v2463
        %v2754 = vunpack.c.l.b16 %v2464
        %v2755 = vunpack.c.l.b16 %v2465
        %v2756 = vunpack.c.l.b16 %v2466
        %v2757 = vunpack.c.l.b16 %v2467
        %v2758 = vunpack.c.l.b16 %v2468
        %v2759 = vunpack.c.l.b16 %v2469
        %v2760 = vunpack.c.l.b16 %v2470
        %v2761 = vunpack.c.l.b16 %v2471
        %v2762 = vunpack.c.l.b16 %v2472
        %v2763 = vunpack.c.l.b16 %v2473
        %v2764 = vunpack.c.l.b16 %v2474
        %v2765 = vunpack.c.l.b16 %v2475
        %v2766 = vunpack.c.l.b16 %v2476
        %v2767 = vunpack.c.l.b16 %v2477
        %v2768 = vunpack.c.l.b16 %v2478
        %v2769 = vunpack.c.l.b16 %v2479
        %v2770 = vunpack.c.l.b16 %v2480
        %v2771 = vunpack.c.l.b16 %v2481
        %v2772 = vunpack.c.l.b16 %v2482
        %v2773 = vunpack.c.l.b16 %v2483
        %v2774 = vunpack.c.l.b16 %v2484
        %v2775 = vunpack.c.l.b16 %v2485
        %v2776 = vunpack.c.l.b16 %v2486
        %v2777 = vunpack.c.l.b16 %v2487
        %v2778 = vunpack.c.l.b16 %v2488
        %v2779 = vunpack.c.l.b16 %v2489
        %v2780 = vunpack.c.l.b16 %v2490
        %v2781 = vunpack.c.l.b16 %v2491
        %v2782 = vunpack.c.l.b16 %v2492
        %v2783 = vunpack.c.l.b16 %v2493
        %v2784 = vunpack.c.l.b16 %v2494
        %v2785 = vunpack.c.l.b16 %v2495
        %v2786 = vunpack.c.l.b16 %v2496
        %v2787 = vunpack.c.l.b16 %v2497
        %v2788 = vunpack.c.l.b16 %v2498
        %v2789 = vunpack.c.l.b16 %v2499
        %v2790 = vunpack.c.l.b16 %v2500
        %v2791 = vunpack.c.l.b16 %v2501
        %v2792 = vunpack.c.l.b16 %v2502
        %v2793 = vunpack.c.l.b16 %v2503
        %v2794 = vunpack.c.l.b16 %v2504
        %v2795 = vunpack.c.l.b16 %v2505
        %v2796 = vunpack.c.l.b16 %v2506
        %v2797 = vunpack.c.l.b16 %v2507
        %v2798 = vunpack.c.l.b16 %v2508
        %v2799 = vunpack.c.l.b16 %v2509
        %v2800 = vunpack.c.l.b16 %v2510
        %v2801 = vunpack.c.l.b16 %v2511
        %v2802 = vunpack.c.l.b16 %v2512
        %v2803 = vunpack.c.l.b16 %v2513
        %v2804 = vunpack.c.l.b16 %v2514
        %v2805 = vunpack.c.l.b16 %v2515
        %v2806 = vunpack.c.l.b16 %v2516
        %v2807 = vunpack.c.l.b16 %v2517
        %v2808 = vunpack.c.l.b16 %v2518
        %v2809 = vunpack.c.l.b16 %v2519
        %v2810 = vunpack.c.l.b16 %v2520
        %v2811 = vunpack.c.l.b16 %v2521
        %v2812 = vunpack.c.l.b16 %v2522
        %v2813 = vunpack.c.l.b16 %v2523
        %v2814 = vunpack.c.l.b16 %v2524
        %v2815 = vunpack.c.l.b16 %v2525
        %v2816 = vunpack.c.l.b16 %v2526
        %v2817 = vunpack.c.l.b16 %v2527
        %v2818 = vunpack.c.l.b16 %v2528
        %v2819 = vunpack.c.l.b16 %v2529
        %v2820 = vunpack.c.l.b16 %v2530
        %v2821 = vunpack.c.l.b16 %v2531
        %v2822 = vunpack.c.l.b16 %v2532
        %v2823 = vunpack.c.l.b16 %v2533
        %v2824 = vunpack.c.l.b16 %v2534
        %v2825 = vunpack.c.l.b16 %v2535
        %v2826 = vunpack.c.l.b16 %v2536
        %v2827 = vunpack.c.l.b16 %v2537
        %v2828 = vunpack.c.l.b16 %v2538
        %v2829 = vunpack.c.l.b16 %v2539
        %v2830 = vunpack.c.l.b16 %v2540
        %v2831 = vunpack.c.l.b16 %v2541
        %v2832 = vunpack.c.l.b16 %v2542
        %v2833 = vunpack.c.l.b16 %v2543
        %v2834 = vpack.c.b16 %v2691, %v2690
        %v2835 = vpack.c.b16 %v2693, %v2692
        %v2836 = vpack.c.b16 %v2695, %v2694
        %v2837 = vpack.c.b16 %v2697, %v2696
        %v2838 = vpack.c.b16 %v2699, %v2698
        %v2839 = vpack.c.b16 %v2701, %v2700
        %v2840 = vpack.c.b16 %v2703, %v2702
        %v2841 = vpack.c.b16 %v2705, %v2704
        %v2842 = vpack.c.b16 %v2707, %v2706
        %v2843 = vpack.c.b16 %v2709, %v2708
        %v2844 = vpack.c.b16 %v2711, %v2710
        %v2845 = vpack.c.b16 %v2713, %v2712
        %v2846 = vpack.c.b16 %v2715, %v2714
        %v2847 = vpack.c.b16 %v2717, %v2716
        %v2848 = vpack.c.b16 %v2719, %v2718
        %v2849 = vpack.c.b16 %v2721, %v2720
        %v2850 = vpack.c.b16 %v2723, %v2722
        %v2851 = vpack.c.b16 %v2725, %v2724
        %v2852 = vpack.c.b16 %v2727, %v2726
        %v2853 = vpack.c.b16 %v2729, %v2728
        %v2854 = vpack.c.b16 %v2731, %v2730
        %v2855 = vpack.c.b16 %v2733, %v2732
        %v2856 = vpack.c.b16 %v2735, %v2734
        %v2857 = vpack.c.b16 %v2737, %v2736
        %v2858 = vpack.c.b16 %v2739, %v2738
        %v2859 = vpack.c.b16 %v2741, %v2740
        %v2860 = vpack.c.b16 %v2743, %v2742
        %v2861 = vpack.c.b16 %v2745, %v2744
        %v2862 = vpack.c.b16 %v2747, %v2746
        %v2863 = vpack.c.b16 %v2749, %v2748
        %v2864 = vpack.c.b16 %v2751, %v2750
        %v2865 = vpack.c.b16 %v2753, %v2752
        %v2866 = vpack.c.b16 %v2755, %v2754
        %v2867 = vpack.c.b16 %v2757, %v2756
        %v2868 = vpack.c.b16 %v2759, %v2758
        %v2869 = vpack.c.b16 %v2761, %v2760
        %v2870 = vpack.c.b16 %v2763, %v2762
        %v2871 = vpack.c.b16 %v2765, %v2764
        %v2872 = vpack.c.b16 %v2767, %v2766
        %v2873 = vpack.c.b16 %v2769, %v2768
        %v2874 = vpack.c.b16 %v2771, %v2770
        %v2875 = vpack.c.b16 %v2773, %v2772
        %v2876 = vpack.c.b16 %v2775, %v2774
        %v2877 = vpack.c.b16 %v2777, %v2776
        %v2878 = vpack.c.b16 %v2779, %v2778
        %v2879 = vpack.c.b16 %v2781, %v2780
        %v2880 = vpack.c.b16 %v2783, %v2782
        %v2881 = vpack.c.b16 %v2785, %v2784
        %v2882 = vpack.c.b16 %v2787, %v2786
        %v2883 = vpack.c.b16 %v2789, %v2788
        %v2884 = vpack.c.b16 %v2791, %v2790
        %v2885 = vpack.c.b16 %v2793, %v2792
        %v2886 = vpack.c.b16 %v2795, %v2794
        %v2887 = vpack.c.b16 %v2797, %v2796
        %v2888 = vpack.c.b16 %v2799, %v2798
        %v2889 = vpack.c.b16 %v2801, %v2800
        %v2890 = vpack.c.b16 %v2803, %v2802
        %v2891 = vpack.c.b16 %v2805, %v2804
        %v2892 = vpack.c.b16 %v2807, %v2806
        %v2893 = vpack.c.b16 %v2809, %v2808
        %v2894 = vpack.c.b16 %v2811, %v2810
        %v2895 = vpack.c.b16 %v2813, %v2812
        %v2896 = vpack.c.b16 %v2815, %v2814
        %v2897 = vpack.c.b16 %v2817, %v2816
        %v2898 = vpack.c.b16 %v2819, %v2818
        %v2899 = vpack.c.b16 %v2821, %v2820
        %v2900 = vpack.c.b16 %v2823, %v2822
        %v2901 = vpack.c.b16 %v2825, %v2824
        %v2902 = vpack.c.b16 %v2827, %v2826
        %v2903 = vpack.c.b16 %v2829, %v2828
        %v2904 = vpack.c.b16 %v2831, %v2830
        %v2905 = vpack.c.b16 %v2833, %v2832
        %2978 = vmatpush.bf16.msra.mxu0 %v2841
        %2979 = vmatpush.bf16.msra.mxu0 %v2840
        %2980 = vmatpush.bf16.msra.mxu0 %v2839
        %2981 = vmatpush.bf16.msra.mxu0 %v2838
        %2982 = vmatpush.bf16.msra.mxu0 %v2837
        %2983 = vmatpush.bf16.msra.mxu0 %v2836
        %2984 = vmatpush.bf16.msra.mxu0 %v2835
        %2985 = vmatpush.bf16.msra.mxu0 %v2834
        %2986 = vmatmul.bf16.gmra.mxu0 %v1070
        %v2987 = vpop.f32.mrf.mxu0
        %v2988 = vadd.f32 %v2545, %v2987
        %v2989 = vpop.f32.mrf.mxu0
        %v2990 = vadd.f32 %v2545, %v2989
        %2991 = vmatmul.bf16.gmra.mxu0 %v1071
        %v2992 = vpop.f32.mrf.mxu0
        %v2993 = vadd.f32 %v2545, %v2992
        %v2994 = vpop.f32.mrf.mxu0
        %v2995 = vadd.f32 %v2545, %v2994
        %2996 = vmatmul.bf16.gmra.mxu0 %v1072
        %v2997 = vpop.f32.mrf.mxu0
        %v2998 = vadd.f32 %v2545, %v2997
        %v2999 = vpop.f32.mrf.mxu0
        %v3000 = vadd.f32 %v2545, %v2999
        %3001 = vmatmul.bf16.gmra.mxu0 %v1073
        %v3002 = vpop.f32.mrf.mxu0
        %v3003 = vadd.f32 %v2545, %v3002
        %v3004 = vpop.f32.mrf.mxu0
        %v3005 = vadd.f32 %v2545, %v3004
        %3006 = vmatmul.bf16.gmra.mxu0 %v1074
        %v3007 = vpop.f32.mrf.mxu0
        %v3008 = vadd.f32 %v2545, %v3007
        %v3009 = vpop.f32.mrf.mxu0
        %v3010 = vadd.f32 %v2545, %v3009
        %3011 = vmatmul.bf16.gmra.mxu0 %v1075
        %v3012 = vpop.f32.mrf.mxu0
        %v3013 = vadd.f32 %v2545, %v3012
        %v3014 = vpop.f32.mrf.mxu0
        %v3015 = vadd.f32 %v2545, %v3014
        %3016 = vmatmul.bf16.gmra.mxu0 %v1076
        %v3017 = vpop.f32.mrf.mxu0
        %v3018 = vadd.f32 %v2545, %v3017
        %v3019 = vpop.f32.mrf.mxu0
        %v3020 = vadd.f32 %v2545, %v3019
        %3021 = vmatmul.bf16.gmra.mxu0 %v1077
        %v3022 = vpop.f32.mrf.mxu0
        %v3023 = vadd.f32 %v2545, %v3022
        %v3024 = vpop.f32.mrf.mxu0
        %v3025 = vadd.f32 %v2545, %v3024
        %3026 = vmatmul.bf16.gmra.mxu0 %v1078
        %v3027 = vpop.f32.mrf.mxu0
        %v3028 = vadd.f32 %v2545, %v3027
        %v3029 = vpop.f32.mrf.mxu0
        %v3030 = vadd.f32 %v2545, %v3029
        %3031 = vmatmul.bf16.gmra.mxu0 %v1079
        %v3032 = vpop.f32.mrf.mxu0
        %v3033 = vadd.f32 %v2545, %v3032
        %v3034 = vpop.f32.mrf.mxu0
        %v3035 = vadd.f32 %v2545, %v3034
        %3036 = vmatmul.bf16.gmra.mxu0 %v1080
        %v3037 = vpop.f32.mrf.mxu0
        %v3038 = vadd.f32 %v2545, %v3037
        %v3039 = vpop.f32.mrf.mxu0
        %v3040 = vadd.f32 %v2545, %v3039
        %3041 = vmatmul.bf16.gmra.mxu0 %v1081
        %v3042 = vpop.f32.mrf.mxu0
        %v3043 = vadd.f32 %v2545, %v3042
        %v3044 = vpop.f32.mrf.mxu0
        %v3045 = vadd.f32 %v2545, %v3044
        %3046 = vmatmul.bf16.gmra.mxu0 %v1082
        %v3047 = vpop.f32.mrf.mxu0
        %v3048 = vadd.f32 %v2545, %v3047
        %v3049 = vpop.f32.mrf.mxu0
        %v3050 = vadd.f32 %v2545, %v3049
        %3051 = vmatmul.bf16.gmra.mxu0 %v1083
        %v3052 = vpop.f32.mrf.mxu0
        %v3053 = vadd.f32 %v2545, %v3052
        %v3054 = vpop.f32.mrf.mxu0
        %v3055 = vadd.f32 %v2545, %v3054
        %3056 = vmatmul.bf16.gmra.mxu0 %v1084
        %v3057 = vpop.f32.mrf.mxu0
        %v3058 = vadd.f32 %v2545, %v3057
        %v3059 = vpop.f32.mrf.mxu0
        %v3060 = vadd.f32 %v2545, %v3059
        %3061 = vmatmul.bf16.gmra.mxu0 %v1085
        %v3062 = vpop.f32.mrf.mxu0
        %v3063 = vadd.f32 %v2545, %v3062
        %v3064 = vpop.f32.mrf.mxu0
        %v3065 = vadd.f32 %v2545, %v3064
        %3066 = vdwg.mxu0
        %3067 = vmatpush.bf16.msra.mxu0 %v2849
        %3068 = vmatpush.bf16.msra.mxu0 %v2848
        %3069 = vmatpush.bf16.msra.mxu0 %v2847
        %3070 = vmatpush.bf16.msra.mxu0 %v2846
        %3071 = vmatpush.bf16.msra.mxu0 %v2845
        %3072 = vmatpush.bf16.msra.mxu0 %v2844
        %3073 = vmatpush.bf16.msra.mxu0 %v2843
        %3074 = vmatpush.bf16.msra.mxu0 %v2842
        %3075 = vmatmul.bf16.gmra.mxu0 %v1162
        %v3076 = vpop.f32.mrf.mxu0
        %v3077 = vadd.f32 %v2988, %v3076
        %v3078 = vpop.f32.mrf.mxu0
        %v3079 = vadd.f32 %v2990, %v3078
        %3080 = vmatmul.bf16.gmra.mxu0 %v1174
        %v3081 = vpop.f32.mrf.mxu0
        %v3082 = vadd.f32 %v2993, %v3081
        %v3083 = vpop.f32.mrf.mxu0
        %v3084 = vadd.f32 %v2995, %v3083
        %3085 = vmatmul.bf16.gmra.mxu0 %v1186
        %v3086 = vpop.f32.mrf.mxu0
        %v3087 = vadd.f32 %v2998, %v3086
        %v3088 = vpop.f32.mrf.mxu0
        %v3089 = vadd.f32 %v3000, %v3088
        %3090 = vmatmul.bf16.gmra.mxu0 %v1198
        %v3091 = vpop.f32.mrf.mxu0
        %v3092 = vadd.f32 %v3003, %v3091
        %v3093 = vpop.f32.mrf.mxu0
        %v3094 = vadd.f32 %v3005, %v3093
        %3095 = vmatmul.bf16.gmra.mxu0 %v1210
        %v3096 = vpop.f32.mrf.mxu0
        %v3097 = vadd.f32 %v3008, %v3096
        %v3098 = vpop.f32.mrf.mxu0
        %v3099 = vadd.f32 %v3010, %v3098
        %3100 = vmatmul.bf16.gmra.mxu0 %v1222
        %v3101 = vpop.f32.mrf.mxu0
        %v3102 = vadd.f32 %v3013, %v3101
        %v3103 = vpop.f32.mrf.mxu0
        %v3104 = vadd.f32 %v3015, %v3103
        %3105 = vmatmul.bf16.gmra.mxu0 %v1234
        %v3106 = vpop.f32.mrf.mxu0
        %v3107 = vadd.f32 %v3018, %v3106
        %v3108 = vpop.f32.mrf.mxu0
        %v3109 = vadd.f32 %v3020, %v3108
        %3110 = vmatmul.bf16.gmra.mxu0 %v1246
        %v3111 = vpop.f32.mrf.mxu0
        %v3112 = vadd.f32 %v3023, %v3111
        %v3113 = vpop.f32.mrf.mxu0
        %v3114 = vadd.f32 %v3025, %v3113
        %3115 = vmatmul.bf16.gmra.mxu0 %v1258
        %v3116 = vpop.f32.mrf.mxu0
        %v3117 = vadd.f32 %v3028, %v3116
        %v3118 = vpop.f32.mrf.mxu0
        %v3119 = vadd.f32 %v3030, %v3118
        %3120 = vmatmul.bf16.gmra.mxu0 %v1270
        %v3121 = vpop.f32.mrf.mxu0
        %v3122 = vadd.f32 %v3033, %v3121
        %v3123 = vpop.f32.mrf.mxu0
        %v3124 = vadd.f32 %v3035, %v3123
        %3125 = vmatmul.bf16.gmra.mxu0 %v1282
        %v3126 = vpop.f32.mrf.mxu0
        %v3127 = vadd.f32 %v3038, %v3126
        %v3128 = vpop.f32.mrf.mxu0
        %v3129 = vadd.f32 %v3040, %v3128
        %3130 = vmatmul.bf16.gmra.mxu0 %v1294
        %v3131 = vpop.f32.mrf.mxu0
        %v3132 = vadd.f32 %v3043, %v3131
        %v3133 = vpop.f32.mrf.mxu0
        %v3134 = vadd.f32 %v3045, %v3133
        %3135 = vmatmul.bf16.gmra.mxu0 %v1306
        %v3136 = vpop.f32.mrf.mxu0
        %v3137 = vadd.f32 %v3048, %v3136
        %v3138 = vpop.f32.mrf.mxu0
        %v3139 = vadd.f32 %v3050, %v3138
        %3140 = vmatmul.bf16.gmra.mxu0 %v1318
        %v3141 = vpop.f32.mrf.mxu0
        %v3142 = vadd.f32 %v3053, %v3141
        %v3143 = vpop.f32.mrf.mxu0
        %v3144 = vadd.f32 %v3055, %v3143
        %3145 = vmatmul.bf16.gmra.mxu0 %v1330
        %v3146 = vpop.f32.mrf.mxu0
        %v3147 = vadd.f32 %v3058, %v3146
        %v3148 = vpop.f32.mrf.mxu0
        %v3149 = vadd.f32 %v3060, %v3148
        %3150 = vmatmul.bf16.gmra.mxu0 %v1342
        %v3151 = vpop.f32.mrf.mxu0
        %v3152 = vadd.f32 %v3063, %v3151
        %v3153 = vpop.f32.mrf.mxu0
        %v3154 = vadd.f32 %v3065, %v3153
        %3155 = vdwg.mxu0
        %3156 = vmatpush.bf16.msra.mxu0 %v2857
        %3157 = vmatpush.bf16.msra.mxu0 %v2856
        %3158 = vmatpush.bf16.msra.mxu0 %v2855
        %3159 = vmatpush.bf16.msra.mxu0 %v2854
        %3160 = vmatpush.bf16.msra.mxu0 %v2853
        %3161 = vmatpush.bf16.msra.mxu0 %v2852
        %3162 = vmatpush.bf16.msra.mxu0 %v2851
        %3163 = vmatpush.bf16.msra.mxu0 %v2850
        %3164 = vmatmul.bf16.gmra.mxu0 %v1410
        %v3165 = vpop.f32.mrf.mxu0
        %v3166 = vadd.f32 %v3077, %v3165
        %v3167 = vpop.f32.mrf.mxu0
        %v3168 = vadd.f32 %v3079, %v3167
        %3169 = vmatmul.bf16.gmra.mxu0 %v1413
        %v3170 = vpop.f32.mrf.mxu0
        %v3171 = vadd.f32 %v3082, %v3170
        %v3172 = vpop.f32.mrf.mxu0
        %v3173 = vadd.f32 %v3084, %v3172
        %3174 = vmatmul.bf16.gmra.mxu0 %v1416
        %v3175 = vpop.f32.mrf.mxu0
        %v3176 = vadd.f32 %v3087, %v3175
        %v3177 = vpop.f32.mrf.mxu0
        %v3178 = vadd.f32 %v3089, %v3177
        %3179 = vmatmul.bf16.gmra.mxu0 %v1419
        %v3180 = vpop.f32.mrf.mxu0
        %v3181 = vadd.f32 %v3092, %v3180
        %v3182 = vpop.f32.mrf.mxu0
        %v3183 = vadd.f32 %v3094, %v3182
        %3184 = vmatmul.bf16.gmra.mxu0 %v1422
        %v3185 = vpop.f32.mrf.mxu0
        %v3186 = vadd.f32 %v3097, %v3185
        %v3187 = vpop.f32.mrf.mxu0
        %v3188 = vadd.f32 %v3099, %v3187
        %3189 = vmatmul.bf16.gmra.mxu0 %v1425
        %v3190 = vpop.f32.mrf.mxu0
        %v3191 = vadd.f32 %v3102, %v3190
        %v3192 = vpop.f32.mrf.mxu0
        %v3193 = vadd.f32 %v3104, %v3192
        %3194 = vmatmul.bf16.gmra.mxu0 %v1428
        %v3195 = vpop.f32.mrf.mxu0
        %v3196 = vadd.f32 %v3107, %v3195
        %v3197 = vpop.f32.mrf.mxu0
        %v3198 = vadd.f32 %v3109, %v3197
        %3199 = vmatmul.bf16.gmra.mxu0 %v1431
        %v3200 = vpop.f32.mrf.mxu0
        %v3201 = vadd.f32 %v3112, %v3200
        %v3202 = vpop.f32.mrf.mxu0
        %v3203 = vadd.f32 %v3114, %v3202
        %3204 = vmatmul.bf16.gmra.mxu0 %v1434
        %v3205 = vpop.f32.mrf.mxu0
        %v3206 = vadd.f32 %v3117, %v3205
        %v3207 = vpop.f32.mrf.mxu0
        %v3208 = vadd.f32 %v3119, %v3207
        %3209 = vmatmul.bf16.gmra.mxu0 %v1437
        %v3210 = vpop.f32.mrf.mxu0
        %v3211 = vadd.f32 %v3122, %v3210
        %v3212 = vpop.f32.mrf.mxu0
        %v3213 = vadd.f32 %v3124, %v3212
        %3214 = vmatmul.bf16.gmra.mxu0 %v1440
        %v3215 = vpop.f32.mrf.mxu0
        %v3216 = vadd.f32 %v3127, %v3215
        %v3217 = vpop.f32.mrf.mxu0
        %v3218 = vadd.f32 %v3129, %v3217
        %3219 = vmatmul.bf16.gmra.mxu0 %v1443
        %v3220 = vpop.f32.mrf.mxu0
        %v3221 = vadd.f32 %v3132, %v3220
        %v3222 = vpop.f32.mrf.mxu0
        %v3223 = vadd.f32 %v3134, %v3222
        %3224 = vmatmul.bf16.gmra.mxu0 %v1446
        %v3225 = vpop.f32.mrf.mxu0
        %v3226 = vadd.f32 %v3137, %v3225
        %v3227 = vpop.f32.mrf.mxu0
        %v3228 = vadd.f32 %v3139, %v3227
        %3229 = vmatmul.bf16.gmra.mxu0 %v1449
        %v3230 = vpop.f32.mrf.mxu0
        %v3231 = vadd.f32 %v3142, %v3230
        %v3232 = vpop.f32.mrf.mxu0
        %v3233 = vadd.f32 %v3144, %v3232
        %3234 = vmatmul.bf16.gmra.mxu0 %v1452
        %v3235 = vpop.f32.mrf.mxu0
        %v3236 = vadd.f32 %v3147, %v3235
        %v3237 = vpop.f32.mrf.mxu0
        %v3238 = vadd.f32 %v3149, %v3237
        %3239 = vmatmul.bf16.gmra.mxu0 %v1455
        %v3240 = vpop.f32.mrf.mxu0
        %v3241 = vadd.f32 %v3152, %v3240
        %v3242 = vpop.f32.mrf.mxu0
        %v3243 = vadd.f32 %v3154, %v3242
        %3244 = vdwg.mxu0
        %3245 = vmatpush.bf16.msra.mxu0 %v2865
        %3246 = vmatpush.bf16.msra.mxu0 %v2864
        %3247 = vmatpush.bf16.msra.mxu0 %v2863
        %3248 = vmatpush.bf16.msra.mxu0 %v2862
        %3249 = vmatpush.bf16.msra.mxu0 %v2861
        %3250 = vmatpush.bf16.msra.mxu0 %v2860
        %3251 = vmatpush.bf16.msra.mxu0 %v2859
        %3252 = vmatpush.bf16.msra.mxu0 %v2858
        %3253 = vmatmul.bf16.gmra.mxu0 %v1536
        %v3254 = vpop.f32.mrf.mxu0
        %v3255 = vadd.f32 %v3166, %v3254
        %v3256 = vpop.f32.mrf.mxu0
        %v3257 = vadd.f32 %v3168, %v3256
        %3258 = vmatmul.bf16.gmra.mxu0 %v1537
        %v3259 = vpop.f32.mrf.mxu0
        %v3260 = vadd.f32 %v3171, %v3259
        %v3261 = vpop.f32.mrf.mxu0
        %v3262 = vadd.f32 %v3173, %v3261
        %3263 = vmatmul.bf16.gmra.mxu0 %v1538
        %v3264 = vpop.f32.mrf.mxu0
        %v3265 = vadd.f32 %v3176, %v3264
        %v3266 = vpop.f32.mrf.mxu0
        %v3267 = vadd.f32 %v3178, %v3266
        %3268 = vmatmul.bf16.gmra.mxu0 %v1539
        %v3269 = vpop.f32.mrf.mxu0
        %v3270 = vadd.f32 %v3181, %v3269
        %v3271 = vpop.f32.mrf.mxu0
        %v3272 = vadd.f32 %v3183, %v3271
        %3273 = vmatmul.bf16.gmra.mxu0 %v1540
        %v3274 = vpop.f32.mrf.mxu0
        %v3275 = vadd.f32 %v3186, %v3274
        %v3276 = vpop.f32.mrf.mxu0
        %v3277 = vadd.f32 %v3188, %v3276
        %3278 = vmatmul.bf16.gmra.mxu0 %v1541
        %v3279 = vpop.f32.mrf.mxu0
        %v3280 = vadd.f32 %v3191, %v3279
        %v3281 = vpop.f32.mrf.mxu0
        %v3282 = vadd.f32 %v3193, %v3281
        %3283 = vmatmul.bf16.gmra.mxu0 %v1542
        %v3284 = vpop.f32.mrf.mxu0
        %v3285 = vadd.f32 %v3196, %v3284
        %v3286 = vpop.f32.mrf.mxu0
        %v3287 = vadd.f32 %v3198, %v3286
        %3288 = vmatmul.bf16.gmra.mxu0 %v1543
        %v3289 = vpop.f32.mrf.mxu0
        %v3290 = vadd.f32 %v3201, %v3289
        %v3291 = vpop.f32.mrf.mxu0
        %v3292 = vadd.f32 %v3203, %v3291
        %3293 = vmatmul.bf16.gmra.mxu0 %v1544
        %v3294 = vpop.f32.mrf.mxu0
        %v3295 = vadd.f32 %v3206, %v3294
        %v3296 = vpop.f32.mrf.mxu0
        %v3297 = vadd.f32 %v3208, %v3296
        %3298 = vmatmul.bf16.gmra.mxu0 %v1545
        %v3299 = vpop.f32.mrf.mxu0
        %v3300 = vadd.f32 %v3211, %v3299
        %v3301 = vpop.f32.mrf.mxu0
        %v3302 = vadd.f32 %v3213, %v3301
        %3303 = vmatmul.bf16.gmra.mxu0 %v1546
        %v3304 = vpop.f32.mrf.mxu0
        %v3305 = vadd.f32 %v3216, %v3304
        %v3306 = vpop.f32.mrf.mxu0
        %v3307 = vadd.f32 %v3218, %v3306
        %3308 = vmatmul.bf16.gmra.mxu0 %v1547
        %v3309 = vpop.f32.mrf.mxu0
        %v3310 = vadd.f32 %v3221, %v3309
        %v3311 = vpop.f32.mrf.mxu0
        %v3312 = vadd.f32 %v3223, %v3311
        %3313 = vmatmul.bf16.gmra.mxu0 %v1548
        %v3314 = vpop.f32.mrf.mxu0
        %v3315 = vadd.f32 %v3226, %v3314
        %v3316 = vpop.f32.mrf.mxu0
        %v3317 = vadd.f32 %v3228, %v3316
        %3318 = vmatmul.bf16.gmra.mxu0 %v1549
        %v3319 = vpop.f32.mrf.mxu0
        %v3320 = vadd.f32 %v3231, %v3319
        %v3321 = vpop.f32.mrf.mxu0
        %v3322 = vadd.f32 %v3233, %v3321
        %3323 = vmatmul.bf16.gmra.mxu0 %v1550
        %v3324 = vpop.f32.mrf.mxu0
        %v3325 = vadd.f32 %v3236, %v3324
        %v3326 = vpop.f32.mrf.mxu0
        %v3327 = vadd.f32 %v3238, %v3326
        %3328 = vmatmul.bf16.gmra.mxu0 %v1551
        %v3329 = vpop.f32.mrf.mxu0
        %v3330 = vadd.f32 %v3241, %v3329
        %v3331 = vpop.f32.mrf.mxu0
        %v3332 = vadd.f32 %v3243, %v3331
        %3333 = vdwg.mxu0
        %3334 = vmatpush.bf16.msra.mxu0 %v2873
        %3335 = vmatpush.bf16.msra.mxu0 %v2872
        %3336 = vmatpush.bf16.msra.mxu0 %v2871
        %3337 = vmatpush.bf16.msra.mxu0 %v2870
        %3338 = vmatpush.bf16.msra.mxu0 %v2869
        %3339 = vmatpush.bf16.msra.mxu0 %v2868
        %3340 = vmatpush.bf16.msra.mxu0 %v2867
        %3341 = vmatpush.bf16.msra.mxu0 %v2866
        %3342 = vmatmul.bf16.gmra.mxu0 %v1627
        %v3343 = vpop.f32.mrf.mxu0
        %v3344 = vadd.f32 %v3255, %v3343
        %v3345 = vpop.f32.mrf.mxu0
        %v3346 = vadd.f32 %v3257, %v3345
        %3347 = vmatmul.bf16.gmra.mxu0 %v1639
        %v3348 = vpop.f32.mrf.mxu0
        %v3349 = vadd.f32 %v3260, %v3348
        %v3350 = vpop.f32.mrf.mxu0
        %v3351 = vadd.f32 %v3262, %v3350
        %3352 = vmatmul.bf16.gmra.mxu0 %v1651
        %v3353 = vpop.f32.mrf.mxu0
        %v3354 = vadd.f32 %v3265, %v3353
        %v3355 = vpop.f32.mrf.mxu0
        %v3356 = vadd.f32 %v3267, %v3355
        %3357 = vmatmul.bf16.gmra.mxu0 %v1663
        %v3358 = vpop.f32.mrf.mxu0
        %v3359 = vadd.f32 %v3270, %v3358
        %v3360 = vpop.f32.mrf.mxu0
        %v3361 = vadd.f32 %v3272, %v3360
        %3362 = vmatmul.bf16.gmra.mxu0 %v1675
        %v3363 = vpop.f32.mrf.mxu0
        %v3364 = vadd.f32 %v3275, %v3363
        %v3365 = vpop.f32.mrf.mxu0
        %v3366 = vadd.f32 %v3277, %v3365
        %3367 = vmatmul.bf16.gmra.mxu0 %v1687
        %v3368 = vpop.f32.mrf.mxu0
        %v3369 = vadd.f32 %v3280, %v3368
        %v3370 = vpop.f32.mrf.mxu0
        %v3371 = vadd.f32 %v3282, %v3370
        %3372 = vmatmul.bf16.gmra.mxu0 %v1699
        %v3373 = vpop.f32.mrf.mxu0
        %v3374 = vadd.f32 %v3285, %v3373
        %v3375 = vpop.f32.mrf.mxu0
        %v3376 = vadd.f32 %v3287, %v3375
        %3377 = vmatmul.bf16.gmra.mxu0 %v1711
        %v3378 = vpop.f32.mrf.mxu0
        %v3379 = vadd.f32 %v3290, %v3378
        %v3380 = vpop.f32.mrf.mxu0
        %v3381 = vadd.f32 %v3292, %v3380
        %3382 = vmatmul.bf16.gmra.mxu0 %v1723
        %v3383 = vpop.f32.mrf.mxu0
        %v3384 = vadd.f32 %v3295, %v3383
        %v3385 = vpop.f32.mrf.mxu0
        %v3386 = vadd.f32 %v3297, %v3385
        %3387 = vmatmul.bf16.gmra.mxu0 %v1735
        %v3388 = vpop.f32.mrf.mxu0
        %v3389 = vadd.f32 %v3300, %v3388
        %v3390 = vpop.f32.mrf.mxu0
        %v3391 = vadd.f32 %v3302, %v3390
        %3392 = vmatmul.bf16.gmra.mxu0 %v1747
        %v3393 = vpop.f32.mrf.mxu0
        %v3394 = vadd.f32 %v3305, %v3393
        %v3395 = vpop.f32.mrf.mxu0
        %v3396 = vadd.f32 %v3307, %v3395
        %3397 = vmatmul.bf16.gmra.mxu0 %v1759
        %v3398 = vpop.f32.mrf.mxu0
        %v3399 = vadd.f32 %v3310, %v3398
        %v3400 = vpop.f32.mrf.mxu0
        %v3401 = vadd.f32 %v3312, %v3400
        %3402 = vmatmul.bf16.gmra.mxu0 %v1771
        %v3403 = vpop.f32.mrf.mxu0
        %v3404 = vadd.f32 %v3315, %v3403
        %v3405 = vpop.f32.mrf.mxu0
        %v3406 = vadd.f32 %v3317, %v3405
        %3407 = vmatmul.bf16.gmra.mxu0 %v1783
        %v3408 = vpop.f32.mrf.mxu0
        %v3409 = vadd.f32 %v3320, %v3408
        %v3410 = vpop.f32.mrf.mxu0
        %v3411 = vadd.f32 %v3322, %v3410
        %3412 = vmatmul.bf16.gmra.mxu0 %v1795
        %v3413 = vpop.f32.mrf.mxu0
        %v3414 = vadd.f32 %v3325, %v3413
        %v3415 = vpop.f32.mrf.mxu0
        %v3416 = vadd.f32 %v3327, %v3415
        %3417 = vmatmul.bf16.gmra.mxu0 %v1807
        %v3418 = vpop.f32.mrf.mxu0
        %v3419 = vadd.f32 %v3330, %v3418
        %v3420 = vpop.f32.mrf.mxu0
        %v3421 = vadd.f32 %v3332, %v3420
        %3422 = vdwg.mxu0
        %3423 = vmatpush.bf16.msra.mxu0 %v2881
        %3424 = vmatpush.bf16.msra.mxu0 %v2880
        %3425 = vmatpush.bf16.msra.mxu0 %v2879
        %3426 = vmatpush.bf16.msra.mxu0 %v2878
        %3427 = vmatpush.bf16.msra.mxu0 %v2877
        %3428 = vmatpush.bf16.msra.mxu0 %v2876
        %3429 = vmatpush.bf16.msra.mxu0 %v2875
        %3430 = vmatpush.bf16.msra.mxu0 %v2874
        %3431 = vmatmul.bf16.gmra.mxu0 %v1874
        %v3432 = vpop.f32.mrf.mxu0
        %v3433 = vadd.f32 %v3344, %v3432
        %v3434 = vpop.f32.mrf.mxu0
        %v3435 = vadd.f32 %v3346, %v3434
        %3436 = vmatmul.bf16.gmra.mxu0 %v1877
        %v3437 = vpop.f32.mrf.mxu0
        %v3438 = vadd.f32 %v3349, %v3437
        %v3439 = vpop.f32.mrf.mxu0
        %v3440 = vadd.f32 %v3351, %v3439
        %3441 = vmatmul.bf16.gmra.mxu0 %v1880
        %v3442 = vpop.f32.mrf.mxu0
        %v3443 = vadd.f32 %v3354, %v3442
        %v3444 = vpop.f32.mrf.mxu0
        %v3445 = vadd.f32 %v3356, %v3444
        %3446 = vmatmul.bf16.gmra.mxu0 %v1883
        %v3447 = vpop.f32.mrf.mxu0
        %v3448 = vadd.f32 %v3359, %v3447
        %v3449 = vpop.f32.mrf.mxu0
        %v3450 = vadd.f32 %v3361, %v3449
        %3451 = vmatmul.bf16.gmra.mxu0 %v1886
        %v3452 = vpop.f32.mrf.mxu0
        %v3453 = vadd.f32 %v3364, %v3452
        %v3454 = vpop.f32.mrf.mxu0
        %v3455 = vadd.f32 %v3366, %v3454
        %3456 = vmatmul.bf16.gmra.mxu0 %v1889
        %v3457 = vpop.f32.mrf.mxu0
        %v3458 = vadd.f32 %v3369, %v3457
        %v3459 = vpop.f32.mrf.mxu0
        %v3460 = vadd.f32 %v3371, %v3459
        %3461 = vmatmul.bf16.gmra.mxu0 %v1892
        %v3462 = vpop.f32.mrf.mxu0
        %v3463 = vadd.f32 %v3374, %v3462
        %v3464 = vpop.f32.mrf.mxu0
        %v3465 = vadd.f32 %v3376, %v3464
        %3466 = vmatmul.bf16.gmra.mxu0 %v1895
        %v3467 = vpop.f32.mrf.mxu0
        %v3468 = vadd.f32 %v3379, %v3467
        %v3469 = vpop.f32.mrf.mxu0
        %v3470 = vadd.f32 %v3381, %v3469
        %3471 = vmatmul.bf16.gmra.mxu0 %v1898
        %v3472 = vpop.f32.mrf.mxu0
        %v3473 = vadd.f32 %v3384, %v3472
        %v3474 = vpop.f32.mrf.mxu0
        %v3475 = vadd.f32 %v3386, %v3474
        %3476 = vmatmul.bf16.gmra.mxu0 %v1901
        %v3477 = vpop.f32.mrf.mxu0
        %v3478 = vadd.f32 %v3389, %v3477
        %v3479 = vpop.f32.mrf.mxu0
        %v3480 = vadd.f32 %v3391, %v3479
        %3481 = vmatmul.bf16.gmra.mxu0 %v1904
        %v3482 = vpop.f32.mrf.mxu0
        %v3483 = vadd.f32 %v3394, %v3482
        %v3484 = vpop.f32.mrf.mxu0
        %v3485 = vadd.f32 %v3396, %v3484
        %3486 = vmatmul.bf16.gmra.mxu0 %v1907
        %v3487 = vpop.f32.mrf.mxu0
        %v3488 = vadd.f32 %v3399, %v3487
        %v3489 = vpop.f32.mrf.mxu0
        %v3490 = vadd.f32 %v3401, %v3489
        %3491 = vmatmul.bf16.gmra.mxu0 %v1910
        %v3492 = vpop.f32.mrf.mxu0
        %v3493 = vadd.f32 %v3404, %v3492
        %v3494 = vpop.f32.mrf.mxu0
        %v3495 = vadd.f32 %v3406, %v3494
        %3496 = vmatmul.bf16.gmra.mxu0 %v1913
        %v3497 = vpop.f32.mrf.mxu0
        %v3498 = vadd.f32 %v3409, %v3497
        %v3499 = vpop.f32.mrf.mxu0
        %v3500 = vadd.f32 %v3411, %v3499
        %3501 = vmatmul.bf16.gmra.mxu0 %v1916
        %v3502 = vpop.f32.mrf.mxu0
        %v3503 = vadd.f32 %v3414, %v3502
        %v3504 = vpop.f32.mrf.mxu0
        %v3505 = vadd.f32 %v3416, %v3504
        %3506 = vmatmul.bf16.gmra.mxu0 %v1919
        %v3507 = vpop.f32.mrf.mxu0
        %v3508 = vadd.f32 %v3419, %v3507
        %v3509 = vpop.f32.mrf.mxu0
        %v3510 = vadd.f32 %v3421, %v3509
        %3511 = vdwg.mxu0
        %3512 = vmatpush.bf16.msra.mxu0 %v2889
        %3513 = vmatpush.bf16.msra.mxu0 %v2888
        %3514 = vmatpush.bf16.msra.mxu0 %v2887
        %3515 = vmatpush.bf16.msra.mxu0 %v2886
        %3516 = vmatpush.bf16.msra.mxu0 %v2885
        %3517 = vmatpush.bf16.msra.mxu0 %v2884
        %3518 = vmatpush.bf16.msra.mxu0 %v2883
        %3519 = vmatpush.bf16.msra.mxu0 %v2882
        %3520 = vmatmul.bf16.gmra.mxu0 %v2000
        %v3521 = vpop.f32.mrf.mxu0
        %v3522 = vadd.f32 %v3433, %v3521
        %v3523 = vpop.f32.mrf.mxu0
        %v3524 = vadd.f32 %v3435, %v3523
        %3525 = vmatmul.bf16.gmra.mxu0 %v2001
        %v3526 = vpop.f32.mrf.mxu0
        %v3527 = vadd.f32 %v3438, %v3526
        %v3528 = vpop.f32.mrf.mxu0
        %v3529 = vadd.f32 %v3440, %v3528
        %3530 = vmatmul.bf16.gmra.mxu0 %v2002
        %v3531 = vpop.f32.mrf.mxu0
        %v3532 = vadd.f32 %v3443, %v3531
        %v3533 = vpop.f32.mrf.mxu0
        %v3534 = vadd.f32 %v3445, %v3533
        %3535 = vmatmul.bf16.gmra.mxu0 %v2003
        %v3536 = vpop.f32.mrf.mxu0
        %v3537 = vadd.f32 %v3448, %v3536
        %v3538 = vpop.f32.mrf.mxu0
        %v3539 = vadd.f32 %v3450, %v3538
        %3540 = vmatmul.bf16.gmra.mxu0 %v2004
        %v3541 = vpop.f32.mrf.mxu0
        %v3542 = vadd.f32 %v3453, %v3541
        %v3543 = vpop.f32.mrf.mxu0
        %v3544 = vadd.f32 %v3455, %v3543
        %3545 = vmatmul.bf16.gmra.mxu0 %v2005
        %v3546 = vpop.f32.mrf.mxu0
        %v3547 = vadd.f32 %v3458, %v3546
        %v3548 = vpop.f32.mrf.mxu0
        %v3549 = vadd.f32 %v3460, %v3548
        %3550 = vmatmul.bf16.gmra.mxu0 %v2006
        %v3551 = vpop.f32.mrf.mxu0
        %v3552 = vadd.f32 %v3463, %v3551
        %v3553 = vpop.f32.mrf.mxu0
        %v3554 = vadd.f32 %v3465, %v3553
        %3555 = vmatmul.bf16.gmra.mxu0 %v2007
        %v3556 = vpop.f32.mrf.mxu0
        %v3557 = vadd.f32 %v3468, %v3556
        %v3558 = vpop.f32.mrf.mxu0
        %v3559 = vadd.f32 %v3470, %v3558
        %3560 = vmatmul.bf16.gmra.mxu0 %v2008
        %v3561 = vpop.f32.mrf.mxu0
        %v3562 = vadd.f32 %v3473, %v3561
        %v3563 = vpop.f32.mrf.mxu0
        %v3564 = vadd.f32 %v3475, %v3563
        %3565 = vmatmul.bf16.gmra.mxu0 %v2009
        %v3566 = vpop.f32.mrf.mxu0
        %v3567 = vadd.f32 %v3478, %v3566
        %v3568 = vpop.f32.mrf.mxu0
        %v3569 = vadd.f32 %v3480, %v3568
        %3570 = vmatmul.bf16.gmra.mxu0 %v2010
        %v3571 = vpop.f32.mrf.mxu0
        %v3572 = vadd.f32 %v3483, %v3571
        %v3573 = vpop.f32.mrf.mxu0
        %v3574 = vadd.f32 %v3485, %v3573
        %3575 = vmatmul.bf16.gmra.mxu0 %v2011
        %v3576 = vpop.f32.mrf.mxu0
        %v3577 = vadd.f32 %v3488, %v3576
        %v3578 = vpop.f32.mrf.mxu0
        %v3579 = vadd.f32 %v3490, %v3578
        %3580 = vmatmul.bf16.gmra.mxu0 %v2012
        %v3581 = vpop.f32.mrf.mxu0
        %v3582 = vadd.f32 %v3493, %v3581
        %v3583 = vpop.f32.mrf.mxu0
        %v3584 = vadd.f32 %v3495, %v3583
        %3585 = vmatmul.bf16.gmra.mxu0 %v2013
        %v3586 = vpop.f32.mrf.mxu0
        %v3587 = vadd.f32 %v3498, %v3586
        %v3588 = vpop.f32.mrf.mxu0
        %v3589 = vadd.f32 %v3500, %v3588
        %3590 = vmatmul.bf16.gmra.mxu0 %v2014
        %v3591 = vpop.f32.mrf.mxu0
        %v3592 = vadd.f32 %v3503, %v3591
        %v3593 = vpop.f32.mrf.mxu0
        %v3594 = vadd.f32 %v3505, %v3593
        %3595 = vmatmul.bf16.gmra.mxu0 %v2015
        %v3596 = vpop.f32.mrf.mxu0
        %v3597 = vadd.f32 %v3508, %v3596
        %v3598 = vpop.f32.mrf.mxu0
        %v3599 = vadd.f32 %v3510, %v3598
        %3600 = vdwg.mxu0
        %3601 = vmatpush.bf16.msra.mxu0 %v2897
        %3602 = vmatpush.bf16.msra.mxu0 %v2896
        %3603 = vmatpush.bf16.msra.mxu0 %v2895
        %3604 = vmatpush.bf16.msra.mxu0 %v2894
        %3605 = vmatpush.bf16.msra.mxu0 %v2893
        %3606 = vmatpush.bf16.msra.mxu0 %v2892
        %3607 = vmatpush.bf16.msra.mxu0 %v2891
        %3608 = vmatpush.bf16.msra.mxu0 %v2890
        %3609 = vmatmul.bf16.gmra.mxu0 %v2091
        %v3610 = vpop.f32.mrf.mxu0
        %v3611 = vadd.f32 %v3522, %v3610
        %v3612 = vpop.f32.mrf.mxu0
        %v3613 = vadd.f32 %v3524, %v3612
        %3614 = vmatmul.bf16.gmra.mxu0 %v2103
        %v3615 = vpop.f32.mrf.mxu0
        %v3616 = vadd.f32 %v3527, %v3615
        %v3617 = vpop.f32.mrf.mxu0
        %v3618 = vadd.f32 %v3529, %v3617
        %3619 = vmatmul.bf16.gmra.mxu0 %v2115
        %v3620 = vpop.f32.mrf.mxu0
        %v3621 = vadd.f32 %v3532, %v3620
        %v3622 = vpop.f32.mrf.mxu0
        %v3623 = vadd.f32 %v3534, %v3622
        %3624 = vmatmul.bf16.gmra.mxu0 %v2127
        %v3625 = vpop.f32.mrf.mxu0
        %v3626 = vadd.f32 %v3537, %v3625
        %v3627 = vpop.f32.mrf.mxu0
        %v3628 = vadd.f32 %v3539, %v3627
        %3629 = vmatmul.bf16.gmra.mxu0 %v2139
        %v3630 = vpop.f32.mrf.mxu0
        %v3631 = vadd.f32 %v3542, %v3630
        %v3632 = vpop.f32.mrf.mxu0
        %v3633 = vadd.f32 %v3544, %v3632
        %3634 = vmatmul.bf16.gmra.mxu0 %v2151
        %v3635 = vpop.f32.mrf.mxu0
        %v3636 = vadd.f32 %v3547, %v3635
        %v3637 = vpop.f32.mrf.mxu0
        %v3638 = vadd.f32 %v3549, %v3637
        %3639 = vmatmul.bf16.gmra.mxu0 %v2163
        %v3640 = vpop.f32.mrf.mxu0
        %v3641 = vadd.f32 %v3552, %v3640
        %v3642 = vpop.f32.mrf.mxu0
        %v3643 = vadd.f32 %v3554, %v3642
        %3644 = vmatmul.bf16.gmra.mxu0 %v2175
        %v3645 = vpop.f32.mrf.mxu0
        %v3646 = vadd.f32 %v3557, %v3645
        %v3647 = vpop.f32.mrf.mxu0
        %v3648 = vadd.f32 %v3559, %v3647
        %3649 = vmatmul.bf16.gmra.mxu0 %v2187
        %v3650 = vpop.f32.mrf.mxu0
        %v3651 = vadd.f32 %v3562, %v3650
        %v3652 = vpop.f32.mrf.mxu0
        %v3653 = vadd.f32 %v3564, %v3652
        %3654 = vmatmul.bf16.gmra.mxu0 %v2199
        %v3655 = vpop.f32.mrf.mxu0
        %v3656 = vadd.f32 %v3567, %v3655
        %v3657 = vpop.f32.mrf.mxu0
        %v3658 = vadd.f32 %v3569, %v3657
        %3659 = vmatmul.bf16.gmra.mxu0 %v2211
        %v3660 = vpop.f32.mrf.mxu0
        %v3661 = vadd.f32 %v3572, %v3660
        %v3662 = vpop.f32.mrf.mxu0
        %v3663 = vadd.f32 %v3574, %v3662
        %3664 = vmatmul.bf16.gmra.mxu0 %v2223
        %v3665 = vpop.f32.mrf.mxu0
        %v3666 = vadd.f32 %v3577, %v3665
        %v3667 = vpop.f32.mrf.mxu0
        %v3668 = vadd.f32 %v3579, %v3667
        %3669 = vmatmul.bf16.gmra.mxu0 %v2235
        %v3670 = vpop.f32.mrf.mxu0
        %v3671 = vadd.f32 %v3582, %v3670
        %v3672 = vpop.f32.mrf.mxu0
        %v3673 = vadd.f32 %v3584, %v3672
        %3674 = vmatmul.bf16.gmra.mxu0 %v2247
        %v3675 = vpop.f32.mrf.mxu0
        %v3676 = vadd.f32 %v3587, %v3675
        %v3677 = vpop.f32.mrf.mxu0
        %v3678 = vadd.f32 %v3589, %v3677
        %3679 = vmatmul.bf16.gmra.mxu0 %v2259
        %v3680 = vpop.f32.mrf.mxu0
        %v3681 = vadd.f32 %v3592, %v3680
        %v3682 = vpop.f32.mrf.mxu0
        %v3683 = vadd.f32 %v3594, %v3682
        %3684 = vmatmul.bf16.gmra.mxu0 %v2271
        %v3685 = vpop.f32.mrf.mxu0
        %v3686 = vadd.f32 %v3597, %v3685
        %v3687 = vpop.f32.mrf.mxu0
        %v3688 = vadd.f32 %v3599, %v3687
        %3689 = vdwg.mxu0
        %3690 = vmatpush.bf16.msra.mxu0 %v2905
        %3691 = vmatpush.bf16.msra.mxu0 %v2904
        %3692 = vmatpush.bf16.msra.mxu0 %v2903
        %3693 = vmatpush.bf16.msra.mxu0 %v2902
        %3694 = vmatpush.bf16.msra.mxu0 %v2901
        %3695 = vmatpush.bf16.msra.mxu0 %v2900
        %3696 = vmatpush.bf16.msra.mxu0 %v2899
        %3697 = vmatpush.bf16.msra.mxu0 %v2898
        %3698 = vmatmul.bf16.gmra.mxu0 %v2338
        %v3699 = vpop.f32.mrf.mxu0
        %v3700 = vadd.f32 %v3611, %v3699
        %v3701 = vpop.f32.mrf.mxu0
        %v3702 = vadd.f32 %v3613, %v3701
        %3703 = vmatmul.bf16.gmra.mxu0 %v2341
        %v3704 = vpop.f32.mrf.mxu0
        %v3705 = vadd.f32 %v3616, %v3704
        %v3706 = vpop.f32.mrf.mxu0
        %v3707 = vadd.f32 %v3618, %v3706
        %3708 = vmatmul.bf16.gmra.mxu0 %v2344
        %v3709 = vpop.f32.mrf.mxu0
        %v3710 = vadd.f32 %v3621, %v3709
        %v3711 = vpop.f32.mrf.mxu0
        %v3712 = vadd.f32 %v3623, %v3711
        %3713 = vmatmul.bf16.gmra.mxu0 %v2347
        %v3714 = vpop.f32.mrf.mxu0
        %v3715 = vadd.f32 %v3626, %v3714
        %v3716 = vpop.f32.mrf.mxu0
        %v3717 = vadd.f32 %v3628, %v3716
        %3718 = vmatmul.bf16.gmra.mxu0 %v2350
        %v3719 = vpop.f32.mrf.mxu0
        %v3720 = vadd.f32 %v3631, %v3719
        %v3721 = vpop.f32.mrf.mxu0
        %v3722 = vadd.f32 %v3633, %v3721
        %3723 = vmatmul.bf16.gmra.mxu0 %v2353
        %v3724 = vpop.f32.mrf.mxu0
        %v3725 = vadd.f32 %v3636, %v3724
        %v3726 = vpop.f32.mrf.mxu0
        %v3727 = vadd.f32 %v3638, %v3726
        %3728 = vmatmul.bf16.gmra.mxu0 %v2356
        %v3729 = vpop.f32.mrf.mxu0
        %v3730 = vadd.f32 %v3641, %v3729
        %v3731 = vpop.f32.mrf.mxu0
        %v3732 = vadd.f32 %v3643, %v3731
        %3733 = vmatmul.bf16.gmra.mxu0 %v2359
        %v3734 = vpop.f32.mrf.mxu0
        %v3735 = vadd.f32 %v3646, %v3734
        %v3736 = vpop.f32.mrf.mxu0
        %v3737 = vadd.f32 %v3648, %v3736
        %3738 = vmatmul.bf16.gmra.mxu0 %v2362
        %v3739 = vpop.f32.mrf.mxu0
        %v3740 = vadd.f32 %v3651, %v3739
        %v3741 = vpop.f32.mrf.mxu0
        %v3742 = vadd.f32 %v3653, %v3741
        %3743 = vmatmul.bf16.gmra.mxu0 %v2365
        %v3744 = vpop.f32.mrf.mxu0
        %v3745 = vadd.f32 %v3656, %v3744
        %v3746 = vpop.f32.mrf.mxu0
        %v3747 = vadd.f32 %v3658, %v3746
        %3748 = vmatmul.bf16.gmra.mxu0 %v2368
        %v3749 = vpop.f32.mrf.mxu0
        %v3750 = vadd.f32 %v3661, %v3749
        %v3751 = vpop.f32.mrf.mxu0
        %v3752 = vadd.f32 %v3663, %v3751
        %3753 = vmatmul.bf16.gmra.mxu0 %v2371
        %v3754 = vpop.f32.mrf.mxu0
        %v3755 = vadd.f32 %v3666, %v3754
        %v3756 = vpop.f32.mrf.mxu0
        %v3757 = vadd.f32 %v3668, %v3756
        %3758 = vmatmul.bf16.gmra.mxu0 %v2374
        %v3759 = vpop.f32.mrf.mxu0
        %v3760 = vadd.f32 %v3671, %v3759
        %v3761 = vpop.f32.mrf.mxu0
        %v3762 = vadd.f32 %v3673, %v3761
        %3763 = vmatmul.bf16.gmra.mxu0 %v2377
        %v3764 = vpop.f32.mrf.mxu0
        %v3765 = vadd.f32 %v3676, %v3764
        %v3766 = vpop.f32.mrf.mxu0
        %v3767 = vadd.f32 %v3678, %v3766
        %3768 = vmatmul.bf16.gmra.mxu0 %v2380
        %v3769 = vpop.f32.mrf.mxu0
        %v3770 = vadd.f32 %v3681, %v3769
        %v3771 = vpop.f32.mrf.mxu0
        %v3772 = vadd.f32 %v3683, %v3771
        %3773 = vmatmul.bf16.gmra.mxu0 %v2383
        %v3774 = vpop.f32.mrf.mxu0
        %v3775 = vadd.f32 %v3686, %v3774
        %v3776 = vpop.f32.mrf.mxu0
        %v3777 = vadd.f32 %v3688, %v3776
        %3778 = vdwg.mxu0
        %v3779 = vmax.f32 %v3700, 0.0
        %v3780 = vmax.f32 %v3702, 0.0
        %v3781 = vmax.f32 %v3705, 0.0
        %v3782 = vmax.f32 %v3707, 0.0
        %v3783 = vmax.f32 %v3710, 0.0
        %v3784 = vmax.f32 %v3712, 0.0
        %v3785 = vmax.f32 %v3715, 0.0
        %v3786 = vmax.f32 %v3717, 0.0
        %v3787 = vmax.f32 %v3720, 0.0
        %v3788 = vmax.f32 %v3722, 0.0
        %v3789 = vmax.f32 %v3725, 0.0
        %v3790 = vmax.f32 %v3727, 0.0
        %v3791 = vmax.f32 %v3730, 0.0
        %v3792 = vmax.f32 %v3732, 0.0
        %v3793 = vmax.f32 %v3735, 0.0
        %v3794 = vmax.f32 %v3737, 0.0
        %v3795 = vmax.f32 %v3740, 0.0
        %v3796 = vmax.f32 %v3742, 0.0
        %v3797 = vmax.f32 %v3745, 0.0
        %v3798 = vmax.f32 %v3747, 0.0
        %v3799 = vmax.f32 %v3750, 0.0
        %v3800 = vmax.f32 %v3752, 0.0
        %v3801 = vmax.f32 %v3755, 0.0
        %v3802 = vmax.f32 %v3757, 0.0
        %v3803 = vmax.f32 %v3760, 0.0
        %v3804 = vmax.f32 %v3762, 0.0
        %v3805 = vmax.f32 %v3765, 0.0
        %v3806 = vmax.f32 %v3767, 0.0
        %v3807 = vmax.f32 %v3770, 0.0
        %v3808 = vmax.f32 %v3772, 0.0
        %v3809 = vmax.f32 %v3775, 0.0
        %v3810 = vmax.f32 %v3777, 0.0
        %v3811 = vpack.c.bf16 %v3779, %v3779
        %v3812 = vpack.c.bf16 %v3780, %v3780
        %v3813 = vpack.c.bf16 %v3781, %v3781
        %v3814 = vpack.c.bf16 %v3782, %v3782
        %v3815 = vpack.c.bf16 %v3783, %v3783
        %v3816 = vpack.c.bf16 %v3784, %v3784
        %v3817 = vpack.c.bf16 %v3785, %v3785
        %v3818 = vpack.c.bf16 %v3786, %v3786
        %v3819 = vpack.c.bf16 %v3787, %v3787
        %v3820 = vpack.c.bf16 %v3788, %v3788
        %v3821 = vpack.c.bf16 %v3789, %v3789
        %v3822 = vpack.c.bf16 %v3790, %v3790
        %v3823 = vpack.c.bf16 %v3791, %v3791
        %v3824 = vpack.c.bf16 %v3792, %v3792
        %v3825 = vpack.c.bf16 %v3793, %v3793
        %v3826 = vpack.c.bf16 %v3794, %v3794
        %v3827 = vpack.c.bf16 %v3795, %v3795
        %v3828 = vpack.c.bf16 %v3796, %v3796
        %v3829 = vpack.c.bf16 %v3797, %v3797
        %v3830 = vpack.c.bf16 %v3798, %v3798
        %v3831 = vpack.c.bf16 %v3799, %v3799
        %v3832 = vpack.c.bf16 %v3800, %v3800
        %v3833 = vpack.c.bf16 %v3801, %v3801
        %v3834 = vpack.c.bf16 %v3802, %v3802
        %v3835 = vpack.c.bf16 %v3803, %v3803
        %v3836 = vpack.c.bf16 %v3804, %v3804
        %v3837 = vpack.c.bf16 %v3805, %v3805
        %v3838 = vpack.c.bf16 %v3806, %v3806
        %v3839 = vpack.c.bf16 %v3807, %v3807
        %v3840 = vpack.c.bf16 %v3808, %v3808
        %v3841 = vpack.c.bf16 %v3809, %v3809
        %v3842 = vpack.c.bf16 %v3810, %v3810
        %v3875 = vunpack.c.l.b16 %v3811
        %v3876 = vunpack.c.l.b16 %v3812
        %v3877 = vunpack.c.l.b16 %v3813
        %v3878 = vunpack.c.l.b16 %v3814
        %v3879 = vunpack.c.l.b16 %v3815
        %v3880 = vunpack.c.l.b16 %v3816
        %v3881 = vunpack.c.l.b16 %v3817
        %v3882 = vunpack.c.l.b16 %v3818
        %v3883 = vunpack.c.l.b16 %v3819
        %v3884 = vunpack.c.l.b16 %v3820
        %v3885 = vunpack.c.l.b16 %v3821
        %v3886 = vunpack.c.l.b16 %v3822
        %v3887 = vunpack.c.l.b16 %v3823
        %v3888 = vunpack.c.l.b16 %v3824
        %v3889 = vunpack.c.l.b16 %v3825
        %v3890 = vunpack.c.l.b16 %v3826
        %v3891 = vunpack.c.l.b16 %v3827
        %v3892 = vunpack.c.l.b16 %v3828
        %v3893 = vunpack.c.l.b16 %v3829
        %v3894 = vunpack.c.l.b16 %v3830
        %v3895 = vunpack.c.l.b16 %v3831
        %v3896 = vunpack.c.l.b16 %v3832
        %v3897 = vunpack.c.l.b16 %v3833
        %v3898 = vunpack.c.l.b16 %v3834
        %v3899 = vunpack.c.l.b16 %v3835
        %v3900 = vunpack.c.l.b16 %v3836
        %v3901 = vunpack.c.l.b16 %v3837
        %v3902 = vunpack.c.l.b16 %v3838
        %v3903 = vunpack.c.l.b16 %v3839
        %v3904 = vunpack.c.l.b16 %v3840
        %v3905 = vunpack.c.l.b16 %v3841
        %v3906 = vunpack.c.l.b16 %v3842
        %v3907 = vpack.c.b16 %v3876, %v3875
        %v3908 = vpack.c.b16 %v3878, %v3877
        %v3909 = vpack.c.b16 %v3880, %v3879
        %v3910 = vpack.c.b16 %v3882, %v3881
        %v3911 = vpack.c.b16 %v3884, %v3883
        %v3912 = vpack.c.b16 %v3886, %v3885
        %v3913 = vpack.c.b16 %v3888, %v3887
        %v3914 = vpack.c.b16 %v3890, %v3889
        %v3915 = vpack.c.b16 %v3892, %v3891
        %v3916 = vpack.c.b16 %v3894, %v3893
        %v3917 = vpack.c.b16 %v3896, %v3895
        %v3918 = vpack.c.b16 %v3898, %v3897
        %v3919 = vpack.c.b16 %v3900, %v3899
        %v3920 = vpack.c.b16 %v3902, %v3901
        %v3921 = vpack.c.b16 %v3904, %v3903
        %v3922 = vpack.c.b16 %v3906, %v3905
        %v3924 = vshrl.u32 %v3907, 16
        %v3926 = vrot.slane %v3924, 7
        %v3927 = vshll.u32 %v3907, 16
        %v3929 = vor.u32 %v3926, %v3927
        %v3931 = vshrl.u32 %v3908, 16
        %v3933 = vrot.slane %v3931, 7
        %v3934 = vshll.u32 %v3908, 16
        %v3936 = vor.u32 %v3933, %v3934
        %v3938 = vshrl.u32 %v3909, 16
        %v3940 = vrot.slane %v3938, 7
        %v3941 = vshll.u32 %v3909, 16
        %v3943 = vor.u32 %v3940, %v3941
        %v3945 = vshrl.u32 %v3910, 16
        %v3947 = vrot.slane %v3945, 7
        %v3948 = vshll.u32 %v3910, 16
        %v3950 = vor.u32 %v3947, %v3948
        %v3952 = vshrl.u32 %v3911, 16
        %v3954 = vrot.slane %v3952, 7
        %v3955 = vshll.u32 %v3911, 16
        %v3957 = vor.u32 %v3954, %v3955
        %v3959 = vshrl.u32 %v3912, 16
        %v3961 = vrot.slane %v3959, 7
        %v3962 = vshll.u32 %v3912, 16
        %v3964 = vor.u32 %v3961, %v3962
        %v3966 = vshrl.u32 %v3913, 16
        %v3968 = vrot.slane %v3966, 7
        %v3969 = vshll.u32 %v3913, 16
        %v3971 = vor.u32 %v3968, %v3969
        %v3973 = vshrl.u32 %v3914, 16
        %v3975 = vrot.slane %v3973, 7
        %v3976 = vshll.u32 %v3914, 16
        %v3978 = vor.u32 %v3975, %v3976
        %v3980 = vshrl.u32 %v3915, 16
        %v3982 = vrot.slane %v3980, 7
        %v3983 = vshll.u32 %v3915, 16
        %v3985 = vor.u32 %v3982, %v3983
        %v3987 = vshrl.u32 %v3916, 16
        %v3989 = vrot.slane %v3987, 7
        %v3990 = vshll.u32 %v3916, 16
        %v3992 = vor.u32 %v3989, %v3990
        %v3994 = vshrl.u32 %v3917, 16
        %v3996 = vrot.slane %v3994, 7
        %v3997 = vshll.u32 %v3917, 16
        %v3999 = vor.u32 %v3996, %v3997
        %v4001 = vshrl.u32 %v3918, 16
        %v4003 = vrot.slane %v4001, 7
        %v4004 = vshll.u32 %v3918, 16
        %v4006 = vor.u32 %v4003, %v4004
        %v4008 = vshrl.u32 %v3919, 16
        %v4010 = vrot.slane %v4008, 7
        %v4011 = vshll.u32 %v3919, 16
        %v4013 = vor.u32 %v4010, %v4011
        %v4015 = vshrl.u32 %v3920, 16
        %v4017 = vrot.slane %v4015, 7
        %v4018 = vshll.u32 %v3920, 16
        %v4020 = vor.u32 %v4017, %v4018
        %v4022 = vshrl.u32 %v3921, 16
        %v4024 = vrot.slane %v4022, 7
        %v4025 = vshll.u32 %v3921, 16
        %v4027 = vor.u32 %v4024, %v4025
        %v4029 = vshrl.u32 %v3922, 16
        %v4031 = vrot.slane %v4029, 7
        %v4032 = vshll.u32 %v3922, 16
        %v4034 = vor.u32 %v4031, %v4032
        %v4067 = vsel %vm542, 0, %v3929
        %v4068 = vsel %vm542, 0, %v3936
        %v4069 = vsel %vm542, 0, %v3943
        %v4070 = vsel %vm542, 0, %v3950
        %v4071 = vsel %vm542, 0, %v3957
        %v4072 = vsel %vm542, 0, %v3964
        %v4073 = vsel %vm542, 0, %v3971
        %v4074 = vsel %vm542, 0, %v3978
        %v4075 = vsel %vm542, 0, %v3985
        %v4076 = vsel %vm542, 0, %v3992
        %v4077 = vsel %vm542, 0, %v3999
        %v4078 = vsel %vm542, 0, %v4006
        %v4079 = vsel %vm542, 0, %v4013
        %v4080 = vsel %vm542, 0, %v4020
        %v4081 = vsel %vm542, 0, %v4027
        %v4082 = vsel %vm542, 0, %v4034
        %v4083 = vsel %vm542, %v3926, 0
        %v4084 = vsel %vm542, %v3933, 0
        %v4085 = vsel %vm542, %v3940, 0
        %v4086 = vsel %vm542, %v3947, 0
        %v4087 = vsel %vm542, %v3954, 0
        %v4088 = vsel %vm542, %v3961, 0
        %v4089 = vsel %vm542, %v3968, 0
        %v4090 = vsel %vm542, %v3975, 0
        %v4091 = vsel %vm542, %v3982, 0
        %v4092 = vsel %vm542, %v3989, 0
        %v4093 = vsel %vm542, %v3996, 0
        %v4094 = vsel %vm542, %v4003, 0
        %v4095 = vsel %vm542, %v4010, 0
        %v4096 = vsel %vm542, %v4017, 0
        %v4097 = vsel %vm542, %v4024, 0
        %v4098 = vsel %vm542, %v4031, 0
        %v4131 = vunpack.c.l.b16 %v4067
        %v4132 = vunpack.c.h.b16 %v4067
        %v4133 = vunpack.c.l.b16 %v4083
        %v4134 = vunpack.c.l.b16 %v4068
        %v4135 = vunpack.c.h.b16 %v4068
        %v4136 = vunpack.c.l.b16 %v4084
        %v4137 = vunpack.c.l.b16 %v4069
        %v4138 = vunpack.c.h.b16 %v4069
        %v4139 = vunpack.c.l.b16 %v4085
        %v4140 = vunpack.c.l.b16 %v4070
        %v4141 = vunpack.c.h.b16 %v4070
        %v4142 = vunpack.c.l.b16 %v4086
        %v4143 = vunpack.c.l.b16 %v4071
        %v4144 = vunpack.c.h.b16 %v4071
        %v4145 = vunpack.c.l.b16 %v4087
        %v4146 = vunpack.c.l.b16 %v4072
        %v4147 = vunpack.c.h.b16 %v4072
        %v4148 = vunpack.c.l.b16 %v4088
        %v4149 = vunpack.c.l.b16 %v4073
        %v4150 = vunpack.c.h.b16 %v4073
        %v4151 = vunpack.c.l.b16 %v4089
        %v4152 = vunpack.c.l.b16 %v4074
        %v4153 = vunpack.c.h.b16 %v4074
        %v4154 = vunpack.c.l.b16 %v4090
        %v4155 = vunpack.c.l.b16 %v4075
        %v4156 = vunpack.c.h.b16 %v4075
        %v4157 = vunpack.c.l.b16 %v4091
        %v4158 = vunpack.c.l.b16 %v4076
        %v4159 = vunpack.c.h.b16 %v4076
        %v4160 = vunpack.c.l.b16 %v4092
        %v4161 = vunpack.c.l.b16 %v4077
        %v4162 = vunpack.c.h.b16 %v4077
        %v4163 = vunpack.c.l.b16 %v4093
        %v4164 = vunpack.c.l.b16 %v4078
        %v4165 = vunpack.c.h.b16 %v4078
        %v4166 = vunpack.c.l.b16 %v4094
        %v4167 = vunpack.c.l.b16 %v4079
        %v4168 = vunpack.c.h.b16 %v4079
        %v4169 = vunpack.c.l.b16 %v4095
        %v4170 = vunpack.c.l.b16 %v4080
        %v4171 = vunpack.c.h.b16 %v4080
        %v4172 = vunpack.c.l.b16 %v4096
        %v4173 = vunpack.c.l.b16 %v4081
        %v4174 = vunpack.c.h.b16 %v4081
        %v4175 = vunpack.c.l.b16 %v4097
        %v4176 = vunpack.c.l.b16 %v4082
        %v4177 = vunpack.c.h.b16 %v4082
        %v4178 = vunpack.c.l.b16 %v4098
        %v4179 = vpack.c.b16 %v4131, %v4131
        %v4180 = vpack.c.b16 %v4132, %v4132
        %v4181 = vpack.c.b16 %v4133, %v4133
        %v4182 = vpack.c.b16 %v4134, %v4134
        %v4183 = vpack.c.b16 %v4135, %v4135
        %v4184 = vpack.c.b16 %v4136, %v4136
        %v4185 = vpack.c.b16 %v4137, %v4137
        %v4186 = vpack.c.b16 %v4138, %v4138
        %v4187 = vpack.c.b16 %v4139, %v4139
        %v4188 = vpack.c.b16 %v4140, %v4140
        %v4189 = vpack.c.b16 %v4141, %v4141
        %v4190 = vpack.c.b16 %v4142, %v4142
        %v4191 = vpack.c.b16 %v4143, %v4143
        %v4192 = vpack.c.b16 %v4144, %v4144
        %v4193 = vpack.c.b16 %v4145, %v4145
        %v4194 = vpack.c.b16 %v4146, %v4146
        %v4195 = vpack.c.b16 %v4147, %v4147
        %v4196 = vpack.c.b16 %v4148, %v4148
        %v4197 = vpack.c.b16 %v4149, %v4149
        %v4198 = vpack.c.b16 %v4150, %v4150
        %v4199 = vpack.c.b16 %v4151, %v4151
        %v4200 = vpack.c.b16 %v4152, %v4152
        %v4201 = vpack.c.b16 %v4153, %v4153
        %v4202 = vpack.c.b16 %v4154, %v4154
        %v4203 = vpack.c.b16 %v4155, %v4155
        %v4204 = vpack.c.b16 %v4156, %v4156
        %v4205 = vpack.c.b16 %v4157, %v4157
        %v4206 = vpack.c.b16 %v4158, %v4158
        %v4207 = vpack.c.b16 %v4159, %v4159
        %v4208 = vpack.c.b16 %v4160, %v4160
        %v4209 = vpack.c.b16 %v4161, %v4161
        %v4210 = vpack.c.b16 %v4162, %v4162
        %v4211 = vpack.c.b16 %v4163, %v4163
        %v4212 = vpack.c.b16 %v4164, %v4164
        %v4213 = vpack.c.b16 %v4165, %v4165
        %v4214 = vpack.c.b16 %v4166, %v4166
        %v4215 = vpack.c.b16 %v4167, %v4167
        %v4216 = vpack.c.b16 %v4168, %v4168
        %v4217 = vpack.c.b16 %v4169, %v4169
        %v4218 = vpack.c.b16 %v4170, %v4170
        %v4219 = vpack.c.b16 %v4171, %v4171
        %v4220 = vpack.c.b16 %v4172, %v4172
        %v4221 = vpack.c.b16 %v4173, %v4173
        %v4222 = vpack.c.b16 %v4174, %v4174
        %v4223 = vpack.c.b16 %v4175, %v4175
        %v4224 = vpack.c.b16 %v4176, %v4176
        %v4225 = vpack.c.b16 %v4177, %v4177
        %v4226 = vpack.c.b16 %v4178, %v4178
        %4275 = vst [vmem:[#allocation2] sm:$0xf] %v658
        %4276 = vst [vmem:[#allocation2 + $0x4] sm:$0xf] %v659
        %4277 = vst [vmem:[#allocation2 + $0x8] sm:$0x1] %v658
        %4278 = vst [vmem:[#allocation2 + $0xc] sm:$0xf] %v4179
        %4279 = vst [vmem:[#allocation2 + $0x10] sm:$0xf] %v4180
        %4280 = vst [vmem:[#allocation2 + $0x14] sm:$0x1] %v4181
        %4281 = vst [vmem:[#allocation2 + $0x18] sm:$0xf] %v4182
        %4282 = vst [vmem:[#allocation2 + $0x1c] sm:$0xf] %v4183
        %4283 = vst [vmem:[#allocation2 + $0x20] sm:$0x1] %v4184
        %4284 = vst [vmem:[#allocation2 + $0x24] sm:$0xf] %v4185
        %4285 = vst [vmem:[#allocation2 + $0x28] sm:$0xf] %v4186
        %4286 = vst [vmem:[#allocation2 + $0x2c] sm:$0x1] %v4187
        %4287 = vst [vmem:[#allocation2 + $0x30] sm:$0xf] %v4188
        %4288 = vst [vmem:[#allocation2 + $0x34] sm:$0xf] %v4189
        %4289 = vst [vmem:[#allocation2 + $0x38] sm:$0x1] %v4190
        %4290 = vst [vmem:[#allocation2 + $0x3c] sm:$0xf] %v4191
        %4291 = vst [vmem:[#allocation2 + $0x40] sm:$0xf] %v4192
        %4292 = vst [vmem:[#allocation2 + $0x44] sm:$0x1] %v4193
        %4293 = vst [vmem:[#allocation2 + $0x48] sm:$0xf] %v4194
        %4294 = vst [vmem:[#allocation2 + $0x4c] sm:$0xf] %v4195
        %4295 = vst [vmem:[#allocation2 + $0x50] sm:$0x1] %v4196
        %4296 = vst [vmem:[#allocation2 + $0x54] sm:$0xf] %v4197
        %4297 = vst [vmem:[#allocation2 + $0x58] sm:$0xf] %v4198
        %4298 = vst [vmem:[#allocation2 + $0x5c] sm:$0x1] %v4199
        %4299 = vst [vmem:[#allocation2 + $0x60] sm:$0xf] %v4200
        %4300 = vst [vmem:[#allocation2 + $0x64] sm:$0xf] %v4201
        %4301 = vst [vmem:[#allocation2 + $0x68] sm:$0x1] %v4202
        %4302 = vst [vmem:[#allocation2 + $0x6c] sm:$0xf] %v4203
        %4303 = vst [vmem:[#allocation2 + $0x70] sm:$0xf] %v4204
        %4304 = vst [vmem:[#allocation2 + $0x74] sm:$0x1] %v4205
        %4305 = vst [vmem:[#allocation2 + $0x78] sm:$0xf] %v4206
        %4306 = vst [vmem:[#allocation2 + $0x7c] sm:$0xf] %v4207
        %4307 = vst [vmem:[#allocation2 + $0x80] sm:$0x1] %v4208
        %4308 = vst [vmem:[#allocation2 + $0x84] sm:$0xf] %v4209
        %4309 = vst [vmem:[#allocation2 + $0x88] sm:$0xf] %v4210
        %4310 = vst [vmem:[#allocation2 + $0x8c] sm:$0x1] %v4211
        %4311 = vst [vmem:[#allocation2 + $0x90] sm:$0xf] %v4212
        %4312 = vst [vmem:[#allocation2 + $0x94] sm:$0xf] %v4213
        %4313 = vst [vmem:[#allocation2 + $0x98] sm:$0x1] %v4214
        %4314 = vst [vmem:[#allocation2 + $0x9c] sm:$0xf] %v4215
        %4315 = vst [vmem:[#allocation2 + $0xa0] sm:$0xf] %v4216
        %4316 = vst [vmem:[#allocation2 + $0xa4] sm:$0x1] %v4217
        %4317 = vst [vmem:[#allocation2 + $0xa8] sm:$0xf] %v4218
        %4318 = vst [vmem:[#allocation2 + $0xac] sm:$0xf] %v4219
        %4319 = vst [vmem:[#allocation2 + $0xb0] sm:$0x1] %v4220
        %4320 = vst [vmem:[#allocation2 + $0xb4] sm:$0xf] %v4221
        %4321 = vst [vmem:[#allocation2 + $0xb8] sm:$0xf] %v4222
        %4322 = vst [vmem:[#allocation2 + $0xbc] sm:$0x1] %v4223
        %4323 = vst [vmem:[#allocation2 + $0xc0] sm:$0xf] %v4224
        %4324 = vst [vmem:[#allocation2 + $0xc4] sm:$0xf] %v4225
        %4325 = vst [vmem:[#allocation2 + $0xc8] sm:$0x1] %v4226
        %4326 = vst [vmem:[#allocation2 + $0xcc] sm:$0xf] %v658
        %4327 = vst [vmem:[#allocation2 + $0xd0] sm:$0xf] %v659
        %4328 = vst [vmem:[#allocation2 + $0xd4] sm:$0x1] %v658
        %v4329 = vld [vmem:[#allocation2] sm:$0xf]
        %v4330 = vld [vmem:[#allocation2 + $0x4] sm:$0xf]
        %v4331 = vld [vmem:[#allocation2 + $0xc] sm:$0xf]
        %v4332 = vld [vmem:[#allocation2 + $0x10] sm:$0xf]
        %v4333 = vld [vmem:[#allocation2 + $0x18] sm:$0xf]
        %v4334 = vld [vmem:[#allocation2 + $0x1c] sm:$0xf]
        %v4335 = vld [vmem:[#allocation2 + $0x24] sm:$0xf]
        %v4336 = vld [vmem:[#allocation2 + $0x28] sm:$0xf]
        %v4337 = vld [vmem:[#allocation2 + $0x30] sm:$0xf]
        %v4338 = vld [vmem:[#allocation2 + $0x34] sm:$0xf]
        %v4339 = vld [vmem:[#allocation2 + $0x3c] sm:$0xf]
        %v4340 = vld [vmem:[#allocation2 + $0x40] sm:$0xf]
        %v4341 = vld [vmem:[#allocation2 + $0x48] sm:$0xf]
        %v4342 = vld [vmem:[#allocation2 + $0x4c] sm:$0xf]
        %v4343 = vld [vmem:[#allocation2 + $0x54] sm:$0xf]
        %v4344 = vld [vmem:[#allocation2 + $0x58] sm:$0xf]
        %v4345 = vld [vmem:[#allocation2 + $0x60] sm:$0xf]
        %v4346 = vld [vmem:[#allocation2 + $0x64] sm:$0xf]
        %v4347 = vld [vmem:[#allocation2 + $0x6c] sm:$0xf]
        %v4348 = vld [vmem:[#allocation2 + $0x70] sm:$0xf]
        %v4349 = vld [vmem:[#allocation2 + $0x78] sm:$0xf]
        %v4350 = vld [vmem:[#allocation2 + $0x7c] sm:$0xf]
        %v4351 = vld [vmem:[#allocation2 + $0x84] sm:$0xf]
        %v4352 = vld [vmem:[#allocation2 + $0x88] sm:$0xf]
        %v4353 = vld [vmem:[#allocation2 + $0x90] sm:$0xf]
        %v4354 = vld [vmem:[#allocation2 + $0x94] sm:$0xf]
        %v4355 = vld [vmem:[#allocation2 + $0x9c] sm:$0xf]
        %v4356 = vld [vmem:[#allocation2 + $0xa0] sm:$0xf]
        %v4357 = vld [vmem:[#allocation2 + $0xa8] sm:$0xf]
        %v4358 = vld [vmem:[#allocation2 + $0xac] sm:$0xf]
        %v4359 = vld [vmem:[#allocation2 + $0xb4] sm:$0xf]
        %v4360 = vld [vmem:[#allocation2 + $0xb8] sm:$0xf]
        %v4361 = vld [vmem:[#allocation2 + $0x8] sm:$0x1]
        %v4362 = vld [vmem:[#allocation2 + $0x14] sm:$0x1]
        %v4363 = vld [vmem:[#allocation2 + $0x20] sm:$0x1]
        %v4364 = vld [vmem:[#allocation2 + $0x2c] sm:$0x1]
        %v4365 = vld [vmem:[#allocation2 + $0x38] sm:$0x1]
        %v4366 = vld [vmem:[#allocation2 + $0x44] sm:$0x1]
        %v4367 = vld [vmem:[#allocation2 + $0x50] sm:$0x1]
        %v4368 = vld [vmem:[#allocation2 + $0x5c] sm:$0x1]
        %v4369 = vld [vmem:[#allocation2 + $0x68] sm:$0x1]
        %v4370 = vld [vmem:[#allocation2 + $0x74] sm:$0x1]
        %v4371 = vld [vmem:[#allocation2 + $0x80] sm:$0x1]
        %v4372 = vld [vmem:[#allocation2 + $0x8c] sm:$0x1]
        %v4373 = vld [vmem:[#allocation2 + $0x98] sm:$0x1]
        %v4374 = vld [vmem:[#allocation2 + $0xa4] sm:$0x1]
        %v4375 = vld [vmem:[#allocation2 + $0xb0] sm:$0x1]
        %v4376 = vld [vmem:[#allocation2 + $0xbc] sm:$0x1]
        %v4377 = vld [vmem:[#allocation2] sm:$0xe]
        %v4378 = vld [vmem:[#allocation2 + $0xc] sm:$0xe]
        %v4379 = vld [vmem:[#allocation2 + $0x18] sm:$0xe]
        %v4380 = vld [vmem:[#allocation2 + $0x24] sm:$0xe]
        %v4381 = vld [vmem:[#allocation2 + $0x30] sm:$0xe]
        %v4382 = vld [vmem:[#allocation2 + $0x3c] sm:$0xe]
        %v4383 = vld [vmem:[#allocation2 + $0x48] sm:$0xe]
        %v4384 = vld [vmem:[#allocation2 + $0x54] sm:$0xe]
        %v4385 = vld [vmem:[#allocation2 + $0x60] sm:$0xe]
        %v4386 = vld [vmem:[#allocation2 + $0x6c] sm:$0xe]
        %v4387 = vld [vmem:[#allocation2 + $0x78] sm:$0xe]
        %v4388 = vld [vmem:[#allocation2 + $0x84] sm:$0xe]
        %v4389 = vld [vmem:[#allocation2 + $0x90] sm:$0xe]
        %v4390 = vld [vmem:[#allocation2 + $0x9c] sm:$0xe]
        %v4391 = vld [vmem:[#allocation2 + $0xa8] sm:$0xe]
        %v4392 = vld [vmem:[#allocation2 + $0xb4] sm:$0xe]
        %v4393 = vld [vmem:[%s876] sm:$0xf]
        %v4394 = vld [vmem:[%s876 + $0x4] sm:$0xf]
        %v4395 = vld [vmem:[%s876 + $0xc] sm:$0xf]
        %v4396 = vld [vmem:[%s876 + $0x10] sm:$0xf]
        %v4397 = vld [vmem:[%s876 + $0x18] sm:$0xf]
        %v4398 = vld [vmem:[%s876 + $0x1c] sm:$0xf]
        %v4399 = vld [vmem:[%s876 + $0x24] sm:$0xf]
        %v4400 = vld [vmem:[%s876 + $0x28] sm:$0xf]
        %v4401 = vld [vmem:[%s876 + $0x30] sm:$0xf]
        %v4402 = vld [vmem:[%s876 + $0x34] sm:$0xf]
        %v4403 = vld [vmem:[%s876 + $0x3c] sm:$0xf]
        %v4404 = vld [vmem:[%s876 + $0x40] sm:$0xf]
        %v4405 = vld [vmem:[%s876 + $0x48] sm:$0xf]
        %v4406 = vld [vmem:[%s876 + $0x4c] sm:$0xf]
        %v4407 = vld [vmem:[%s876 + $0x54] sm:$0xf]
        %v4408 = vld [vmem:[%s876 + $0x58] sm:$0xf]
        %v4409 = vld [vmem:[%s876 + $0x60] sm:$0xf]
        %v4410 = vld [vmem:[%s876 + $0x64] sm:$0xf]
        %v4411 = vld [vmem:[%s876 + $0x6c] sm:$0xf]
        %v4412 = vld [vmem:[%s876 + $0x70] sm:$0xf]
        %v4413 = vld [vmem:[%s876 + $0x78] sm:$0xf]
        %v4414 = vld [vmem:[%s876 + $0x7c] sm:$0xf]
        %v4415 = vld [vmem:[%s876 + $0x84] sm:$0xf]
        %v4416 = vld [vmem:[%s876 + $0x88] sm:$0xf]
        %v4417 = vld [vmem:[%s876 + $0x90] sm:$0xf]
        %v4418 = vld [vmem:[%s876 + $0x94] sm:$0xf]
        %v4419 = vld [vmem:[%s876 + $0x9c] sm:$0xf]
        %v4420 = vld [vmem:[%s876 + $0xa0] sm:$0xf]
        %v4421 = vld [vmem:[%s876 + $0xa8] sm:$0xf]
        %v4422 = vld [vmem:[%s876 + $0xac] sm:$0xf]
        %v4423 = vld [vmem:[%s876 + $0xb4] sm:$0xf]
        %v4424 = vld [vmem:[%s876 + $0xb8] sm:$0xf]
        %v4425 = vld [vmem:[%s876 + $0x8] sm:$0x1]
        %v4426 = vld [vmem:[%s876 + $0x14] sm:$0x1]
        %v4427 = vld [vmem:[%s876 + $0x20] sm:$0x1]
        %v4428 = vld [vmem:[%s876 + $0x2c] sm:$0x1]
        %v4429 = vld [vmem:[%s876 + $0x38] sm:$0x1]
        %v4430 = vld [vmem:[%s876 + $0x44] sm:$0x1]
        %v4431 = vld [vmem:[%s876 + $0x50] sm:$0x1]
        %v4432 = vld [vmem:[%s876 + $0x5c] sm:$0x1]
        %v4433 = vld [vmem:[%s876 + $0x68] sm:$0x1]
        %v4434 = vld [vmem:[%s876 + $0x74] sm:$0x1]
        %v4435 = vld [vmem:[%s876 + $0x80] sm:$0x1]
        %v4436 = vld [vmem:[%s876 + $0x8c] sm:$0x1]
        %v4437 = vld [vmem:[%s876 + $0x98] sm:$0x1]
        %v4438 = vld [vmem:[%s876 + $0xa4] sm:$0x1]
        %v4439 = vld [vmem:[%s876 + $0xb0] sm:$0x1]
        %v4440 = vld [vmem:[%s876 + $0xbc] sm:$0x1]
        %v4441 = vld [vmem:[%s876] sm:$0xe]
        %v4442 = vld [vmem:[%s876 + $0xc] sm:$0xe]
        %v4443 = vld [vmem:[%s876 + $0x18] sm:$0xe]
        %v4444 = vld [vmem:[%s876 + $0x24] sm:$0xe]
        %v4445 = vld [vmem:[%s876 + $0x30] sm:$0xe]
        %v4446 = vld [vmem:[%s876 + $0x3c] sm:$0xe]
        %v4447 = vld [vmem:[%s876 + $0x48] sm:$0xe]
        %v4448 = vld [vmem:[%s876 + $0x54] sm:$0xe]
        %v4449 = vld [vmem:[%s876 + $0x60] sm:$0xe]
        %v4450 = vld [vmem:[%s876 + $0x6c] sm:$0xe]
        %v4451 = vld [vmem:[%s876 + $0x78] sm:$0xe]
        %v4452 = vld [vmem:[%s876 + $0x84] sm:$0xe]
        %v4453 = vld [vmem:[%s876 + $0x90] sm:$0xe]
        %v4454 = vld [vmem:[%s876 + $0x9c] sm:$0xe]
        %v4455 = vld [vmem:[%s876 + $0xa8] sm:$0xe]
        %v4456 = vld [vmem:[%s876 + $0xb4] sm:$0xe]
        %v4457 = vld [vmem:[%s941] sm:$0xf]
        %v4458 = vld [vmem:[%s941 + $0x4] sm:$0xf]
        %v4459 = vld [vmem:[%s941 + $0xc] sm:$0xf]
        %v4460 = vld [vmem:[%s941 + $0x10] sm:$0xf]
        %v4461 = vld [vmem:[%s941 + $0x18] sm:$0xf]
        %v4462 = vld [vmem:[%s941 + $0x1c] sm:$0xf]
        %v4463 = vld [vmem:[%s941 + $0x24] sm:$0xf]
        %v4464 = vld [vmem:[%s941 + $0x28] sm:$0xf]
        %v4465 = vld [vmem:[%s941 + $0x30] sm:$0xf]
        %v4466 = vld [vmem:[%s941 + $0x34] sm:$0xf]
        %v4467 = vld [vmem:[%s941 + $0x3c] sm:$0xf]
        %v4468 = vld [vmem:[%s941 + $0x40] sm:$0xf]
        %v4469 = vld [vmem:[%s941 + $0x48] sm:$0xf]
        %v4470 = vld [vmem:[%s941 + $0x4c] sm:$0xf]
        %v4471 = vld [vmem:[%s941 + $0x54] sm:$0xf]
        %v4472 = vld [vmem:[%s941 + $0x58] sm:$0xf]
        %v4473 = vld [vmem:[%s941 + $0x60] sm:$0xf]
        %v4474 = vld [vmem:[%s941 + $0x64] sm:$0xf]
        %v4475 = vld [vmem:[%s941 + $0x6c] sm:$0xf]
        %v4476 = vld [vmem:[%s941 + $0x70] sm:$0xf]
        %v4477 = vld [vmem:[%s941 + $0x78] sm:$0xf]
        %v4478 = vld [vmem:[%s941 + $0x7c] sm:$0xf]
        %v4479 = vld [vmem:[%s941 + $0x84] sm:$0xf]
        %v4480 = vld [vmem:[%s941 + $0x88] sm:$0xf]
        %v4481 = vld [vmem:[%s941 + $0x90] sm:$0xf]
        %v4482 = vld [vmem:[%s941 + $0x94] sm:$0xf]
        %v4483 = vld [vmem:[%s941 + $0x9c] sm:$0xf]
        %v4484 = vld [vmem:[%s941 + $0xa0] sm:$0xf]
        %v4485 = vld [vmem:[%s941 + $0xa8] sm:$0xf]
        %v4486 = vld [vmem:[%s941 + $0xac] sm:$0xf]
        %v4487 = vld [vmem:[%s941 + $0xb4] sm:$0xf]
        %v4488 = vld [vmem:[%s941 + $0xb8] sm:$0xf]
        %v4489 = vld [vmem:[%s941 + $0x8] sm:$0x1]
        %v4490 = vld [vmem:[%s941 + $0x14] sm:$0x1]
        %v4491 = vld [vmem:[%s941 + $0x20] sm:$0x1]
        %v4492 = vld [vmem:[%s941 + $0x2c] sm:$0x1]
        %v4493 = vld [vmem:[%s941 + $0x38] sm:$0x1]
        %v4494 = vld [vmem:[%s941 + $0x44] sm:$0x1]
        %v4495 = vld [vmem:[%s941 + $0x50] sm:$0x1]
        %v4496 = vld [vmem:[%s941 + $0x5c] sm:$0x1]
        %v4497 = vld [vmem:[%s941 + $0x68] sm:$0x1]
        %v4498 = vld [vmem:[%s941 + $0x74] sm:$0x1]
        %v4499 = vld [vmem:[%s941 + $0x80] sm:$0x1]
        %v4500 = vld [vmem:[%s941 + $0x8c] sm:$0x1]
        %v4501 = vld [vmem:[%s941 + $0x98] sm:$0x1]
        %v4502 = vld [vmem:[%s941 + $0xa4] sm:$0x1]
        %v4503 = vld [vmem:[%s941 + $0xb0] sm:$0x1]
        %v4504 = vld [vmem:[%s941 + $0xbc] sm:$0x1]
        %v4505 = vld [vmem:[%s941] sm:$0xe]
        %v4506 = vld [vmem:[%s941 + $0xc] sm:$0xe]
        %v4507 = vld [vmem:[%s941 + $0x18] sm:$0xe]
        %v4508 = vld [vmem:[%s941 + $0x24] sm:$0xe]
        %v4509 = vld [vmem:[%s941 + $0x30] sm:$0xe]
        %v4510 = vld [vmem:[%s941 + $0x3c] sm:$0xe]
        %v4511 = vld [vmem:[%s941 + $0x48] sm:$0xe]
        %v4512 = vld [vmem:[%s941 + $0x54] sm:$0xe]
        %v4513 = vld [vmem:[%s941 + $0x60] sm:$0xe]
        %v4514 = vld [vmem:[%s941 + $0x6c] sm:$0xe]
        %v4515 = vld [vmem:[%s941 + $0x78] sm:$0xe]
        %v4516 = vld [vmem:[%s941 + $0x84] sm:$0xe]
        %v4517 = vld [vmem:[%s941 + $0x90] sm:$0xe]
        %v4518 = vld [vmem:[%s941 + $0x9c] sm:$0xe]
        %v4519 = vld [vmem:[%s941 + $0xa8] sm:$0xe]
        %v4520 = vld [vmem:[%s941 + $0xb4] sm:$0xe]
        %v4553 = vunpack.c.l.b16 %v4329
        %v4554 = vunpack.c.l.b16 %v4330
        %v4555 = vunpack.c.l.b16 %v4331
        %v4556 = vunpack.c.l.b16 %v4332
        %v4557 = vunpack.c.l.b16 %v4333
        %v4558 = vunpack.c.l.b16 %v4334
        %v4559 = vunpack.c.l.b16 %v4335
        %v4560 = vunpack.c.l.b16 %v4336
        %v4561 = vunpack.c.l.b16 %v4337
        %v4562 = vunpack.c.l.b16 %v4338
        %v4563 = vunpack.c.l.b16 %v4339
        %v4564 = vunpack.c.l.b16 %v4340
        %v4565 = vunpack.c.l.b16 %v4341
        %v4566 = vunpack.c.l.b16 %v4342
        %v4567 = vunpack.c.l.b16 %v4343
        %v4568 = vunpack.c.l.b16 %v4344
        %v4569 = vunpack.c.l.b16 %v4345
        %v4570 = vunpack.c.l.b16 %v4346
        %v4571 = vunpack.c.l.b16 %v4347
        %v4572 = vunpack.c.l.b16 %v4348
        %v4573 = vunpack.c.l.b16 %v4349
        %v4574 = vunpack.c.l.b16 %v4350
        %v4575 = vunpack.c.l.b16 %v4351
        %v4576 = vunpack.c.l.b16 %v4352
        %v4577 = vunpack.c.l.b16 %v4353
        %v4578 = vunpack.c.l.b16 %v4354
        %v4579 = vunpack.c.l.b16 %v4355
        %v4580 = vunpack.c.l.b16 %v4356
        %v4581 = vunpack.c.l.b16 %v4357
        %v4582 = vunpack.c.l.b16 %v4358
        %v4583 = vunpack.c.l.b16 %v4359
        %v4584 = vunpack.c.l.b16 %v4360
        %v4585 = vpack.c.b16 %v4554, %v4553
        %v4586 = vpack.c.b16 %v4556, %v4555
        %v4587 = vpack.c.b16 %v4558, %v4557
        %v4588 = vpack.c.b16 %v4560, %v4559
        %v4589 = vpack.c.b16 %v4562, %v4561
        %v4590 = vpack.c.b16 %v4564, %v4563
        %v4591 = vpack.c.b16 %v4566, %v4565
        %v4592 = vpack.c.b16 %v4568, %v4567
        %v4593 = vpack.c.b16 %v4570, %v4569
        %v4594 = vpack.c.b16 %v4572, %v4571
        %v4595 = vpack.c.b16 %v4574, %v4573
        %v4596 = vpack.c.b16 %v4576, %v4575
        %v4597 = vpack.c.b16 %v4578, %v4577
        %v4598 = vpack.c.b16 %v4580, %v4579
        %v4599 = vpack.c.b16 %v4582, %v4581
        %v4600 = vpack.c.b16 %v4584, %v4583
        %v4633 = vunpack.c.l.b16 %v4361
        %v4634 = vunpack.c.l.b16 %v4362
        %v4635 = vunpack.c.l.b16 %v4363
        %v4636 = vunpack.c.l.b16 %v4364
        %v4637 = vunpack.c.l.b16 %v4365
        %v4638 = vunpack.c.l.b16 %v4366
        %v4639 = vunpack.c.l.b16 %v4367
        %v4640 = vunpack.c.l.b16 %v4368
        %v4641 = vunpack.c.l.b16 %v4369
        %v4642 = vunpack.c.l.b16 %v4370
        %v4643 = vunpack.c.l.b16 %v4371
        %v4644 = vunpack.c.l.b16 %v4372
        %v4645 = vunpack.c.l.b16 %v4373
        %v4646 = vunpack.c.l.b16 %v4374
        %v4647 = vunpack.c.l.b16 %v4375
        %v4648 = vunpack.c.l.b16 %v4376
        %v4649 = vpack.c.b16 %v4633, %v4633
        %v4650 = vpack.c.b16 %v4634, %v4634
        %v4651 = vpack.c.b16 %v4635, %v4635
        %v4652 = vpack.c.b16 %v4636, %v4636
        %v4653 = vpack.c.b16 %v4637, %v4637
        %v4654 = vpack.c.b16 %v4638, %v4638
        %v4655 = vpack.c.b16 %v4639, %v4639
        %v4656 = vpack.c.b16 %v4640, %v4640
        %v4657 = vpack.c.b16 %v4641, %v4641
        %v4658 = vpack.c.b16 %v4642, %v4642
        %v4659 = vpack.c.b16 %v4643, %v4643
        %v4660 = vpack.c.b16 %v4644, %v4644
        %v4661 = vpack.c.b16 %v4645, %v4645
        %v4662 = vpack.c.b16 %v4646, %v4646
        %v4663 = vpack.c.b16 %v4647, %v4647
        %v4664 = vpack.c.b16 %v4648, %v4648
        %v4666 = vshrl.u32 %v4585, 16
        %v4668 = vshll.u32 %v4585, 16
        %v4670 = vrot.slane %v4668, 1
        %v4671 = vor.u32 %v4666, %v4670
        %v4673 = vshll.u32 %v4649, 16
        %v4675 = vrot.slane %v4673, 1
        %v4676 = vsel %vm1150, %v4671, %v4675
        %v4678 = vshrl.u32 %v4586, 16
        %v4680 = vshll.u32 %v4586, 16
        %v4682 = vrot.slane %v4680, 1
        %v4683 = vor.u32 %v4678, %v4682
        %v4685 = vshll.u32 %v4650, 16
        %v4687 = vrot.slane %v4685, 1
        %v4688 = vsel %vm1150, %v4683, %v4687
        %v4690 = vshrl.u32 %v4587, 16
        %v4692 = vshll.u32 %v4587, 16
        %v4694 = vrot.slane %v4692, 1
        %v4695 = vor.u32 %v4690, %v4694
        %v4697 = vshll.u32 %v4651, 16
        %v4699 = vrot.slane %v4697, 1
        %v4700 = vsel %vm1150, %v4695, %v4699
        %v4702 = vshrl.u32 %v4588, 16
        %v4704 = vshll.u32 %v4588, 16
        %v4706 = vrot.slane %v4704, 1
        %v4707 = vor.u32 %v4702, %v4706
        %v4709 = vshll.u32 %v4652, 16
        %v4711 = vrot.slane %v4709, 1
        %v4712 = vsel %vm1150, %v4707, %v4711
        %v4714 = vshrl.u32 %v4589, 16
        %v4716 = vshll.u32 %v4589, 16
        %v4718 = vrot.slane %v4716, 1
        %v4719 = vor.u32 %v4714, %v4718
        %v4721 = vshll.u32 %v4653, 16
        %v4723 = vrot.slane %v4721, 1
        %v4724 = vsel %vm1150, %v4719, %v4723
        %v4726 = vshrl.u32 %v4590, 16
        %v4728 = vshll.u32 %v4590, 16
        %v4730 = vrot.slane %v4728, 1
        %v4731 = vor.u32 %v4726, %v4730
        %v4733 = vshll.u32 %v4654, 16
        %v4735 = vrot.slane %v4733, 1
        %v4736 = vsel %vm1150, %v4731, %v4735
        %v4738 = vshrl.u32 %v4591, 16
        %v4740 = vshll.u32 %v4591, 16
        %v4742 = vrot.slane %v4740, 1
        %v4743 = vor.u32 %v4738, %v4742
        %v4745 = vshll.u32 %v4655, 16
        %v4747 = vrot.slane %v4745, 1
        %v4748 = vsel %vm1150, %v4743, %v4747
        %v4750 = vshrl.u32 %v4592, 16
        %v4752 = vshll.u32 %v4592, 16
        %v4754 = vrot.slane %v4752, 1
        %v4755 = vor.u32 %v4750, %v4754
        %v4757 = vshll.u32 %v4656, 16
        %v4759 = vrot.slane %v4757, 1
        %v4760 = vsel %vm1150, %v4755, %v4759
        %v4762 = vshrl.u32 %v4593, 16
        %v4764 = vshll.u32 %v4593, 16
        %v4766 = vrot.slane %v4764, 1
        %v4767 = vor.u32 %v4762, %v4766
        %v4769 = vshll.u32 %v4657, 16
        %v4771 = vrot.slane %v4769, 1
        %v4772 = vsel %vm1150, %v4767, %v4771
        %v4774 = vshrl.u32 %v4594, 16
        %v4776 = vshll.u32 %v4594, 16
        %v4778 = vrot.slane %v4776, 1
        %v4779 = vor.u32 %v4774, %v4778
        %v4781 = vshll.u32 %v4658, 16
        %v4783 = vrot.slane %v4781, 1
        %v4784 = vsel %vm1150, %v4779, %v4783
        %v4786 = vshrl.u32 %v4595, 16
        %v4788 = vshll.u32 %v4595, 16
        %v4790 = vrot.slane %v4788, 1
        %v4791 = vor.u32 %v4786, %v4790
        %v4793 = vshll.u32 %v4659, 16
        %v4795 = vrot.slane %v4793, 1
        %v4796 = vsel %vm1150, %v4791, %v4795
        %v4798 = vshrl.u32 %v4596, 16
        %v4800 = vshll.u32 %v4596, 16
        %v4802 = vrot.slane %v4800, 1
        %v4803 = vor.u32 %v4798, %v4802
        %v4805 = vshll.u32 %v4660, 16
        %v4807 = vrot.slane %v4805, 1
        %v4808 = vsel %vm1150, %v4803, %v4807
        %v4810 = vshrl.u32 %v4597, 16
        %v4812 = vshll.u32 %v4597, 16
        %v4814 = vrot.slane %v4812, 1
        %v4815 = vor.u32 %v4810, %v4814
        %v4817 = vshll.u32 %v4661, 16
        %v4819 = vrot.slane %v4817, 1
        %v4820 = vsel %vm1150, %v4815, %v4819
        %v4822 = vshrl.u32 %v4598, 16
        %v4824 = vshll.u32 %v4598, 16
        %v4826 = vrot.slane %v4824, 1
        %v4827 = vor.u32 %v4822, %v4826
        %v4829 = vshll.u32 %v4662, 16
        %v4831 = vrot.slane %v4829, 1
        %v4832 = vsel %vm1150, %v4827, %v4831
        %v4834 = vshrl.u32 %v4599, 16
        %v4836 = vshll.u32 %v4599, 16
        %v4838 = vrot.slane %v4836, 1
        %v4839 = vor.u32 %v4834, %v4838
        %v4841 = vshll.u32 %v4663, 16
        %v4843 = vrot.slane %v4841, 1
        %v4844 = vsel %vm1150, %v4839, %v4843
        %v4846 = vshrl.u32 %v4600, 16
        %v4848 = vshll.u32 %v4600, 16
        %v4850 = vrot.slane %v4848, 1
        %v4851 = vor.u32 %v4846, %v4850
        %v4853 = vshll.u32 %v4664, 16
        %v4855 = vrot.slane %v4853, 1
        %v4856 = vsel %vm1150, %v4851, %v4855
        %v4889 = vunpack.c.l.b16 %v4377
        %v4890 = vunpack.c.l.b16 %v4378
        %v4891 = vunpack.c.l.b16 %v4379
        %v4892 = vunpack.c.l.b16 %v4380
        %v4893 = vunpack.c.l.b16 %v4381
        %v4894 = vunpack.c.l.b16 %v4382
        %v4895 = vunpack.c.l.b16 %v4383
        %v4896 = vunpack.c.l.b16 %v4384
        %v4897 = vunpack.c.l.b16 %v4385
        %v4898 = vunpack.c.l.b16 %v4386
        %v4899 = vunpack.c.l.b16 %v4387
        %v4900 = vunpack.c.l.b16 %v4388
        %v4901 = vunpack.c.l.b16 %v4389
        %v4902 = vunpack.c.l.b16 %v4390
        %v4903 = vunpack.c.l.b16 %v4391
        %v4904 = vunpack.c.l.b16 %v4392
        %v4905 = vpack.c.b16 %v4554, %v4889
        %v4906 = vpack.c.b16 %v4556, %v4890
        %v4907 = vpack.c.b16 %v4558, %v4891
        %v4908 = vpack.c.b16 %v4560, %v4892
        %v4909 = vpack.c.b16 %v4562, %v4893
        %v4910 = vpack.c.b16 %v4564, %v4894
        %v4911 = vpack.c.b16 %v4566, %v4895
        %v4912 = vpack.c.b16 %v4568, %v4896
        %v4913 = vpack.c.b16 %v4570, %v4897
        %v4914 = vpack.c.b16 %v4572, %v4898
        %v4915 = vpack.c.b16 %v4574, %v4899
        %v4916 = vpack.c.b16 %v4576, %v4900
        %v4917 = vpack.c.b16 %v4578, %v4901
        %v4918 = vpack.c.b16 %v4580, %v4902
        %v4919 = vpack.c.b16 %v4582, %v4903
        %v4920 = vpack.c.b16 %v4584, %v4904
        %v4921 = vrot.slane %v4905, 1
        %v4922 = vrot.slane %v4649, 1
        %v4923 = vsel %vm1407, %v4921, %v4922
        %v4924 = vrot.slane %v4906, 1
        %v4925 = vrot.slane %v4650, 1
        %v4926 = vsel %vm1407, %v4924, %v4925
        %v4927 = vrot.slane %v4907, 1
        %v4928 = vrot.slane %v4651, 1
        %v4929 = vsel %vm1407, %v4927, %v4928
        %v4930 = vrot.slane %v4908, 1
        %v4931 = vrot.slane %v4652, 1
        %v4932 = vsel %vm1407, %v4930, %v4931
        %v4933 = vrot.slane %v4909, 1
        %v4934 = vrot.slane %v4653, 1
        %v4935 = vsel %vm1407, %v4933, %v4934
        %v4936 = vrot.slane %v4910, 1
        %v4937 = vrot.slane %v4654, 1
        %v4938 = vsel %vm1407, %v4936, %v4937
        %v4939 = vrot.slane %v4911, 1
        %v4940 = vrot.slane %v4655, 1
        %v4941 = vsel %vm1407, %v4939, %v4940
        %v4942 = vrot.slane %v4912, 1
        %v4943 = vrot.slane %v4656, 1
        %v4944 = vsel %vm1407, %v4942, %v4943
        %v4945 = vrot.slane %v4913, 1
        %v4946 = vrot.slane %v4657, 1
        %v4947 = vsel %vm1407, %v4945, %v4946
        %v4948 = vrot.slane %v4914, 1
        %v4949 = vrot.slane %v4658, 1
        %v4950 = vsel %vm1407, %v4948, %v4949
        %v4951 = vrot.slane %v4915, 1
        %v4952 = vrot.slane %v4659, 1
        %v4953 = vsel %vm1407, %v4951, %v4952
        %v4954 = vrot.slane %v4916, 1
        %v4955 = vrot.slane %v4660, 1
        %v4956 = vsel %vm1407, %v4954, %v4955
        %v4957 = vrot.slane %v4917, 1
        %v4958 = vrot.slane %v4661, 1
        %v4959 = vsel %vm1407, %v4957, %v4958
        %v4960 = vrot.slane %v4918, 1
        %v4961 = vrot.slane %v4662, 1
        %v4962 = vsel %vm1407, %v4960, %v4961
        %v4963 = vrot.slane %v4919, 1
        %v4964 = vrot.slane %v4663, 1
        %v4965 = vsel %vm1407, %v4963, %v4964
        %v4966 = vrot.slane %v4920, 1
        %v4967 = vrot.slane %v4664, 1
        %v4968 = vsel %vm1407, %v4966, %v4967
        %v5017 = vunpack.c.l.b16 %v4393
        %v5018 = vunpack.c.l.b16 %v4394
        %v5019 = vunpack.c.l.b16 %v4395
        %v5020 = vunpack.c.l.b16 %v4396
        %v5021 = vunpack.c.l.b16 %v4397
        %v5022 = vunpack.c.l.b16 %v4398
        %v5023 = vunpack.c.l.b16 %v4399
        %v5024 = vunpack.c.l.b16 %v4400
        %v5025 = vunpack.c.l.b16 %v4401
        %v5026 = vunpack.c.l.b16 %v4402
        %v5027 = vunpack.c.l.b16 %v4403
        %v5028 = vunpack.c.l.b16 %v4404
        %v5029 = vunpack.c.l.b16 %v4405
        %v5030 = vunpack.c.l.b16 %v4406
        %v5031 = vunpack.c.l.b16 %v4407
        %v5032 = vunpack.c.l.b16 %v4408
        %v5033 = vunpack.c.l.b16 %v4409
        %v5034 = vunpack.c.l.b16 %v4410
        %v5035 = vunpack.c.l.b16 %v4411
        %v5036 = vunpack.c.l.b16 %v4412
        %v5037 = vunpack.c.l.b16 %v4413
        %v5038 = vunpack.c.l.b16 %v4414
        %v5039 = vunpack.c.l.b16 %v4415
        %v5040 = vunpack.c.l.b16 %v4416
        %v5041 = vunpack.c.l.b16 %v4417
        %v5042 = vunpack.c.l.b16 %v4418
        %v5043 = vunpack.c.l.b16 %v4419
        %v5044 = vunpack.c.l.b16 %v4420
        %v5045 = vunpack.c.l.b16 %v4421
        %v5046 = vunpack.c.l.b16 %v4422
        %v5047 = vunpack.c.l.b16 %v4423
        %v5048 = vunpack.c.l.b16 %v4424
        %v5049 = vpack.c.b16 %v5018, %v5017
        %v5050 = vpack.c.b16 %v5020, %v5019
        %v5051 = vpack.c.b16 %v5022, %v5021
        %v5052 = vpack.c.b16 %v5024, %v5023
        %v5053 = vpack.c.b16 %v5026, %v5025
        %v5054 = vpack.c.b16 %v5028, %v5027
        %v5055 = vpack.c.b16 %v5030, %v5029
        %v5056 = vpack.c.b16 %v5032, %v5031
        %v5057 = vpack.c.b16 %v5034, %v5033
        %v5058 = vpack.c.b16 %v5036, %v5035
        %v5059 = vpack.c.b16 %v5038, %v5037
        %v5060 = vpack.c.b16 %v5040, %v5039
        %v5061 = vpack.c.b16 %v5042, %v5041
        %v5062 = vpack.c.b16 %v5044, %v5043
        %v5063 = vpack.c.b16 %v5046, %v5045
        %v5064 = vpack.c.b16 %v5048, %v5047
        %v5097 = vunpack.c.l.b16 %v4425
        %v5098 = vunpack.c.l.b16 %v4426
        %v5099 = vunpack.c.l.b16 %v4427
        %v5100 = vunpack.c.l.b16 %v4428
        %v5101 = vunpack.c.l.b16 %v4429
        %v5102 = vunpack.c.l.b16 %v4430
        %v5103 = vunpack.c.l.b16 %v4431
        %v5104 = vunpack.c.l.b16 %v4432
        %v5105 = vunpack.c.l.b16 %v4433
        %v5106 = vunpack.c.l.b16 %v4434
        %v5107 = vunpack.c.l.b16 %v4435
        %v5108 = vunpack.c.l.b16 %v4436
        %v5109 = vunpack.c.l.b16 %v4437
        %v5110 = vunpack.c.l.b16 %v4438
        %v5111 = vunpack.c.l.b16 %v4439
        %v5112 = vunpack.c.l.b16 %v4440
        %v5113 = vpack.c.b16 %v5097, %v5097
        %v5114 = vpack.c.b16 %v5098, %v5098
        %v5115 = vpack.c.b16 %v5099, %v5099
        %v5116 = vpack.c.b16 %v5100, %v5100
        %v5117 = vpack.c.b16 %v5101, %v5101
        %v5118 = vpack.c.b16 %v5102, %v5102
        %v5119 = vpack.c.b16 %v5103, %v5103
        %v5120 = vpack.c.b16 %v5104, %v5104
        %v5121 = vpack.c.b16 %v5105, %v5105
        %v5122 = vpack.c.b16 %v5106, %v5106
        %v5123 = vpack.c.b16 %v5107, %v5107
        %v5124 = vpack.c.b16 %v5108, %v5108
        %v5125 = vpack.c.b16 %v5109, %v5109
        %v5126 = vpack.c.b16 %v5110, %v5110
        %v5127 = vpack.c.b16 %v5111, %v5111
        %v5128 = vpack.c.b16 %v5112, %v5112
        %v5130 = vshrl.u32 %v5049, 16
        %v5132 = vshll.u32 %v5049, 16
        %v5134 = vrot.slane %v5132, 1
        %v5135 = vor.u32 %v5130, %v5134
        %v5137 = vshll.u32 %v5113, 16
        %v5139 = vrot.slane %v5137, 1
        %v5140 = vsel %vm1150, %v5135, %v5139
        %v5142 = vshrl.u32 %v5050, 16
        %v5144 = vshll.u32 %v5050, 16
        %v5146 = vrot.slane %v5144, 1
        %v5147 = vor.u32 %v5142, %v5146
        %v5149 = vshll.u32 %v5114, 16
        %v5151 = vrot.slane %v5149, 1
        %v5152 = vsel %vm1150, %v5147, %v5151
        %v5154 = vshrl.u32 %v5051, 16
        %v5156 = vshll.u32 %v5051, 16
        %v5158 = vrot.slane %v5156, 1
        %v5159 = vor.u32 %v5154, %v5158
        %v5161 = vshll.u32 %v5115, 16
        %v5163 = vrot.slane %v5161, 1
        %v5164 = vsel %vm1150, %v5159, %v5163
        %v5166 = vshrl.u32 %v5052, 16
        %v5168 = vshll.u32 %v5052, 16
        %v5170 = vrot.slane %v5168, 1
        %v5171 = vor.u32 %v5166, %v5170
        %v5173 = vshll.u32 %v5116, 16
        %v5175 = vrot.slane %v5173, 1
        %v5176 = vsel %vm1150, %v5171, %v5175
        %v5178 = vshrl.u32 %v5053, 16
        %v5180 = vshll.u32 %v5053, 16
        %v5182 = vrot.slane %v5180, 1
        %v5183 = vor.u32 %v5178, %v5182
        %v5185 = vshll.u32 %v5117, 16
        %v5187 = vrot.slane %v5185, 1
        %v5188 = vsel %vm1150, %v5183, %v5187
        %v5190 = vshrl.u32 %v5054, 16
        %v5192 = vshll.u32 %v5054, 16
        %v5194 = vrot.slane %v5192, 1
        %v5195 = vor.u32 %v5190, %v5194
        %v5197 = vshll.u32 %v5118, 16
        %v5199 = vrot.slane %v5197, 1
        %v5200 = vsel %vm1150, %v5195, %v5199
        %v5202 = vshrl.u32 %v5055, 16
        %v5204 = vshll.u32 %v5055, 16
        %v5206 = vrot.slane %v5204, 1
        %v5207 = vor.u32 %v5202, %v5206
        %v5209 = vshll.u32 %v5119, 16
        %v5211 = vrot.slane %v5209, 1
        %v5212 = vsel %vm1150, %v5207, %v5211
        %v5214 = vshrl.u32 %v5056, 16
        %v5216 = vshll.u32 %v5056, 16
        %v5218 = vrot.slane %v5216, 1
        %v5219 = vor.u32 %v5214, %v5218
        %v5221 = vshll.u32 %v5120, 16
        %v5223 = vrot.slane %v5221, 1
        %v5224 = vsel %vm1150, %v5219, %v5223
        %v5226 = vshrl.u32 %v5057, 16
        %v5228 = vshll.u32 %v5057, 16
        %v5230 = vrot.slane %v5228, 1
        %v5231 = vor.u32 %v5226, %v5230
        %v5233 = vshll.u32 %v5121, 16
        %v5235 = vrot.slane %v5233, 1
        %v5236 = vsel %vm1150, %v5231, %v5235
        %v5238 = vshrl.u32 %v5058, 16
        %v5240 = vshll.u32 %v5058, 16
        %v5242 = vrot.slane %v5240, 1
        %v5243 = vor.u32 %v5238, %v5242
        %v5245 = vshll.u32 %v5122, 16
        %v5247 = vrot.slane %v5245, 1
        %v5248 = vsel %vm1150, %v5243, %v5247
        %v5250 = vshrl.u32 %v5059, 16
        %v5252 = vshll.u32 %v5059, 16
        %v5254 = vrot.slane %v5252, 1
        %v5255 = vor.u32 %v5250, %v5254
        %v5257 = vshll.u32 %v5123, 16
        %v5259 = vrot.slane %v5257, 1
        %v5260 = vsel %vm1150, %v5255, %v5259
        %v5262 = vshrl.u32 %v5060, 16
        %v5264 = vshll.u32 %v5060, 16
        %v5266 = vrot.slane %v5264, 1
        %v5267 = vor.u32 %v5262, %v5266
        %v5269 = vshll.u32 %v5124, 16
        %v5271 = vrot.slane %v5269, 1
        %v5272 = vsel %vm1150, %v5267, %v5271
        %v5274 = vshrl.u32 %v5061, 16
        %v5276 = vshll.u32 %v5061, 16
        %v5278 = vrot.slane %v5276, 1
        %v5279 = vor.u32 %v5274, %v5278
        %v5281 = vshll.u32 %v5125, 16
        %v5283 = vrot.slane %v5281, 1
        %v5284 = vsel %vm1150, %v5279, %v5283
        %v5286 = vshrl.u32 %v5062, 16
        %v5288 = vshll.u32 %v5062, 16
        %v5290 = vrot.slane %v5288, 1
        %v5291 = vor.u32 %v5286, %v5290
        %v5293 = vshll.u32 %v5126, 16
        %v5295 = vrot.slane %v5293, 1
        %v5296 = vsel %vm1150, %v5291, %v5295
        %v5298 = vshrl.u32 %v5063, 16
        %v5300 = vshll.u32 %v5063, 16
        %v5302 = vrot.slane %v5300, 1
        %v5303 = vor.u32 %v5298, %v5302
        %v5305 = vshll.u32 %v5127, 16
        %v5307 = vrot.slane %v5305, 1
        %v5308 = vsel %vm1150, %v5303, %v5307
        %v5310 = vshrl.u32 %v5064, 16
        %v5312 = vshll.u32 %v5064, 16
        %v5314 = vrot.slane %v5312, 1
        %v5315 = vor.u32 %v5310, %v5314
        %v5317 = vshll.u32 %v5128, 16
        %v5319 = vrot.slane %v5317, 1
        %v5320 = vsel %vm1150, %v5315, %v5319
        %v5353 = vunpack.c.l.b16 %v4441
        %v5354 = vunpack.c.l.b16 %v4442
        %v5355 = vunpack.c.l.b16 %v4443
        %v5356 = vunpack.c.l.b16 %v4444
        %v5357 = vunpack.c.l.b16 %v4445
        %v5358 = vunpack.c.l.b16 %v4446
        %v5359 = vunpack.c.l.b16 %v4447
        %v5360 = vunpack.c.l.b16 %v4448
        %v5361 = vunpack.c.l.b16 %v4449
        %v5362 = vunpack.c.l.b16 %v4450
        %v5363 = vunpack.c.l.b16 %v4451
        %v5364 = vunpack.c.l.b16 %v4452
        %v5365 = vunpack.c.l.b16 %v4453
        %v5366 = vunpack.c.l.b16 %v4454
        %v5367 = vunpack.c.l.b16 %v4455
        %v5368 = vunpack.c.l.b16 %v4456
        %v5369 = vpack.c.b16 %v5018, %v5353
        %v5370 = vpack.c.b16 %v5020, %v5354
        %v5371 = vpack.c.b16 %v5022, %v5355
        %v5372 = vpack.c.b16 %v5024, %v5356
        %v5373 = vpack.c.b16 %v5026, %v5357
        %v5374 = vpack.c.b16 %v5028, %v5358
        %v5375 = vpack.c.b16 %v5030, %v5359
        %v5376 = vpack.c.b16 %v5032, %v5360
        %v5377 = vpack.c.b16 %v5034, %v5361
        %v5378 = vpack.c.b16 %v5036, %v5362
        %v5379 = vpack.c.b16 %v5038, %v5363
        %v5380 = vpack.c.b16 %v5040, %v5364
        %v5381 = vpack.c.b16 %v5042, %v5365
        %v5382 = vpack.c.b16 %v5044, %v5366
        %v5383 = vpack.c.b16 %v5046, %v5367
        %v5384 = vpack.c.b16 %v5048, %v5368
        %v5385 = vrot.slane %v5369, 1
        %v5386 = vrot.slane %v5113, 1
        %v5387 = vsel %vm1407, %v5385, %v5386
        %v5388 = vrot.slane %v5370, 1
        %v5389 = vrot.slane %v5114, 1
        %v5390 = vsel %vm1407, %v5388, %v5389
        %v5391 = vrot.slane %v5371, 1
        %v5392 = vrot.slane %v5115, 1
        %v5393 = vsel %vm1407, %v5391, %v5392
        %v5394 = vrot.slane %v5372, 1
        %v5395 = vrot.slane %v5116, 1
        %v5396 = vsel %vm1407, %v5394, %v5395
        %v5397 = vrot.slane %v5373, 1
        %v5398 = vrot.slane %v5117, 1
        %v5399 = vsel %vm1407, %v5397, %v5398
        %v5400 = vrot.slane %v5374, 1
        %v5401 = vrot.slane %v5118, 1
        %v5402 = vsel %vm1407, %v5400, %v5401
        %v5403 = vrot.slane %v5375, 1
        %v5404 = vrot.slane %v5119, 1
        %v5405 = vsel %vm1407, %v5403, %v5404
        %v5406 = vrot.slane %v5376, 1
        %v5407 = vrot.slane %v5120, 1
        %v5408 = vsel %vm1407, %v5406, %v5407
        %v5409 = vrot.slane %v5377, 1
        %v5410 = vrot.slane %v5121, 1
        %v5411 = vsel %vm1407, %v5409, %v5410
        %v5412 = vrot.slane %v5378, 1
        %v5413 = vrot.slane %v5122, 1
        %v5414 = vsel %vm1407, %v5412, %v5413
        %v5415 = vrot.slane %v5379, 1
        %v5416 = vrot.slane %v5123, 1
        %v5417 = vsel %vm1407, %v5415, %v5416
        %v5418 = vrot.slane %v5380, 1
        %v5419 = vrot.slane %v5124, 1
        %v5420 = vsel %vm1407, %v5418, %v5419
        %v5421 = vrot.slane %v5381, 1
        %v5422 = vrot.slane %v5125, 1
        %v5423 = vsel %vm1407, %v5421, %v5422
        %v5424 = vrot.slane %v5382, 1
        %v5425 = vrot.slane %v5126, 1
        %v5426 = vsel %vm1407, %v5424, %v5425
        %v5427 = vrot.slane %v5383, 1
        %v5428 = vrot.slane %v5127, 1
        %v5429 = vsel %vm1407, %v5427, %v5428
        %v5430 = vrot.slane %v5384, 1
        %v5431 = vrot.slane %v5128, 1
        %v5432 = vsel %vm1407, %v5430, %v5431
        %v5481 = vunpack.c.l.b16 %v4457
        %v5482 = vunpack.c.l.b16 %v4458
        %v5483 = vunpack.c.l.b16 %v4459
        %v5484 = vunpack.c.l.b16 %v4460
        %v5485 = vunpack.c.l.b16 %v4461
        %v5486 = vunpack.c.l.b16 %v4462
        %v5487 = vunpack.c.l.b16 %v4463
        %v5488 = vunpack.c.l.b16 %v4464
        %v5489 = vunpack.c.l.b16 %v4465
        %v5490 = vunpack.c.l.b16 %v4466
        %v5491 = vunpack.c.l.b16 %v4467
        %v5492 = vunpack.c.l.b16 %v4468
        %v5493 = vunpack.c.l.b16 %v4469
        %v5494 = vunpack.c.l.b16 %v4470
        %v5495 = vunpack.c.l.b16 %v4471
        %v5496 = vunpack.c.l.b16 %v4472
        %v5497 = vunpack.c.l.b16 %v4473
        %v5498 = vunpack.c.l.b16 %v4474
        %v5499 = vunpack.c.l.b16 %v4475
        %v5500 = vunpack.c.l.b16 %v4476
        %v5501 = vunpack.c.l.b16 %v4477
        %v5502 = vunpack.c.l.b16 %v4478
        %v5503 = vunpack.c.l.b16 %v4479
        %v5504 = vunpack.c.l.b16 %v4480
        %v5505 = vunpack.c.l.b16 %v4481
        %v5506 = vunpack.c.l.b16 %v4482
        %v5507 = vunpack.c.l.b16 %v4483
        %v5508 = vunpack.c.l.b16 %v4484
        %v5509 = vunpack.c.l.b16 %v4485
        %v5510 = vunpack.c.l.b16 %v4486
        %v5511 = vunpack.c.l.b16 %v4487
        %v5512 = vunpack.c.l.b16 %v4488
        %v5513 = vpack.c.b16 %v5482, %v5481
        %v5514 = vpack.c.b16 %v5484, %v5483
        %v5515 = vpack.c.b16 %v5486, %v5485
        %v5516 = vpack.c.b16 %v5488, %v5487
        %v5517 = vpack.c.b16 %v5490, %v5489
        %v5518 = vpack.c.b16 %v5492, %v5491
        %v5519 = vpack.c.b16 %v5494, %v5493
        %v5520 = vpack.c.b16 %v5496, %v5495
        %v5521 = vpack.c.b16 %v5498, %v5497
        %v5522 = vpack.c.b16 %v5500, %v5499
        %v5523 = vpack.c.b16 %v5502, %v5501
        %v5524 = vpack.c.b16 %v5504, %v5503
        %v5525 = vpack.c.b16 %v5506, %v5505
        %v5526 = vpack.c.b16 %v5508, %v5507
        %v5527 = vpack.c.b16 %v5510, %v5509
        %v5528 = vpack.c.b16 %v5512, %v5511
        %v5561 = vunpack.c.l.b16 %v4489
        %v5562 = vunpack.c.l.b16 %v4490
        %v5563 = vunpack.c.l.b16 %v4491
        %v5564 = vunpack.c.l.b16 %v4492
        %v5565 = vunpack.c.l.b16 %v4493
        %v5566 = vunpack.c.l.b16 %v4494
        %v5567 = vunpack.c.l.b16 %v4495
        %v5568 = vunpack.c.l.b16 %v4496
        %v5569 = vunpack.c.l.b16 %v4497
        %v5570 = vunpack.c.l.b16 %v4498
        %v5571 = vunpack.c.l.b16 %v4499
        %v5572 = vunpack.c.l.b16 %v4500
        %v5573 = vunpack.c.l.b16 %v4501
        %v5574 = vunpack.c.l.b16 %v4502
        %v5575 = vunpack.c.l.b16 %v4503
        %v5576 = vunpack.c.l.b16 %v4504
        %v5577 = vpack.c.b16 %v5561, %v5561
        %v5578 = vpack.c.b16 %v5562, %v5562
        %v5579 = vpack.c.b16 %v5563, %v5563
        %v5580 = vpack.c.b16 %v5564, %v5564
        %v5581 = vpack.c.b16 %v5565, %v5565
        %v5582 = vpack.c.b16 %v5566, %v5566
        %v5583 = vpack.c.b16 %v5567, %v5567
        %v5584 = vpack.c.b16 %v5568, %v5568
        %v5585 = vpack.c.b16 %v5569, %v5569
        %v5586 = vpack.c.b16 %v5570, %v5570
        %v5587 = vpack.c.b16 %v5571, %v5571
        %v5588 = vpack.c.b16 %v5572, %v5572
        %v5589 = vpack.c.b16 %v5573, %v5573
        %v5590 = vpack.c.b16 %v5574, %v5574
        %v5591 = vpack.c.b16 %v5575, %v5575
        %v5592 = vpack.c.b16 %v5576, %v5576
        %v5594 = vshrl.u32 %v5513, 16
        %v5596 = vshll.u32 %v5513, 16
        %v5598 = vrot.slane %v5596, 1
        %v5599 = vor.u32 %v5594, %v5598
        %v5601 = vshll.u32 %v5577, 16
        %v5603 = vrot.slane %v5601, 1
        %v5604 = vsel %vm1150, %v5599, %v5603
        %v5606 = vshrl.u32 %v5514, 16
        %v5608 = vshll.u32 %v5514, 16
        %v5610 = vrot.slane %v5608, 1
        %v5611 = vor.u32 %v5606, %v5610
        %v5613 = vshll.u32 %v5578, 16
        %v5615 = vrot.slane %v5613, 1
        %v5616 = vsel %vm1150, %v5611, %v5615
        %v5618 = vshrl.u32 %v5515, 16
        %v5620 = vshll.u32 %v5515, 16
        %v5622 = vrot.slane %v5620, 1
        %v5623 = vor.u32 %v5618, %v5622
        %v5625 = vshll.u32 %v5579, 16
        %v5627 = vrot.slane %v5625, 1
        %v5628 = vsel %vm1150, %v5623, %v5627
        %v5630 = vshrl.u32 %v5516, 16
        %v5632 = vshll.u32 %v5516, 16
        %v5634 = vrot.slane %v5632, 1
        %v5635 = vor.u32 %v5630, %v5634
        %v5637 = vshll.u32 %v5580, 16
        %v5639 = vrot.slane %v5637, 1
        %v5640 = vsel %vm1150, %v5635, %v5639
        %v5642 = vshrl.u32 %v5517, 16
        %v5644 = vshll.u32 %v5517, 16
        %v5646 = vrot.slane %v5644, 1
        %v5647 = vor.u32 %v5642, %v5646
        %v5649 = vshll.u32 %v5581, 16
        %v5651 = vrot.slane %v5649, 1
        %v5652 = vsel %vm1150, %v5647, %v5651
        %v5654 = vshrl.u32 %v5518, 16
        %v5656 = vshll.u32 %v5518, 16
        %v5658 = vrot.slane %v5656, 1
        %v5659 = vor.u32 %v5654, %v5658
        %v5661 = vshll.u32 %v5582, 16
        %v5663 = vrot.slane %v5661, 1
        %v5664 = vsel %vm1150, %v5659, %v5663
        %v5666 = vshrl.u32 %v5519, 16
        %v5668 = vshll.u32 %v5519, 16
        %v5670 = vrot.slane %v5668, 1
        %v5671 = vor.u32 %v5666, %v5670
        %v5673 = vshll.u32 %v5583, 16
        %v5675 = vrot.slane %v5673, 1
        %v5676 = vsel %vm1150, %v5671, %v5675
        %v5678 = vshrl.u32 %v5520, 16
        %v5680 = vshll.u32 %v5520, 16
        %v5682 = vrot.slane %v5680, 1
        %v5683 = vor.u32 %v5678, %v5682
        %v5685 = vshll.u32 %v5584, 16
        %v5687 = vrot.slane %v5685, 1
        %v5688 = vsel %vm1150, %v5683, %v5687
        %v5690 = vshrl.u32 %v5521, 16
        %v5692 = vshll.u32 %v5521, 16
        %v5694 = vrot.slane %v5692, 1
        %v5695 = vor.u32 %v5690, %v5694
        %v5697 = vshll.u32 %v5585, 16
        %v5699 = vrot.slane %v5697, 1
        %v5700 = vsel %vm1150, %v5695, %v5699
        %v5702 = vshrl.u32 %v5522, 16
        %v5704 = vshll.u32 %v5522, 16
        %v5706 = vrot.slane %v5704, 1
        %v5707 = vor.u32 %v5702, %v5706
        %v5709 = vshll.u32 %v5586, 16
        %v5711 = vrot.slane %v5709, 1
        %v5712 = vsel %vm1150, %v5707, %v5711
        %v5714 = vshrl.u32 %v5523, 16
        %v5716 = vshll.u32 %v5523, 16
        %v5718 = vrot.slane %v5716, 1
        %v5719 = vor.u32 %v5714, %v5718
        %v5721 = vshll.u32 %v5587, 16
        %v5723 = vrot.slane %v5721, 1
        %v5724 = vsel %vm1150, %v5719, %v5723
        %v5726 = vshrl.u32 %v5524, 16
        %v5728 = vshll.u32 %v5524, 16
        %v5730 = vrot.slane %v5728, 1
        %v5731 = vor.u32 %v5726, %v5730
        %v5733 = vshll.u32 %v5588, 16
        %v5735 = vrot.slane %v5733, 1
        %v5736 = vsel %vm1150, %v5731, %v5735
        %v5738 = vshrl.u32 %v5525, 16
        %v5740 = vshll.u32 %v5525, 16
        %v5742 = vrot.slane %v5740, 1
        %v5743 = vor.u32 %v5738, %v5742
        %v5745 = vshll.u32 %v5589, 16
        %v5747 = vrot.slane %v5745, 1
        %v5748 = vsel %vm1150, %v5743, %v5747
        %v5750 = vshrl.u32 %v5526, 16
        %v5752 = vshll.u32 %v5526, 16
        %v5754 = vrot.slane %v5752, 1
        %v5755 = vor.u32 %v5750, %v5754
        %v5757 = vshll.u32 %v5590, 16
        %v5759 = vrot.slane %v5757, 1
        %v5760 = vsel %vm1150, %v5755, %v5759
        %v5762 = vshrl.u32 %v5527, 16
        %v5764 = vshll.u32 %v5527, 16
        %v5766 = vrot.slane %v5764, 1
        %v5767 = vor.u32 %v5762, %v5766
        %v5769 = vshll.u32 %v5591, 16
        %v5771 = vrot.slane %v5769, 1
        %v5772 = vsel %vm1150, %v5767, %v5771
        %v5774 = vshrl.u32 %v5528, 16
        %v5776 = vshll.u32 %v5528, 16
        %v5778 = vrot.slane %v5776, 1
        %v5779 = vor.u32 %v5774, %v5778
        %v5781 = vshll.u32 %v5592, 16
        %v5783 = vrot.slane %v5781, 1
        %v5784 = vsel %vm1150, %v5779, %v5783
        %v5817 = vunpack.c.l.b16 %v4505
        %v5818 = vunpack.c.l.b16 %v4506
        %v5819 = vunpack.c.l.b16 %v4507
        %v5820 = vunpack.c.l.b16 %v4508
        %v5821 = vunpack.c.l.b16 %v4509
        %v5822 = vunpack.c.l.b16 %v4510
        %v5823 = vunpack.c.l.b16 %v4511
        %v5824 = vunpack.c.l.b16 %v4512
        %v5825 = vunpack.c.l.b16 %v4513
        %v5826 = vunpack.c.l.b16 %v4514
        %v5827 = vunpack.c.l.b16 %v4515
        %v5828 = vunpack.c.l.b16 %v4516
        %v5829 = vunpack.c.l.b16 %v4517
        %v5830 = vunpack.c.l.b16 %v4518
        %v5831 = vunpack.c.l.b16 %v4519
        %v5832 = vunpack.c.l.b16 %v4520
        %v5833 = vpack.c.b16 %v5482, %v5817
        %v5834 = vpack.c.b16 %v5484, %v5818
        %v5835 = vpack.c.b16 %v5486, %v5819
        %v5836 = vpack.c.b16 %v5488, %v5820
        %v5837 = vpack.c.b16 %v5490, %v5821
        %v5838 = vpack.c.b16 %v5492, %v5822
        %v5839 = vpack.c.b16 %v5494, %v5823
        %v5840 = vpack.c.b16 %v5496, %v5824
        %v5841 = vpack.c.b16 %v5498, %v5825
        %v5842 = vpack.c.b16 %v5500, %v5826
        %v5843 = vpack.c.b16 %v5502, %v5827
        %v5844 = vpack.c.b16 %v5504, %v5828
        %v5845 = vpack.c.b16 %v5506, %v5829
        %v5846 = vpack.c.b16 %v5508, %v5830
        %v5847 = vpack.c.b16 %v5510, %v5831
        %v5848 = vpack.c.b16 %v5512, %v5832
        %v5849 = vrot.slane %v5833, 1
        %v5850 = vrot.slane %v5577, 1
        %v5851 = vsel %vm1407, %v5849, %v5850
        %v5852 = vrot.slane %v5834, 1
        %v5853 = vrot.slane %v5578, 1
        %v5854 = vsel %vm1407, %v5852, %v5853
        %v5855 = vrot.slane %v5835, 1
        %v5856 = vrot.slane %v5579, 1
        %v5857 = vsel %vm1407, %v5855, %v5856
        %v5858 = vrot.slane %v5836, 1
        %v5859 = vrot.slane %v5580, 1
        %v5860 = vsel %vm1407, %v5858, %v5859
        %v5861 = vrot.slane %v5837, 1
        %v5862 = vrot.slane %v5581, 1
        %v5863 = vsel %vm1407, %v5861, %v5862
        %v5864 = vrot.slane %v5838, 1
        %v5865 = vrot.slane %v5582, 1
        %v5866 = vsel %vm1407, %v5864, %v5865
        %v5867 = vrot.slane %v5839, 1
        %v5868 = vrot.slane %v5583, 1
        %v5869 = vsel %vm1407, %v5867, %v5868
        %v5870 = vrot.slane %v5840, 1
        %v5871 = vrot.slane %v5584, 1
        %v5872 = vsel %vm1407, %v5870, %v5871
        %v5873 = vrot.slane %v5841, 1
        %v5874 = vrot.slane %v5585, 1
        %v5875 = vsel %vm1407, %v5873, %v5874
        %v5876 = vrot.slane %v5842, 1
        %v5877 = vrot.slane %v5586, 1
        %v5878 = vsel %vm1407, %v5876, %v5877
        %v5879 = vrot.slane %v5843, 1
        %v5880 = vrot.slane %v5587, 1
        %v5881 = vsel %vm1407, %v5879, %v5880
        %v5882 = vrot.slane %v5844, 1
        %v5883 = vrot.slane %v5588, 1
        %v5884 = vsel %vm1407, %v5882, %v5883
        %v5885 = vrot.slane %v5845, 1
        %v5886 = vrot.slane %v5589, 1
        %v5887 = vsel %vm1407, %v5885, %v5886
        %v5888 = vrot.slane %v5846, 1
        %v5889 = vrot.slane %v5590, 1
        %v5890 = vsel %vm1407, %v5888, %v5889
        %v5891 = vrot.slane %v5847, 1
        %v5892 = vrot.slane %v5591, 1
        %v5893 = vsel %vm1407, %v5891, %v5892
        %v5894 = vrot.slane %v5848, 1
        %v5895 = vrot.slane %v5592, 1
        %v5896 = vsel %vm1407, %v5894, %v5895
        %v5913 = vld [vmem:[#allocation8] sm:$0xf]
        %v5914 = vld [vmem:[#allocation8 + $0x4] sm:$0xf]
        %v5915 = vld [vmem:[#allocation8 + $0x8] sm:$0xf]
        %v5916 = vld [vmem:[#allocation8 + $0xc] sm:$0xf]
        %v5917 = vld [vmem:[#allocation8 + $0x10] sm:$0xf]
        %v5918 = vld [vmem:[#allocation8 + $0x14] sm:$0xf]
        %v5919 = vld [vmem:[#allocation8 + $0x18] sm:$0xf]
        %v5920 = vld [vmem:[#allocation8 + $0x1c] sm:$0xf]
        %v5921 = vld [vmem:[#allocation8 + $0x20] sm:$0xf]
        %v5922 = vld [vmem:[#allocation8 + $0x24] sm:$0xf]
        %v5923 = vld [vmem:[#allocation8 + $0x28] sm:$0xf]
        %v5924 = vld [vmem:[#allocation8 + $0x2c] sm:$0xf]
        %v5925 = vld [vmem:[#allocation8 + $0x30] sm:$0xf]
        %v5926 = vld [vmem:[#allocation8 + $0x34] sm:$0xf]
        %v5927 = vld [vmem:[#allocation8 + $0x38] sm:$0xf]
        %v5928 = vld [vmem:[#allocation8 + $0x3c] sm:$0xf]
        %v5929 = vld [vmem:[#allocation8 + $0x40] sm:$0xf]
        %v5930 = vld [vmem:[#allocation8 + $0x44] sm:$0xf]
        %v5931 = vld [vmem:[#allocation8 + $0x48] sm:$0xf]
        %v5932 = vld [vmem:[#allocation8 + $0x4c] sm:$0xf]
        %v5933 = vld [vmem:[#allocation8 + $0x50] sm:$0xf]
        %v5934 = vld [vmem:[#allocation8 + $0x54] sm:$0xf]
        %v5935 = vld [vmem:[#allocation8 + $0x58] sm:$0xf]
        %v5936 = vld [vmem:[#allocation8 + $0x5c] sm:$0xf]
        %v5937 = vld [vmem:[#allocation8 + $0x60] sm:$0xf]
        %v5938 = vld [vmem:[#allocation8 + $0x64] sm:$0xf]
        %v5939 = vld [vmem:[#allocation8 + $0x68] sm:$0xf]
        %v5940 = vld [vmem:[#allocation8 + $0x6c] sm:$0xf]
        %v5941 = vld [vmem:[#allocation8 + $0x70] sm:$0xf]
        %v5942 = vld [vmem:[#allocation8 + $0x74] sm:$0xf]
        %v5943 = vld [vmem:[#allocation8 + $0x78] sm:$0xf]
        %v5944 = vld [vmem:[#allocation8 + $0x7c] sm:$0xf]
        %v5945 = vld [vmem:[#allocation8 + $0x80] sm:$0xf]
        %v5946 = vld [vmem:[#allocation8 + $0x84] sm:$0xf]
        %v5947 = vld [vmem:[#allocation8 + $0x88] sm:$0xf]
        %v5948 = vld [vmem:[#allocation8 + $0x8c] sm:$0xf]
        %v5949 = vld [vmem:[#allocation8 + $0x90] sm:$0xf]
        %v5950 = vld [vmem:[#allocation8 + $0x94] sm:$0xf]
        %v5951 = vld [vmem:[#allocation8 + $0x98] sm:$0xf]
        %v5952 = vld [vmem:[#allocation8 + $0x9c] sm:$0xf]
        %v5953 = vld [vmem:[#allocation8 + $0xa0] sm:$0xf]
        %v5954 = vld [vmem:[#allocation8 + $0xa4] sm:$0xf]
        %v5955 = vld [vmem:[#allocation8 + $0xa8] sm:$0xf]
        %v5956 = vld [vmem:[#allocation8 + $0xac] sm:$0xf]
        %v5957 = vld [vmem:[#allocation8 + $0xb0] sm:$0xf]
        %v5958 = vld [vmem:[#allocation8 + $0xb4] sm:$0xf]
        %v5959 = vld [vmem:[#allocation8 + $0xb8] sm:$0xf]
        %v5960 = vld [vmem:[#allocation8 + $0xbc] sm:$0xf]
        %v5961 = vld [vmem:[#allocation8 + $0xc0] sm:$0xf]
        %v5962 = vld [vmem:[#allocation8 + $0xc4] sm:$0xf]
        %v5963 = vld [vmem:[#allocation8 + $0xc8] sm:$0xf]
        %v5964 = vld [vmem:[#allocation8 + $0xcc] sm:$0xf]
        %v5965 = vld [vmem:[#allocation8 + $0xd0] sm:$0xf]
        %v5966 = vld [vmem:[#allocation8 + $0xd4] sm:$0xf]
        %v5967 = vld [vmem:[#allocation8 + $0xd8] sm:$0xf]
        %v5968 = vld [vmem:[#allocation8 + $0xdc] sm:$0xf]
        %v5969 = vld [vmem:[#allocation8 + $0xe0] sm:$0xf]
        %v5970 = vld [vmem:[#allocation8 + $0xe4] sm:$0xf]
        %v5971 = vld [vmem:[#allocation8 + $0xe8] sm:$0xf]
        %v5972 = vld [vmem:[#allocation8 + $0xec] sm:$0xf]
        %v5973 = vld [vmem:[#allocation8 + $0xf0] sm:$0xf]
        %v5974 = vld [vmem:[#allocation8 + $0xf4] sm:$0xf]
        %v5975 = vld [vmem:[#allocation8 + $0xf8] sm:$0xf]
        %v5976 = vld [vmem:[#allocation8 + $0xfc] sm:$0xf]
        %v5977 = vld [vmem:[#allocation8 + $0x100] sm:$0xf]
        %v5978 = vld [vmem:[#allocation8 + $0x104] sm:$0xf]
        %v5979 = vld [vmem:[#allocation8 + $0x108] sm:$0xf]
        %v5980 = vld [vmem:[#allocation8 + $0x10c] sm:$0xf]
        %v5981 = vld [vmem:[#allocation8 + $0x110] sm:$0xf]
        %v5982 = vld [vmem:[#allocation8 + $0x114] sm:$0xf]
        %v5983 = vld [vmem:[#allocation8 + $0x118] sm:$0xf]
        %v5984 = vld [vmem:[#allocation8 + $0x11c] sm:$0xf]
        %v5985 = vld [vmem:[#allocation8 + $0x120] sm:$0xf]
        %v5986 = vld [vmem:[#allocation8 + $0x124] sm:$0xf]
        %v5987 = vld [vmem:[#allocation8 + $0x128] sm:$0xf]
        %v5988 = vld [vmem:[#allocation8 + $0x12c] sm:$0xf]
        %v5989 = vld [vmem:[#allocation8 + $0x130] sm:$0xf]
        %v5990 = vld [vmem:[#allocation8 + $0x134] sm:$0xf]
        %v5991 = vld [vmem:[#allocation8 + $0x138] sm:$0xf]
        %v5992 = vld [vmem:[#allocation8 + $0x13c] sm:$0xf]
        %v5993 = vld [vmem:[#allocation8 + $0x140] sm:$0xf]
        %v5994 = vld [vmem:[#allocation8 + $0x144] sm:$0xf]
        %v5995 = vld [vmem:[#allocation8 + $0x148] sm:$0xf]
        %v5996 = vld [vmem:[#allocation8 + $0x14c] sm:$0xf]
        %v5997 = vld [vmem:[#allocation8 + $0x150] sm:$0xf]
        %v5998 = vld [vmem:[#allocation8 + $0x154] sm:$0xf]
        %v5999 = vld [vmem:[#allocation8 + $0x158] sm:$0xf]
        %v6000 = vld [vmem:[#allocation8 + $0x15c] sm:$0xf]
        %v6001 = vld [vmem:[#allocation8 + $0x160] sm:$0xf]
        %v6002 = vld [vmem:[#allocation8 + $0x164] sm:$0xf]
        %v6003 = vld [vmem:[#allocation8 + $0x168] sm:$0xf]
        %v6004 = vld [vmem:[#allocation8 + $0x16c] sm:$0xf]
        %v6005 = vld [vmem:[#allocation8 + $0x170] sm:$0xf]
        %v6006 = vld [vmem:[#allocation8 + $0x174] sm:$0xf]
        %v6007 = vld [vmem:[#allocation8 + $0x178] sm:$0xf]
        %v6008 = vld [vmem:[#allocation8 + $0x17c] sm:$0xf]
        %v6009 = vld [vmem:[#allocation8 + $0x180] sm:$0xf]
        %v6010 = vld [vmem:[#allocation8 + $0x184] sm:$0xf]
        %v6011 = vld [vmem:[#allocation8 + $0x188] sm:$0xf]
        %v6012 = vld [vmem:[#allocation8 + $0x18c] sm:$0xf]
        %v6013 = vld [vmem:[#allocation8 + $0x190] sm:$0xf]
        %v6014 = vld [vmem:[#allocation8 + $0x194] sm:$0xf]
        %v6015 = vld [vmem:[#allocation8 + $0x198] sm:$0xf]
        %v6016 = vld [vmem:[#allocation8 + $0x19c] sm:$0xf]
        %v6017 = vld [vmem:[#allocation8 + $0x1a0] sm:$0xf]
        %v6018 = vld [vmem:[#allocation8 + $0x1a4] sm:$0xf]
        %v6019 = vld [vmem:[#allocation8 + $0x1a8] sm:$0xf]
        %v6020 = vld [vmem:[#allocation8 + $0x1ac] sm:$0xf]
        %v6021 = vld [vmem:[#allocation8 + $0x1b0] sm:$0xf]
        %v6022 = vld [vmem:[#allocation8 + $0x1b4] sm:$0xf]
        %v6023 = vld [vmem:[#allocation8 + $0x1b8] sm:$0xf]
        %v6024 = vld [vmem:[#allocation8 + $0x1bc] sm:$0xf]
        %v6025 = vld [vmem:[#allocation8 + $0x1c0] sm:$0xf]
        %v6026 = vld [vmem:[#allocation8 + $0x1c4] sm:$0xf]
        %v6027 = vld [vmem:[#allocation8 + $0x1c8] sm:$0xf]
        %v6028 = vld [vmem:[#allocation8 + $0x1cc] sm:$0xf]
        %v6029 = vld [vmem:[#allocation8 + $0x1d0] sm:$0xf]
        %v6030 = vld [vmem:[#allocation8 + $0x1d4] sm:$0xf]
        %v6031 = vld [vmem:[#allocation8 + $0x1d8] sm:$0xf]
        %v6032 = vld [vmem:[#allocation8 + $0x1dc] sm:$0xf]
        %v6033 = vld [vmem:[#allocation8 + $0x1e0] sm:$0xf]
        %v6034 = vld [vmem:[#allocation8 + $0x1e4] sm:$0xf]
        %v6035 = vld [vmem:[#allocation8 + $0x1e8] sm:$0xf]
        %v6036 = vld [vmem:[#allocation8 + $0x1ec] sm:$0xf]
        %v6037 = vld [vmem:[#allocation8 + $0x1f0] sm:$0xf]
        %v6038 = vld [vmem:[#allocation8 + $0x1f4] sm:$0xf]
        %v6039 = vld [vmem:[#allocation8 + $0x1f8] sm:$0xf]
        %v6040 = vld [vmem:[#allocation8 + $0x1fc] sm:$0xf]
        %v6041 = vld [vmem:[#allocation8 + $0x200] sm:$0xf]
        %v6042 = vld [vmem:[#allocation8 + $0x204] sm:$0xf]
        %v6043 = vld [vmem:[#allocation8 + $0x208] sm:$0xf]
        %v6044 = vld [vmem:[#allocation8 + $0x20c] sm:$0xf]
        %v6045 = vld [vmem:[#allocation8 + $0x210] sm:$0xf]
        %v6046 = vld [vmem:[#allocation8 + $0x214] sm:$0xf]
        %v6047 = vld [vmem:[#allocation8 + $0x218] sm:$0xf]
        %v6048 = vld [vmem:[#allocation8 + $0x21c] sm:$0xf]
        %v6049 = vld [vmem:[#allocation8 + $0x220] sm:$0xf]
        %v6050 = vld [vmem:[#allocation8 + $0x224] sm:$0xf]
        %v6051 = vld [vmem:[#allocation8 + $0x228] sm:$0xf]
        %v6052 = vld [vmem:[#allocation8 + $0x22c] sm:$0xf]
        %v6053 = vld [vmem:[#allocation8 + $0x230] sm:$0xf]
        %v6054 = vld [vmem:[#allocation8 + $0x234] sm:$0xf]
        %v6055 = vld [vmem:[#allocation8 + $0x238] sm:$0xf]
        %v6056 = vld [vmem:[#allocation8 + $0x23c] sm:$0xf]
        %v6057 = vld [vmem:[%s3 + $0x1] sm:$0x1]
        %v6058 = vperm.slane %v6057, 0
        %v6203 = vunpack.c.l.b16 %v5913
        %v6204 = vunpack.c.l.b16 %v5914
        %v6205 = vunpack.c.l.b16 %v5915
        %v6206 = vunpack.c.l.b16 %v5916
        %v6207 = vunpack.c.l.b16 %v5917
        %v6208 = vunpack.c.l.b16 %v5918
        %v6209 = vunpack.c.l.b16 %v5919
        %v6210 = vunpack.c.l.b16 %v5920
        %v6211 = vunpack.c.l.b16 %v5921
        %v6212 = vunpack.c.l.b16 %v5922
        %v6213 = vunpack.c.l.b16 %v5923
        %v6214 = vunpack.c.l.b16 %v5924
        %v6215 = vunpack.c.l.b16 %v5925
        %v6216 = vunpack.c.l.b16 %v5926
        %v6217 = vunpack.c.l.b16 %v5927
        %v6218 = vunpack.c.l.b16 %v5928
        %v6219 = vunpack.c.l.b16 %v5929
        %v6220 = vunpack.c.l.b16 %v5930
        %v6221 = vunpack.c.l.b16 %v5931
        %v6222 = vunpack.c.l.b16 %v5932
        %v6223 = vunpack.c.l.b16 %v5933
        %v6224 = vunpack.c.l.b16 %v5934
        %v6225 = vunpack.c.l.b16 %v5935
        %v6226 = vunpack.c.l.b16 %v5936
        %v6227 = vunpack.c.l.b16 %v5937
        %v6228 = vunpack.c.l.b16 %v5938
        %v6229 = vunpack.c.l.b16 %v5939
        %v6230 = vunpack.c.l.b16 %v5940
        %v6231 = vunpack.c.l.b16 %v5941
        %v6232 = vunpack.c.l.b16 %v5942
        %v6233 = vunpack.c.l.b16 %v5943
        %v6234 = vunpack.c.l.b16 %v5944
        %v6235 = vunpack.c.l.b16 %v5945
        %v6236 = vunpack.c.l.b16 %v5946
        %v6237 = vunpack.c.l.b16 %v5947
        %v6238 = vunpack.c.l.b16 %v5948
        %v6239 = vunpack.c.l.b16 %v5949
        %v6240 = vunpack.c.l.b16 %v5950
        %v6241 = vunpack.c.l.b16 %v5951
        %v6242 = vunpack.c.l.b16 %v5952
        %v6243 = vunpack.c.l.b16 %v5953
        %v6244 = vunpack.c.l.b16 %v5954
        %v6245 = vunpack.c.l.b16 %v5955
        %v6246 = vunpack.c.l.b16 %v5956
        %v6247 = vunpack.c.l.b16 %v5957
        %v6248 = vunpack.c.l.b16 %v5958
        %v6249 = vunpack.c.l.b16 %v5959
        %v6250 = vunpack.c.l.b16 %v5960
        %v6251 = vunpack.c.l.b16 %v5961
        %v6252 = vunpack.c.l.b16 %v5962
        %v6253 = vunpack.c.l.b16 %v5963
        %v6254 = vunpack.c.l.b16 %v5964
        %v6255 = vunpack.c.l.b16 %v5965
        %v6256 = vunpack.c.l.b16 %v5966
        %v6257 = vunpack.c.l.b16 %v5967
        %v6258 = vunpack.c.l.b16 %v5968
        %v6259 = vunpack.c.l.b16 %v5969
        %v6260 = vunpack.c.l.b16 %v5970
        %v6261 = vunpack.c.l.b16 %v5971
        %v6262 = vunpack.c.l.b16 %v5972
        %v6263 = vunpack.c.l.b16 %v5973
        %v6264 = vunpack.c.l.b16 %v5974
        %v6265 = vunpack.c.l.b16 %v5975
        %v6266 = vunpack.c.l.b16 %v5976
        %v6267 = vunpack.c.l.b16 %v5977
        %v6268 = vunpack.c.l.b16 %v5978
        %v6269 = vunpack.c.l.b16 %v5979
        %v6270 = vunpack.c.l.b16 %v5980
        %v6271 = vunpack.c.l.b16 %v5981
        %v6272 = vunpack.c.l.b16 %v5982
        %v6273 = vunpack.c.l.b16 %v5983
        %v6274 = vunpack.c.l.b16 %v5984
        %v6275 = vunpack.c.l.b16 %v5985
        %v6276 = vunpack.c.l.b16 %v5986
        %v6277 = vunpack.c.l.b16 %v5987
        %v6278 = vunpack.c.l.b16 %v5988
        %v6279 = vunpack.c.l.b16 %v5989
        %v6280 = vunpack.c.l.b16 %v5990
        %v6281 = vunpack.c.l.b16 %v5991
        %v6282 = vunpack.c.l.b16 %v5992
        %v6283 = vunpack.c.l.b16 %v5993
        %v6284 = vunpack.c.l.b16 %v5994
        %v6285 = vunpack.c.l.b16 %v5995
        %v6286 = vunpack.c.l.b16 %v5996
        %v6287 = vunpack.c.l.b16 %v5997
        %v6288 = vunpack.c.l.b16 %v5998
        %v6289 = vunpack.c.l.b16 %v5999
        %v6290 = vunpack.c.l.b16 %v6000
        %v6291 = vunpack.c.l.b16 %v6001
        %v6292 = vunpack.c.l.b16 %v6002
        %v6293 = vunpack.c.l.b16 %v6003
        %v6294 = vunpack.c.l.b16 %v6004
        %v6295 = vunpack.c.l.b16 %v6005
        %v6296 = vunpack.c.l.b16 %v6006
        %v6297 = vunpack.c.l.b16 %v6007
        %v6298 = vunpack.c.l.b16 %v6008
        %v6299 = vunpack.c.l.b16 %v6009
        %v6300 = vunpack.c.l.b16 %v6010
        %v6301 = vunpack.c.l.b16 %v6011
        %v6302 = vunpack.c.l.b16 %v6012
        %v6303 = vunpack.c.l.b16 %v6013
        %v6304 = vunpack.c.l.b16 %v6014
        %v6305 = vunpack.c.l.b16 %v6015
        %v6306 = vunpack.c.l.b16 %v6016
        %v6307 = vunpack.c.l.b16 %v6017
        %v6308 = vunpack.c.l.b16 %v6018
        %v6309 = vunpack.c.l.b16 %v6019
        %v6310 = vunpack.c.l.b16 %v6020
        %v6311 = vunpack.c.l.b16 %v6021
        %v6312 = vunpack.c.l.b16 %v6022
        %v6313 = vunpack.c.l.b16 %v6023
        %v6314 = vunpack.c.l.b16 %v6024
        %v6315 = vunpack.c.l.b16 %v6025
        %v6316 = vunpack.c.l.b16 %v6026
        %v6317 = vunpack.c.l.b16 %v6027
        %v6318 = vunpack.c.l.b16 %v6028
        %v6319 = vunpack.c.l.b16 %v6029
        %v6320 = vunpack.c.l.b16 %v6030
        %v6321 = vunpack.c.l.b16 %v6031
        %v6322 = vunpack.c.l.b16 %v6032
        %v6323 = vunpack.c.l.b16 %v6033
        %v6324 = vunpack.c.l.b16 %v6034
        %v6325 = vunpack.c.l.b16 %v6035
        %v6326 = vunpack.c.l.b16 %v6036
        %v6327 = vunpack.c.l.b16 %v6037
        %v6328 = vunpack.c.l.b16 %v6038
        %v6329 = vunpack.c.l.b16 %v6039
        %v6330 = vunpack.c.l.b16 %v6040
        %v6331 = vunpack.c.l.b16 %v6041
        %v6332 = vunpack.c.l.b16 %v6042
        %v6333 = vunpack.c.l.b16 %v6043
        %v6334 = vunpack.c.l.b16 %v6044
        %v6335 = vunpack.c.l.b16 %v6045
        %v6336 = vunpack.c.l.b16 %v6046
        %v6337 = vunpack.c.l.b16 %v6047
        %v6338 = vunpack.c.l.b16 %v6048
        %v6339 = vunpack.c.l.b16 %v6049
        %v6340 = vunpack.c.l.b16 %v6050
        %v6341 = vunpack.c.l.b16 %v6051
        %v6342 = vunpack.c.l.b16 %v6052
        %v6343 = vunpack.c.l.b16 %v6053
        %v6344 = vunpack.c.l.b16 %v6054
        %v6345 = vunpack.c.l.b16 %v6055
        %v6346 = vunpack.c.l.b16 %v6056
        %v6347 = vpack.c.b16 %v6204, %v6203
        %v6348 = vpack.c.b16 %v6206, %v6205
        %v6349 = vpack.c.b16 %v6208, %v6207
        %v6350 = vpack.c.b16 %v6210, %v6209
        %v6351 = vpack.c.b16 %v6212, %v6211
        %v6352 = vpack.c.b16 %v6214, %v6213
        %v6353 = vpack.c.b16 %v6216, %v6215
        %v6354 = vpack.c.b16 %v6218, %v6217
        %v6355 = vpack.c.b16 %v6220, %v6219
        %v6356 = vpack.c.b16 %v6222, %v6221
        %v6357 = vpack.c.b16 %v6224, %v6223
        %v6358 = vpack.c.b16 %v6226, %v6225
        %v6359 = vpack.c.b16 %v6228, %v6227
        %v6360 = vpack.c.b16 %v6230, %v6229
        %v6361 = vpack.c.b16 %v6232, %v6231
        %v6362 = vpack.c.b16 %v6234, %v6233
        %v6363 = vpack.c.b16 %v6236, %v6235
        %v6364 = vpack.c.b16 %v6238, %v6237
        %v6365 = vpack.c.b16 %v6240, %v6239
        %v6366 = vpack.c.b16 %v6242, %v6241
        %v6367 = vpack.c.b16 %v6244, %v6243
        %v6368 = vpack.c.b16 %v6246, %v6245
        %v6369 = vpack.c.b16 %v6248, %v6247
        %v6370 = vpack.c.b16 %v6250, %v6249
        %v6371 = vpack.c.b16 %v6252, %v6251
        %v6372 = vpack.c.b16 %v6254, %v6253
        %v6373 = vpack.c.b16 %v6256, %v6255
        %v6374 = vpack.c.b16 %v6258, %v6257
        %v6375 = vpack.c.b16 %v6260, %v6259
        %v6376 = vpack.c.b16 %v6262, %v6261
        %v6377 = vpack.c.b16 %v6264, %v6263
        %v6378 = vpack.c.b16 %v6266, %v6265
        %v6379 = vpack.c.b16 %v6268, %v6267
        %v6380 = vpack.c.b16 %v6270, %v6269
        %v6381 = vpack.c.b16 %v6272, %v6271
        %v6382 = vpack.c.b16 %v6274, %v6273
        %v6383 = vpack.c.b16 %v6276, %v6275
        %v6384 = vpack.c.b16 %v6278, %v6277
        %v6385 = vpack.c.b16 %v6280, %v6279
        %v6386 = vpack.c.b16 %v6282, %v6281
        %v6387 = vpack.c.b16 %v6284, %v6283
        %v6388 = vpack.c.b16 %v6286, %v6285
        %v6389 = vpack.c.b16 %v6288, %v6287
        %v6390 = vpack.c.b16 %v6290, %v6289
        %v6391 = vpack.c.b16 %v6292, %v6291
        %v6392 = vpack.c.b16 %v6294, %v6293
        %v6393 = vpack.c.b16 %v6296, %v6295
        %v6394 = vpack.c.b16 %v6298, %v6297
        %v6395 = vpack.c.b16 %v6300, %v6299
        %v6396 = vpack.c.b16 %v6302, %v6301
        %v6397 = vpack.c.b16 %v6304, %v6303
        %v6398 = vpack.c.b16 %v6306, %v6305
        %v6399 = vpack.c.b16 %v6308, %v6307
        %v6400 = vpack.c.b16 %v6310, %v6309
        %v6401 = vpack.c.b16 %v6312, %v6311
        %v6402 = vpack.c.b16 %v6314, %v6313
        %v6403 = vpack.c.b16 %v6316, %v6315
        %v6404 = vpack.c.b16 %v6318, %v6317
        %v6405 = vpack.c.b16 %v6320, %v6319
        %v6406 = vpack.c.b16 %v6322, %v6321
        %v6407 = vpack.c.b16 %v6324, %v6323
        %v6408 = vpack.c.b16 %v6326, %v6325
        %v6409 = vpack.c.b16 %v6328, %v6327
        %v6410 = vpack.c.b16 %v6330, %v6329
        %v6411 = vpack.c.b16 %v6332, %v6331
        %v6412 = vpack.c.b16 %v6334, %v6333
        %v6413 = vpack.c.b16 %v6336, %v6335
        %v6414 = vpack.c.b16 %v6338, %v6337
        %v6415 = vpack.c.b16 %v6340, %v6339
        %v6416 = vpack.c.b16 %v6342, %v6341
        %v6417 = vpack.c.b16 %v6344, %v6343
        %v6418 = vpack.c.b16 %v6346, %v6345
        %6491 = vmatpush.bf16.msra.mxu0 %v6354
        %6492 = vmatpush.bf16.msra.mxu0 %v6353
        %6493 = vmatpush.bf16.msra.mxu0 %v6352
        %6494 = vmatpush.bf16.msra.mxu0 %v6351
        %6495 = vmatpush.bf16.msra.mxu0 %v6350
        %6496 = vmatpush.bf16.msra.mxu0 %v6349
        %6497 = vmatpush.bf16.msra.mxu0 %v6348
        %6498 = vmatpush.bf16.msra.mxu0 %v6347
        %6499 = vmatmul.bf16.gmra.mxu0 %v4585
        %v6500 = vpop.f32.mrf.mxu0
        %v6501 = vadd.f32 %v6058, %v6500
        %v6502 = vpop.f32.mrf.mxu0
        %v6503 = vadd.f32 %v6058, %v6502
        %6504 = vmatmul.bf16.gmra.mxu0 %v4586
        %v6505 = vpop.f32.mrf.mxu0
        %v6506 = vadd.f32 %v6058, %v6505
        %v6507 = vpop.f32.mrf.mxu0
        %v6508 = vadd.f32 %v6058, %v6507
        %6509 = vmatmul.bf16.gmra.mxu0 %v4587
        %v6510 = vpop.f32.mrf.mxu0
        %v6511 = vadd.f32 %v6058, %v6510
        %v6512 = vpop.f32.mrf.mxu0
        %v6513 = vadd.f32 %v6058, %v6512
        %6514 = vmatmul.bf16.gmra.mxu0 %v4588
        %v6515 = vpop.f32.mrf.mxu0
        %v6516 = vadd.f32 %v6058, %v6515
        %v6517 = vpop.f32.mrf.mxu0
        %v6518 = vadd.f32 %v6058, %v6517
        %6519 = vmatmul.bf16.gmra.mxu0 %v4589
        %v6520 = vpop.f32.mrf.mxu0
        %v6521 = vadd.f32 %v6058, %v6520
        %v6522 = vpop.f32.mrf.mxu0
        %v6523 = vadd.f32 %v6058, %v6522
        %6524 = vmatmul.bf16.gmra.mxu0 %v4590
        %v6525 = vpop.f32.mrf.mxu0
        %v6526 = vadd.f32 %v6058, %v6525
        %v6527 = vpop.f32.mrf.mxu0
        %v6528 = vadd.f32 %v6058, %v6527
        %6529 = vmatmul.bf16.gmra.mxu0 %v4591
        %v6530 = vpop.f32.mrf.mxu0
        %v6531 = vadd.f32 %v6058, %v6530
        %v6532 = vpop.f32.mrf.mxu0
        %v6533 = vadd.f32 %v6058, %v6532
        %6534 = vmatmul.bf16.gmra.mxu0 %v4592
        %v6535 = vpop.f32.mrf.mxu0
        %v6536 = vadd.f32 %v6058, %v6535
        %v6537 = vpop.f32.mrf.mxu0
        %v6538 = vadd.f32 %v6058, %v6537
        %6539 = vmatmul.bf16.gmra.mxu0 %v4593
        %v6540 = vpop.f32.mrf.mxu0
        %v6541 = vadd.f32 %v6058, %v6540
        %v6542 = vpop.f32.mrf.mxu0
        %v6543 = vadd.f32 %v6058, %v6542
        %6544 = vmatmul.bf16.gmra.mxu0 %v4594
        %v6545 = vpop.f32.mrf.mxu0
        %v6546 = vadd.f32 %v6058, %v6545
        %v6547 = vpop.f32.mrf.mxu0
        %v6548 = vadd.f32 %v6058, %v6547
        %6549 = vmatmul.bf16.gmra.mxu0 %v4595
        %v6550 = vpop.f32.mrf.mxu0
        %v6551 = vadd.f32 %v6058, %v6550
        %v6552 = vpop.f32.mrf.mxu0
        %v6553 = vadd.f32 %v6058, %v6552
        %6554 = vmatmul.bf16.gmra.mxu0 %v4596
        %v6555 = vpop.f32.mrf.mxu0
        %v6556 = vadd.f32 %v6058, %v6555
        %v6557 = vpop.f32.mrf.mxu0
        %v6558 = vadd.f32 %v6058, %v6557
        %6559 = vmatmul.bf16.gmra.mxu0 %v4597
        %v6560 = vpop.f32.mrf.mxu0
        %v6561 = vadd.f32 %v6058, %v6560
        %v6562 = vpop.f32.mrf.mxu0
        %v6563 = vadd.f32 %v6058, %v6562
        %6564 = vmatmul.bf16.gmra.mxu0 %v4598
        %v6565 = vpop.f32.mrf.mxu0
        %v6566 = vadd.f32 %v6058, %v6565
        %v6567 = vpop.f32.mrf.mxu0
        %v6568 = vadd.f32 %v6058, %v6567
        %6569 = vmatmul.bf16.gmra.mxu0 %v4599
        %v6570 = vpop.f32.mrf.mxu0
        %v6571 = vadd.f32 %v6058, %v6570
        %v6572 = vpop.f32.mrf.mxu0
        %v6573 = vadd.f32 %v6058, %v6572
        %6574 = vmatmul.bf16.gmra.mxu0 %v4600
        %v6575 = vpop.f32.mrf.mxu0
        %v6576 = vadd.f32 %v6058, %v6575
        %v6577 = vpop.f32.mrf.mxu0
        %v6578 = vadd.f32 %v6058, %v6577
        %6579 = vdwg.mxu0
        %6580 = vmatpush.bf16.msra.mxu0 %v6362
        %6581 = vmatpush.bf16.msra.mxu0 %v6361
        %6582 = vmatpush.bf16.msra.mxu0 %v6360
        %6583 = vmatpush.bf16.msra.mxu0 %v6359
        %6584 = vmatpush.bf16.msra.mxu0 %v6358
        %6585 = vmatpush.bf16.msra.mxu0 %v6357
        %6586 = vmatpush.bf16.msra.mxu0 %v6356
        %6587 = vmatpush.bf16.msra.mxu0 %v6355
        %6588 = vmatmul.bf16.gmra.mxu0 %v4676
        %v6589 = vpop.f32.mrf.mxu0
        %v6590 = vadd.f32 %v6501, %v6589
        %v6591 = vpop.f32.mrf.mxu0
        %v6592 = vadd.f32 %v6503, %v6591
        %6593 = vmatmul.bf16.gmra.mxu0 %v4688
        %v6594 = vpop.f32.mrf.mxu0
        %v6595 = vadd.f32 %v6506, %v6594
        %v6596 = vpop.f32.mrf.mxu0
        %v6597 = vadd.f32 %v6508, %v6596
        %6598 = vmatmul.bf16.gmra.mxu0 %v4700
        %v6599 = vpop.f32.mrf.mxu0
        %v6600 = vadd.f32 %v6511, %v6599
        %v6601 = vpop.f32.mrf.mxu0
        %v6602 = vadd.f32 %v6513, %v6601
        %6603 = vmatmul.bf16.gmra.mxu0 %v4712
        %v6604 = vpop.f32.mrf.mxu0
        %v6605 = vadd.f32 %v6516, %v6604
        %v6606 = vpop.f32.mrf.mxu0
        %v6607 = vadd.f32 %v6518, %v6606
        %6608 = vmatmul.bf16.gmra.mxu0 %v4724
        %v6609 = vpop.f32.mrf.mxu0
        %v6610 = vadd.f32 %v6521, %v6609
        %v6611 = vpop.f32.mrf.mxu0
        %v6612 = vadd.f32 %v6523, %v6611
        %6613 = vmatmul.bf16.gmra.mxu0 %v4736
        %v6614 = vpop.f32.mrf.mxu0
        %v6615 = vadd.f32 %v6526, %v6614
        %v6616 = vpop.f32.mrf.mxu0
        %v6617 = vadd.f32 %v6528, %v6616
        %6618 = vmatmul.bf16.gmra.mxu0 %v4748
        %v6619 = vpop.f32.mrf.mxu0
        %v6620 = vadd.f32 %v6531, %v6619
        %v6621 = vpop.f32.mrf.mxu0
        %v6622 = vadd.f32 %v6533, %v6621
        %6623 = vmatmul.bf16.gmra.mxu0 %v4760
        %v6624 = vpop.f32.mrf.mxu0
        %v6625 = vadd.f32 %v6536, %v6624
        %v6626 = vpop.f32.mrf.mxu0
        %v6627 = vadd.f32 %v6538, %v6626
        %6628 = vmatmul.bf16.gmra.mxu0 %v4772
        %v6629 = vpop.f32.mrf.mxu0
        %v6630 = vadd.f32 %v6541, %v6629
        %v6631 = vpop.f32.mrf.mxu0
        %v6632 = vadd.f32 %v6543, %v6631
        %6633 = vmatmul.bf16.gmra.mxu0 %v4784
        %v6634 = vpop.f32.mrf.mxu0
        %v6635 = vadd.f32 %v6546, %v6634
        %v6636 = vpop.f32.mrf.mxu0
        %v6637 = vadd.f32 %v6548, %v6636
        %6638 = vmatmul.bf16.gmra.mxu0 %v4796
        %v6639 = vpop.f32.mrf.mxu0
        %v6640 = vadd.f32 %v6551, %v6639
        %v6641 = vpop.f32.mrf.mxu0
        %v6642 = vadd.f32 %v6553, %v6641
        %6643 = vmatmul.bf16.gmra.mxu0 %v4808
        %v6644 = vpop.f32.mrf.mxu0
        %v6645 = vadd.f32 %v6556, %v6644
        %v6646 = vpop.f32.mrf.mxu0
        %v6647 = vadd.f32 %v6558, %v6646
        %6648 = vmatmul.bf16.gmra.mxu0 %v4820
        %v6649 = vpop.f32.mrf.mxu0
        %v6650 = vadd.f32 %v6561, %v6649
        %v6651 = vpop.f32.mrf.mxu0
        %v6652 = vadd.f32 %v6563, %v6651
        %6653 = vmatmul.bf16.gmra.mxu0 %v4832
        %v6654 = vpop.f32.mrf.mxu0
        %v6655 = vadd.f32 %v6566, %v6654
        %v6656 = vpop.f32.mrf.mxu0
        %v6657 = vadd.f32 %v6568, %v6656
        %6658 = vmatmul.bf16.gmra.mxu0 %v4844
        %v6659 = vpop.f32.mrf.mxu0
        %v6660 = vadd.f32 %v6571, %v6659
        %v6661 = vpop.f32.mrf.mxu0
        %v6662 = vadd.f32 %v6573, %v6661
        %6663 = vmatmul.bf16.gmra.mxu0 %v4856
        %v6664 = vpop.f32.mrf.mxu0
        %v6665 = vadd.f32 %v6576, %v6664
        %v6666 = vpop.f32.mrf.mxu0
        %v6667 = vadd.f32 %v6578, %v6666
        %6668 = vdwg.mxu0
        %6669 = vmatpush.bf16.msra.mxu0 %v6370
        %6670 = vmatpush.bf16.msra.mxu0 %v6369
        %6671 = vmatpush.bf16.msra.mxu0 %v6368
        %6672 = vmatpush.bf16.msra.mxu0 %v6367
        %6673 = vmatpush.bf16.msra.mxu0 %v6366
        %6674 = vmatpush.bf16.msra.mxu0 %v6365
        %6675 = vmatpush.bf16.msra.mxu0 %v6364
        %6676 = vmatpush.bf16.msra.mxu0 %v6363
        %6677 = vmatmul.bf16.gmra.mxu0 %v4923
        %v6678 = vpop.f32.mrf.mxu0
        %v6679 = vadd.f32 %v6590, %v6678
        %v6680 = vpop.f32.mrf.mxu0
        %v6681 = vadd.f32 %v6592, %v6680
        %6682 = vmatmul.bf16.gmra.mxu0 %v4926
        %v6683 = vpop.f32.mrf.mxu0
        %v6684 = vadd.f32 %v6595, %v6683
        %v6685 = vpop.f32.mrf.mxu0
        %v6686 = vadd.f32 %v6597, %v6685
        %6687 = vmatmul.bf16.gmra.mxu0 %v4929
        %v6688 = vpop.f32.mrf.mxu0
        %v6689 = vadd.f32 %v6600, %v6688
        %v6690 = vpop.f32.mrf.mxu0
        %v6691 = vadd.f32 %v6602, %v6690
        %6692 = vmatmul.bf16.gmra.mxu0 %v4932
        %v6693 = vpop.f32.mrf.mxu0
        %v6694 = vadd.f32 %v6605, %v6693
        %v6695 = vpop.f32.mrf.mxu0
        %v6696 = vadd.f32 %v6607, %v6695
        %6697 = vmatmul.bf16.gmra.mxu0 %v4935
        %v6698 = vpop.f32.mrf.mxu0
        %v6699 = vadd.f32 %v6610, %v6698
        %v6700 = vpop.f32.mrf.mxu0
        %v6701 = vadd.f32 %v6612, %v6700
        %6702 = vmatmul.bf16.gmra.mxu0 %v4938
        %v6703 = vpop.f32.mrf.mxu0
        %v6704 = vadd.f32 %v6615, %v6703
        %v6705 = vpop.f32.mrf.mxu0
        %v6706 = vadd.f32 %v6617, %v6705
        %6707 = vmatmul.bf16.gmra.mxu0 %v4941
        %v6708 = vpop.f32.mrf.mxu0
        %v6709 = vadd.f32 %v6620, %v6708
        %v6710 = vpop.f32.mrf.mxu0
        %v6711 = vadd.f32 %v6622, %v6710
        %6712 = vmatmul.bf16.gmra.mxu0 %v4944
        %v6713 = vpop.f32.mrf.mxu0
        %v6714 = vadd.f32 %v6625, %v6713
        %v6715 = vpop.f32.mrf.mxu0
        %v6716 = vadd.f32 %v6627, %v6715
        %6717 = vmatmul.bf16.gmra.mxu0 %v4947
        %v6718 = vpop.f32.mrf.mxu0
        %v6719 = vadd.f32 %v6630, %v6718
        %v6720 = vpop.f32.mrf.mxu0
        %v6721 = vadd.f32 %v6632, %v6720
        %6722 = vmatmul.bf16.gmra.mxu0 %v4950
        %v6723 = vpop.f32.mrf.mxu0
        %v6724 = vadd.f32 %v6635, %v6723
        %v6725 = vpop.f32.mrf.mxu0
        %v6726 = vadd.f32 %v6637, %v6725
        %6727 = vmatmul.bf16.gmra.mxu0 %v4953
        %v6728 = vpop.f32.mrf.mxu0
        %v6729 = vadd.f32 %v6640, %v6728
        %v6730 = vpop.f32.mrf.mxu0
        %v6731 = vadd.f32 %v6642, %v6730
        %6732 = vmatmul.bf16.gmra.mxu0 %v4956
        %v6733 = vpop.f32.mrf.mxu0
        %v6734 = vadd.f32 %v6645, %v6733
        %v6735 = vpop.f32.mrf.mxu0
        %v6736 = vadd.f32 %v6647, %v6735
        %6737 = vmatmul.bf16.gmra.mxu0 %v4959
        %v6738 = vpop.f32.mrf.mxu0
        %v6739 = vadd.f32 %v6650, %v6738
        %v6740 = vpop.f32.mrf.mxu0
        %v6741 = vadd.f32 %v6652, %v6740
        %6742 = vmatmul.bf16.gmra.mxu0 %v4962
        %v6743 = vpop.f32.mrf.mxu0
        %v6744 = vadd.f32 %v6655, %v6743
        %v6745 = vpop.f32.mrf.mxu0
        %v6746 = vadd.f32 %v6657, %v6745
        %6747 = vmatmul.bf16.gmra.mxu0 %v4965
        %v6748 = vpop.f32.mrf.mxu0
        %v6749 = vadd.f32 %v6660, %v6748
        %v6750 = vpop.f32.mrf.mxu0
        %v6751 = vadd.f32 %v6662, %v6750
        %6752 = vmatmul.bf16.gmra.mxu0 %v4968
        %v6753 = vpop.f32.mrf.mxu0
        %v6754 = vadd.f32 %v6665, %v6753
        %v6755 = vpop.f32.mrf.mxu0
        %v6756 = vadd.f32 %v6667, %v6755
        %6757 = vdwg.mxu0
        %6758 = vmatpush.bf16.msra.mxu0 %v6378
        %6759 = vmatpush.bf16.msra.mxu0 %v6377
        %6760 = vmatpush.bf16.msra.mxu0 %v6376
        %6761 = vmatpush.bf16.msra.mxu0 %v6375
        %6762 = vmatpush.bf16.msra.mxu0 %v6374
        %6763 = vmatpush.bf16.msra.mxu0 %v6373
        %6764 = vmatpush.bf16.msra.mxu0 %v6372
        %6765 = vmatpush.bf16.msra.mxu0 %v6371
        %6766 = vmatmul.bf16.gmra.mxu0 %v5049
        %v6767 = vpop.f32.mrf.mxu0
        %v6768 = vadd.f32 %v6679, %v6767
        %v6769 = vpop.f32.mrf.mxu0
        %v6770 = vadd.f32 %v6681, %v6769
        %6771 = vmatmul.bf16.gmra.mxu0 %v5050
        %v6772 = vpop.f32.mrf.mxu0
        %v6773 = vadd.f32 %v6684, %v6772
        %v6774 = vpop.f32.mrf.mxu0
        %v6775 = vadd.f32 %v6686, %v6774
        %6776 = vmatmul.bf16.gmra.mxu0 %v5051
        %v6777 = vpop.f32.mrf.mxu0
        %v6778 = vadd.f32 %v6689, %v6777
        %v6779 = vpop.f32.mrf.mxu0
        %v6780 = vadd.f32 %v6691, %v6779
        %6781 = vmatmul.bf16.gmra.mxu0 %v5052
        %v6782 = vpop.f32.mrf.mxu0
        %v6783 = vadd.f32 %v6694, %v6782
        %v6784 = vpop.f32.mrf.mxu0
        %v6785 = vadd.f32 %v6696, %v6784
        %6786 = vmatmul.bf16.gmra.mxu0 %v5053
        %v6787 = vpop.f32.mrf.mxu0
        %v6788 = vadd.f32 %v6699, %v6787
        %v6789 = vpop.f32.mrf.mxu0
        %v6790 = vadd.f32 %v6701, %v6789
        %6791 = vmatmul.bf16.gmra.mxu0 %v5054
        %v6792 = vpop.f32.mrf.mxu0
        %v6793 = vadd.f32 %v6704, %v6792
        %v6794 = vpop.f32.mrf.mxu0
        %v6795 = vadd.f32 %v6706, %v6794
        %6796 = vmatmul.bf16.gmra.mxu0 %v5055
        %v6797 = vpop.f32.mrf.mxu0
        %v6798 = vadd.f32 %v6709, %v6797
        %v6799 = vpop.f32.mrf.mxu0
        %v6800 = vadd.f32 %v6711, %v6799
        %6801 = vmatmul.bf16.gmra.mxu0 %v5056
        %v6802 = vpop.f32.mrf.mxu0
        %v6803 = vadd.f32 %v6714, %v6802
        %v6804 = vpop.f32.mrf.mxu0
        %v6805 = vadd.f32 %v6716, %v6804
        %6806 = vmatmul.bf16.gmra.mxu0 %v5057
        %v6807 = vpop.f32.mrf.mxu0
        %v6808 = vadd.f32 %v6719, %v6807
        %v6809 = vpop.f32.mrf.mxu0
        %v6810 = vadd.f32 %v6721, %v6809
        %6811 = vmatmul.bf16.gmra.mxu0 %v5058
        %v6812 = vpop.f32.mrf.mxu0
        %v6813 = vadd.f32 %v6724, %v6812
        %v6814 = vpop.f32.mrf.mxu0
        %v6815 = vadd.f32 %v6726, %v6814
        %6816 = vmatmul.bf16.gmra.mxu0 %v5059
        %v6817 = vpop.f32.mrf.mxu0
        %v6818 = vadd.f32 %v6729, %v6817
        %v6819 = vpop.f32.mrf.mxu0
        %v6820 = vadd.f32 %v6731, %v6819
        %6821 = vmatmul.bf16.gmra.mxu0 %v5060
        %v6822 = vpop.f32.mrf.mxu0
        %v6823 = vadd.f32 %v6734, %v6822
        %v6824 = vpop.f32.mrf.mxu0
        %v6825 = vadd.f32 %v6736, %v6824
        %6826 = vmatmul.bf16.gmra.mxu0 %v5061
        %v6827 = vpop.f32.mrf.mxu0
        %v6828 = vadd.f32 %v6739, %v6827
        %v6829 = vpop.f32.mrf.mxu0
        %v6830 = vadd.f32 %v6741, %v6829
        %6831 = vmatmul.bf16.gmra.mxu0 %v5062
        %v6832 = vpop.f32.mrf.mxu0
        %v6833 = vadd.f32 %v6744, %v6832
        %v6834 = vpop.f32.mrf.mxu0
        %v6835 = vadd.f32 %v6746, %v6834
        %6836 = vmatmul.bf16.gmra.mxu0 %v5063
        %v6837 = vpop.f32.mrf.mxu0
        %v6838 = vadd.f32 %v6749, %v6837
        %v6839 = vpop.f32.mrf.mxu0
        %v6840 = vadd.f32 %v6751, %v6839
        %6841 = vmatmul.bf16.gmra.mxu0 %v5064
        %v6842 = vpop.f32.mrf.mxu0
        %v6843 = vadd.f32 %v6754, %v6842
        %v6844 = vpop.f32.mrf.mxu0
        %v6845 = vadd.f32 %v6756, %v6844
        %6846 = vdwg.mxu0
        %6847 = vmatpush.bf16.msra.mxu0 %v6386
        %6848 = vmatpush.bf16.msra.mxu0 %v6385
        %6849 = vmatpush.bf16.msra.mxu0 %v6384
        %6850 = vmatpush.bf16.msra.mxu0 %v6383
        %6851 = vmatpush.bf16.msra.mxu0 %v6382
        %6852 = vmatpush.bf16.msra.mxu0 %v6381
        %6853 = vmatpush.bf16.msra.mxu0 %v6380
        %6854 = vmatpush.bf16.msra.mxu0 %v6379
        %6855 = vmatmul.bf16.gmra.mxu0 %v5140
        %v6856 = vpop.f32.mrf.mxu0
        %v6857 = vadd.f32 %v6768, %v6856
        %v6858 = vpop.f32.mrf.mxu0
        %v6859 = vadd.f32 %v6770, %v6858
        %6860 = vmatmul.bf16.gmra.mxu0 %v5152
        %v6861 = vpop.f32.mrf.mxu0
        %v6862 = vadd.f32 %v6773, %v6861
        %v6863 = vpop.f32.mrf.mxu0
        %v6864 = vadd.f32 %v6775, %v6863
        %6865 = vmatmul.bf16.gmra.mxu0 %v5164
        %v6866 = vpop.f32.mrf.mxu0
        %v6867 = vadd.f32 %v6778, %v6866
        %v6868 = vpop.f32.mrf.mxu0
        %v6869 = vadd.f32 %v6780, %v6868
        %6870 = vmatmul.bf16.gmra.mxu0 %v5176
        %v6871 = vpop.f32.mrf.mxu0
        %v6872 = vadd.f32 %v6783, %v6871
        %v6873 = vpop.f32.mrf.mxu0
        %v6874 = vadd.f32 %v6785, %v6873
        %6875 = vmatmul.bf16.gmra.mxu0 %v5188
        %v6876 = vpop.f32.mrf.mxu0
        %v6877 = vadd.f32 %v6788, %v6876
        %v6878 = vpop.f32.mrf.mxu0
        %v6879 = vadd.f32 %v6790, %v6878
        %6880 = vmatmul.bf16.gmra.mxu0 %v5200
        %v6881 = vpop.f32.mrf.mxu0
        %v6882 = vadd.f32 %v6793, %v6881
        %v6883 = vpop.f32.mrf.mxu0
        %v6884 = vadd.f32 %v6795, %v6883
        %6885 = vmatmul.bf16.gmra.mxu0 %v5212
        %v6886 = vpop.f32.mrf.mxu0
        %v6887 = vadd.f32 %v6798, %v6886
        %v6888 = vpop.f32.mrf.mxu0
        %v6889 = vadd.f32 %v6800, %v6888
        %6890 = vmatmul.bf16.gmra.mxu0 %v5224
        %v6891 = vpop.f32.mrf.mxu0
        %v6892 = vadd.f32 %v6803, %v6891
        %v6893 = vpop.f32.mrf.mxu0
        %v6894 = vadd.f32 %v6805, %v6893
        %6895 = vmatmul.bf16.gmra.mxu0 %v5236
        %v6896 = vpop.f32.mrf.mxu0
        %v6897 = vadd.f32 %v6808, %v6896
        %v6898 = vpop.f32.mrf.mxu0
        %v6899 = vadd.f32 %v6810, %v6898
        %6900 = vmatmul.bf16.gmra.mxu0 %v5248
        %v6901 = vpop.f32.mrf.mxu0
        %v6902 = vadd.f32 %v6813, %v6901
        %v6903 = vpop.f32.mrf.mxu0
        %v6904 = vadd.f32 %v6815, %v6903
        %6905 = vmatmul.bf16.gmra.mxu0 %v5260
        %v6906 = vpop.f32.mrf.mxu0
        %v6907 = vadd.f32 %v6818, %v6906
        %v6908 = vpop.f32.mrf.mxu0
        %v6909 = vadd.f32 %v6820, %v6908
        %6910 = vmatmul.bf16.gmra.mxu0 %v5272
        %v6911 = vpop.f32.mrf.mxu0
        %v6912 = vadd.f32 %v6823, %v6911
        %v6913 = vpop.f32.mrf.mxu0
        %v6914 = vadd.f32 %v6825, %v6913
        %6915 = vmatmul.bf16.gmra.mxu0 %v5284
        %v6916 = vpop.f32.mrf.mxu0
        %v6917 = vadd.f32 %v6828, %v6916
        %v6918 = vpop.f32.mrf.mxu0
        %v6919 = vadd.f32 %v6830, %v6918
        %6920 = vmatmul.bf16.gmra.mxu0 %v5296
        %v6921 = vpop.f32.mrf.mxu0
        %v6922 = vadd.f32 %v6833, %v6921
        %v6923 = vpop.f32.mrf.mxu0
        %v6924 = vadd.f32 %v6835, %v6923
        %6925 = vmatmul.bf16.gmra.mxu0 %v5308
        %v6926 = vpop.f32.mrf.mxu0
        %v6927 = vadd.f32 %v6838, %v6926
        %v6928 = vpop.f32.mrf.mxu0
        %v6929 = vadd.f32 %v6840, %v6928
        %6930 = vmatmul.bf16.gmra.mxu0 %v5320
        %v6931 = vpop.f32.mrf.mxu0
        %v6932 = vadd.f32 %v6843, %v6931
        %v6933 = vpop.f32.mrf.mxu0
        %v6934 = vadd.f32 %v6845, %v6933
        %6935 = vdwg.mxu0
        %6936 = vmatpush.bf16.msra.mxu0 %v6394
        %6937 = vmatpush.bf16.msra.mxu0 %v6393
        %6938 = vmatpush.bf16.msra.mxu0 %v6392
        %6939 = vmatpush.bf16.msra.mxu0 %v6391
        %6940 = vmatpush.bf16.msra.mxu0 %v6390
        %6941 = vmatpush.bf16.msra.mxu0 %v6389
        %6942 = vmatpush.bf16.msra.mxu0 %v6388
        %6943 = vmatpush.bf16.msra.mxu0 %v6387
        %6944 = vmatmul.bf16.gmra.mxu0 %v5387
        %v6945 = vpop.f32.mrf.mxu0
        %v6946 = vadd.f32 %v6857, %v6945
        %v6947 = vpop.f32.mrf.mxu0
        %v6948 = vadd.f32 %v6859, %v6947
        %6949 = vmatmul.bf16.gmra.mxu0 %v5390
        %v6950 = vpop.f32.mrf.mxu0
        %v6951 = vadd.f32 %v6862, %v6950
        %v6952 = vpop.f32.mrf.mxu0
        %v6953 = vadd.f32 %v6864, %v6952
        %6954 = vmatmul.bf16.gmra.mxu0 %v5393
        %v6955 = vpop.f32.mrf.mxu0
        %v6956 = vadd.f32 %v6867, %v6955
        %v6957 = vpop.f32.mrf.mxu0
        %v6958 = vadd.f32 %v6869, %v6957
        %6959 = vmatmul.bf16.gmra.mxu0 %v5396
        %v6960 = vpop.f32.mrf.mxu0
        %v6961 = vadd.f32 %v6872, %v6960
        %v6962 = vpop.f32.mrf.mxu0
        %v6963 = vadd.f32 %v6874, %v6962
        %6964 = vmatmul.bf16.gmra.mxu0 %v5399
        %v6965 = vpop.f32.mrf.mxu0
        %v6966 = vadd.f32 %v6877, %v6965
        %v6967 = vpop.f32.mrf.mxu0
        %v6968 = vadd.f32 %v6879, %v6967
        %6969 = vmatmul.bf16.gmra.mxu0 %v5402
        %v6970 = vpop.f32.mrf.mxu0
        %v6971 = vadd.f32 %v6882, %v6970
        %v6972 = vpop.f32.mrf.mxu0
        %v6973 = vadd.f32 %v6884, %v6972
        %6974 = vmatmul.bf16.gmra.mxu0 %v5405
        %v6975 = vpop.f32.mrf.mxu0
        %v6976 = vadd.f32 %v6887, %v6975
        %v6977 = vpop.f32.mrf.mxu0
        %v6978 = vadd.f32 %v6889, %v6977
        %6979 = vmatmul.bf16.gmra.mxu0 %v5408
        %v6980 = vpop.f32.mrf.mxu0
        %v6981 = vadd.f32 %v6892, %v6980
        %v6982 = vpop.f32.mrf.mxu0
        %v6983 = vadd.f32 %v6894, %v6982
        %6984 = vmatmul.bf16.gmra.mxu0 %v5411
        %v6985 = vpop.f32.mrf.mxu0
        %v6986 = vadd.f32 %v6897, %v6985
        %v6987 = vpop.f32.mrf.mxu0
        %v6988 = vadd.f32 %v6899, %v6987
        %6989 = vmatmul.bf16.gmra.mxu0 %v5414
        %v6990 = vpop.f32.mrf.mxu0
        %v6991 = vadd.f32 %v6902, %v6990
        %v6992 = vpop.f32.mrf.mxu0
        %v6993 = vadd.f32 %v6904, %v6992
        %6994 = vmatmul.bf16.gmra.mxu0 %v5417
        %v6995 = vpop.f32.mrf.mxu0
        %v6996 = vadd.f32 %v6907, %v6995
        %v6997 = vpop.f32.mrf.mxu0
        %v6998 = vadd.f32 %v6909, %v6997
        %6999 = vmatmul.bf16.gmra.mxu0 %v5420
        %v7000 = vpop.f32.mrf.mxu0
        %v7001 = vadd.f32 %v6912, %v7000
        %v7002 = vpop.f32.mrf.mxu0
        %v7003 = vadd.f32 %v6914, %v7002
        %7004 = vmatmul.bf16.gmra.mxu0 %v5423
        %v7005 = vpop.f32.mrf.mxu0
        %v7006 = vadd.f32 %v6917, %v7005
        %v7007 = vpop.f32.mrf.mxu0
        %v7008 = vadd.f32 %v6919, %v7007
        %7009 = vmatmul.bf16.gmra.mxu0 %v5426
        %v7010 = vpop.f32.mrf.mxu0
        %v7011 = vadd.f32 %v6922, %v7010
        %v7012 = vpop.f32.mrf.mxu0
        %v7013 = vadd.f32 %v6924, %v7012
        %7014 = vmatmul.bf16.gmra.mxu0 %v5429
        %v7015 = vpop.f32.mrf.mxu0
        %v7016 = vadd.f32 %v6927, %v7015
        %v7017 = vpop.f32.mrf.mxu0
        %v7018 = vadd.f32 %v6929, %v7017
        %7019 = vmatmul.bf16.gmra.mxu0 %v5432
        %v7020 = vpop.f32.mrf.mxu0
        %v7021 = vadd.f32 %v6932, %v7020
        %v7022 = vpop.f32.mrf.mxu0
        %v7023 = vadd.f32 %v6934, %v7022
        %7024 = vdwg.mxu0
        %7025 = vmatpush.bf16.msra.mxu0 %v6402
        %7026 = vmatpush.bf16.msra.mxu0 %v6401
        %7027 = vmatpush.bf16.msra.mxu0 %v6400
        %7028 = vmatpush.bf16.msra.mxu0 %v6399
        %7029 = vmatpush.bf16.msra.mxu0 %v6398
        %7030 = vmatpush.bf16.msra.mxu0 %v6397
        %7031 = vmatpush.bf16.msra.mxu0 %v6396
        %7032 = vmatpush.bf16.msra.mxu0 %v6395
        %7033 = vmatmul.bf16.gmra.mxu0 %v5513
        %v7034 = vpop.f32.mrf.mxu0
        %v7035 = vadd.f32 %v6946, %v7034
        %v7036 = vpop.f32.mrf.mxu0
        %v7037 = vadd.f32 %v6948, %v7036
        %7038 = vmatmul.bf16.gmra.mxu0 %v5514
        %v7039 = vpop.f32.mrf.mxu0
        %v7040 = vadd.f32 %v6951, %v7039
        %v7041 = vpop.f32.mrf.mxu0
        %v7042 = vadd.f32 %v6953, %v7041
        %7043 = vmatmul.bf16.gmra.mxu0 %v5515
        %v7044 = vpop.f32.mrf.mxu0
        %v7045 = vadd.f32 %v6956, %v7044
        %v7046 = vpop.f32.mrf.mxu0
        %v7047 = vadd.f32 %v6958, %v7046
        %7048 = vmatmul.bf16.gmra.mxu0 %v5516
        %v7049 = vpop.f32.mrf.mxu0
        %v7050 = vadd.f32 %v6961, %v7049
        %v7051 = vpop.f32.mrf.mxu0
        %v7052 = vadd.f32 %v6963, %v7051
        %7053 = vmatmul.bf16.gmra.mxu0 %v5517
        %v7054 = vpop.f32.mrf.mxu0
        %v7055 = vadd.f32 %v6966, %v7054
        %v7056 = vpop.f32.mrf.mxu0
        %v7057 = vadd.f32 %v6968, %v7056
        %7058 = vmatmul.bf16.gmra.mxu0 %v5518
        %v7059 = vpop.f32.mrf.mxu0
        %v7060 = vadd.f32 %v6971, %v7059
        %v7061 = vpop.f32.mrf.mxu0
        %v7062 = vadd.f32 %v6973, %v7061
        %7063 = vmatmul.bf16.gmra.mxu0 %v5519
        %v7064 = vpop.f32.mrf.mxu0
        %v7065 = vadd.f32 %v6976, %v7064
        %v7066 = vpop.f32.mrf.mxu0
        %v7067 = vadd.f32 %v6978, %v7066
        %7068 = vmatmul.bf16.gmra.mxu0 %v5520
        %v7069 = vpop.f32.mrf.mxu0
        %v7070 = vadd.f32 %v6981, %v7069
        %v7071 = vpop.f32.mrf.mxu0
        %v7072 = vadd.f32 %v6983, %v7071
        %7073 = vmatmul.bf16.gmra.mxu0 %v5521
        %v7074 = vpop.f32.mrf.mxu0
        %v7075 = vadd.f32 %v6986, %v7074
        %v7076 = vpop.f32.mrf.mxu0
        %v7077 = vadd.f32 %v6988, %v7076
        %7078 = vmatmul.bf16.gmra.mxu0 %v5522
        %v7079 = vpop.f32.mrf.mxu0
        %v7080 = vadd.f32 %v6991, %v7079
        %v7081 = vpop.f32.mrf.mxu0
        %v7082 = vadd.f32 %v6993, %v7081
        %7083 = vmatmul.bf16.gmra.mxu0 %v5523
        %v7084 = vpop.f32.mrf.mxu0
        %v7085 = vadd.f32 %v6996, %v7084
        %v7086 = vpop.f32.mrf.mxu0
        %v7087 = vadd.f32 %v6998, %v7086
        %7088 = vmatmul.bf16.gmra.mxu0 %v5524
        %v7089 = vpop.f32.mrf.mxu0
        %v7090 = vadd.f32 %v7001, %v7089
        %v7091 = vpop.f32.mrf.mxu0
        %v7092 = vadd.f32 %v7003, %v7091
        %7093 = vmatmul.bf16.gmra.mxu0 %v5525
        %v7094 = vpop.f32.mrf.mxu0
        %v7095 = vadd.f32 %v7006, %v7094
        %v7096 = vpop.f32.mrf.mxu0
        %v7097 = vadd.f32 %v7008, %v7096
        %7098 = vmatmul.bf16.gmra.mxu0 %v5526
        %v7099 = vpop.f32.mrf.mxu0
        %v7100 = vadd.f32 %v7011, %v7099
        %v7101 = vpop.f32.mrf.mxu0
        %v7102 = vadd.f32 %v7013, %v7101
        %7103 = vmatmul.bf16.gmra.mxu0 %v5527
        %v7104 = vpop.f32.mrf.mxu0
        %v7105 = vadd.f32 %v7016, %v7104
        %v7106 = vpop.f32.mrf.mxu0
        %v7107 = vadd.f32 %v7018, %v7106
        %7108 = vmatmul.bf16.gmra.mxu0 %v5528
        %v7109 = vpop.f32.mrf.mxu0
        %v7110 = vadd.f32 %v7021, %v7109
        %v7111 = vpop.f32.mrf.mxu0
        %v7112 = vadd.f32 %v7023, %v7111
        %7113 = vdwg.mxu0
        %7114 = vmatpush.bf16.msra.mxu0 %v6410
        %7115 = vmatpush.bf16.msra.mxu0 %v6409
        %7116 = vmatpush.bf16.msra.mxu0 %v6408
        %7117 = vmatpush.bf16.msra.mxu0 %v6407
        %7118 = vmatpush.bf16.msra.mxu0 %v6406
        %7119 = vmatpush.bf16.msra.mxu0 %v6405
        %7120 = vmatpush.bf16.msra.mxu0 %v6404
        %7121 = vmatpush.bf16.msra.mxu0 %v6403
        %7122 = vmatmul.bf16.gmra.mxu0 %v5604
        %v7123 = vpop.f32.mrf.mxu0
        %v7124 = vadd.f32 %v7035, %v7123
        %v7125 = vpop.f32.mrf.mxu0
        %v7126 = vadd.f32 %v7037, %v7125
        %7127 = vmatmul.bf16.gmra.mxu0 %v5616
        %v7128 = vpop.f32.mrf.mxu0
        %v7129 = vadd.f32 %v7040, %v7128
        %v7130 = vpop.f32.mrf.mxu0
        %v7131 = vadd.f32 %v7042, %v7130
        %7132 = vmatmul.bf16.gmra.mxu0 %v5628
        %v7133 = vpop.f32.mrf.mxu0
        %v7134 = vadd.f32 %v7045, %v7133
        %v7135 = vpop.f32.mrf.mxu0
        %v7136 = vadd.f32 %v7047, %v7135
        %7137 = vmatmul.bf16.gmra.mxu0 %v5640
        %v7138 = vpop.f32.mrf.mxu0
        %v7139 = vadd.f32 %v7050, %v7138
        %v7140 = vpop.f32.mrf.mxu0
        %v7141 = vadd.f32 %v7052, %v7140
        %7142 = vmatmul.bf16.gmra.mxu0 %v5652
        %v7143 = vpop.f32.mrf.mxu0
        %v7144 = vadd.f32 %v7055, %v7143
        %v7145 = vpop.f32.mrf.mxu0
        %v7146 = vadd.f32 %v7057, %v7145
        %7147 = vmatmul.bf16.gmra.mxu0 %v5664
        %v7148 = vpop.f32.mrf.mxu0
        %v7149 = vadd.f32 %v7060, %v7148
        %v7150 = vpop.f32.mrf.mxu0
        %v7151 = vadd.f32 %v7062, %v7150
        %7152 = vmatmul.bf16.gmra.mxu0 %v5676
        %v7153 = vpop.f32.mrf.mxu0
        %v7154 = vadd.f32 %v7065, %v7153
        %v7155 = vpop.f32.mrf.mxu0
        %v7156 = vadd.f32 %v7067, %v7155
        %7157 = vmatmul.bf16.gmra.mxu0 %v5688
        %v7158 = vpop.f32.mrf.mxu0
        %v7159 = vadd.f32 %v7070, %v7158
        %v7160 = vpop.f32.mrf.mxu0
        %v7161 = vadd.f32 %v7072, %v7160
        %7162 = vmatmul.bf16.gmra.mxu0 %v5700
        %v7163 = vpop.f32.mrf.mxu0
        %v7164 = vadd.f32 %v7075, %v7163
        %v7165 = vpop.f32.mrf.mxu0
        %v7166 = vadd.f32 %v7077, %v7165
        %7167 = vmatmul.bf16.gmra.mxu0 %v5712
        %v7168 = vpop.f32.mrf.mxu0
        %v7169 = vadd.f32 %v7080, %v7168
        %v7170 = vpop.f32.mrf.mxu0
        %v7171 = vadd.f32 %v7082, %v7170
        %7172 = vmatmul.bf16.gmra.mxu0 %v5724
        %v7173 = vpop.f32.mrf.mxu0
        %v7174 = vadd.f32 %v7085, %v7173
        %v7175 = vpop.f32.mrf.mxu0
        %v7176 = vadd.f32 %v7087, %v7175
        %7177 = vmatmul.bf16.gmra.mxu0 %v5736
        %v7178 = vpop.f32.mrf.mxu0
        %v7179 = vadd.f32 %v7090, %v7178
        %v7180 = vpop.f32.mrf.mxu0
        %v7181 = vadd.f32 %v7092, %v7180
        %7182 = vmatmul.bf16.gmra.mxu0 %v5748
        %v7183 = vpop.f32.mrf.mxu0
        %v7184 = vadd.f32 %v7095, %v7183
        %v7185 = vpop.f32.mrf.mxu0
        %v7186 = vadd.f32 %v7097, %v7185
        %7187 = vmatmul.bf16.gmra.mxu0 %v5760
        %v7188 = vpop.f32.mrf.mxu0
        %v7189 = vadd.f32 %v7100, %v7188
        %v7190 = vpop.f32.mrf.mxu0
        %v7191 = vadd.f32 %v7102, %v7190
        %7192 = vmatmul.bf16.gmra.mxu0 %v5772
        %v7193 = vpop.f32.mrf.mxu0
        %v7194 = vadd.f32 %v7105, %v7193
        %v7195 = vpop.f32.mrf.mxu0
        %v7196 = vadd.f32 %v7107, %v7195
        %7197 = vmatmul.bf16.gmra.mxu0 %v5784
        %v7198 = vpop.f32.mrf.mxu0
        %v7199 = vadd.f32 %v7110, %v7198
        %v7200 = vpop.f32.mrf.mxu0
        %v7201 = vadd.f32 %v7112, %v7200
        %7202 = vdwg.mxu0
        %7203 = vmatpush.bf16.msra.mxu0 %v6418
        %7204 = vmatpush.bf16.msra.mxu0 %v6417
        %7205 = vmatpush.bf16.msra.mxu0 %v6416
        %7206 = vmatpush.bf16.msra.mxu0 %v6415
        %7207 = vmatpush.bf16.msra.mxu0 %v6414
        %7208 = vmatpush.bf16.msra.mxu0 %v6413
        %7209 = vmatpush.bf16.msra.mxu0 %v6412
        %7210 = vmatpush.bf16.msra.mxu0 %v6411
        %7211 = vmatmul.bf16.gmra.mxu0 %v5851
        %v7212 = vpop.f32.mrf.mxu0
        %v7213 = vadd.f32 %v7124, %v7212
        %v7214 = vpop.f32.mrf.mxu0
        %v7215 = vadd.f32 %v7126, %v7214
        %7216 = vmatmul.bf16.gmra.mxu0 %v5854
        %v7217 = vpop.f32.mrf.mxu0
        %v7218 = vadd.f32 %v7129, %v7217
        %v7219 = vpop.f32.mrf.mxu0
        %v7220 = vadd.f32 %v7131, %v7219
        %7221 = vmatmul.bf16.gmra.mxu0 %v5857
        %v7222 = vpop.f32.mrf.mxu0
        %v7223 = vadd.f32 %v7134, %v7222
        %v7224 = vpop.f32.mrf.mxu0
        %v7225 = vadd.f32 %v7136, %v7224
        %7226 = vmatmul.bf16.gmra.mxu0 %v5860
        %v7227 = vpop.f32.mrf.mxu0
        %v7228 = vadd.f32 %v7139, %v7227
        %v7229 = vpop.f32.mrf.mxu0
        %v7230 = vadd.f32 %v7141, %v7229
        %7231 = vmatmul.bf16.gmra.mxu0 %v5863
        %v7232 = vpop.f32.mrf.mxu0
        %v7233 = vadd.f32 %v7144, %v7232
        %v7234 = vpop.f32.mrf.mxu0
        %v7235 = vadd.f32 %v7146, %v7234
        %7236 = vmatmul.bf16.gmra.mxu0 %v5866
        %v7237 = vpop.f32.mrf.mxu0
        %v7238 = vadd.f32 %v7149, %v7237
        %v7239 = vpop.f32.mrf.mxu0
        %v7240 = vadd.f32 %v7151, %v7239
        %7241 = vmatmul.bf16.gmra.mxu0 %v5869
        %v7242 = vpop.f32.mrf.mxu0
        %v7243 = vadd.f32 %v7154, %v7242
        %v7244 = vpop.f32.mrf.mxu0
        %v7245 = vadd.f32 %v7156, %v7244
        %7246 = vmatmul.bf16.gmra.mxu0 %v5872
        %v7247 = vpop.f32.mrf.mxu0
        %v7248 = vadd.f32 %v7159, %v7247
        %v7249 = vpop.f32.mrf.mxu0
        %v7250 = vadd.f32 %v7161, %v7249
        %7251 = vmatmul.bf16.gmra.mxu0 %v5875
        %v7252 = vpop.f32.mrf.mxu0
        %v7253 = vadd.f32 %v7164, %v7252
        %v7254 = vpop.f32.mrf.mxu0
        %v7255 = vadd.f32 %v7166, %v7254
        %7256 = vmatmul.bf16.gmra.mxu0 %v5878
        %v7257 = vpop.f32.mrf.mxu0
        %v7258 = vadd.f32 %v7169, %v7257
        %v7259 = vpop.f32.mrf.mxu0
        %v7260 = vadd.f32 %v7171, %v7259
        %7261 = vmatmul.bf16.gmra.mxu0 %v5881
        %v7262 = vpop.f32.mrf.mxu0
        %v7263 = vadd.f32 %v7174, %v7262
        %v7264 = vpop.f32.mrf.mxu0
        %v7265 = vadd.f32 %v7176, %v7264
        %7266 = vmatmul.bf16.gmra.mxu0 %v5884
        %v7267 = vpop.f32.mrf.mxu0
        %v7268 = vadd.f32 %v7179, %v7267
        %v7269 = vpop.f32.mrf.mxu0
        %v7270 = vadd.f32 %v7181, %v7269
        %7271 = vmatmul.bf16.gmra.mxu0 %v5887
        %v7272 = vpop.f32.mrf.mxu0
        %v7273 = vadd.f32 %v7184, %v7272
        %v7274 = vpop.f32.mrf.mxu0
        %v7275 = vadd.f32 %v7186, %v7274
        %7276 = vmatmul.bf16.gmra.mxu0 %v5890
        %v7277 = vpop.f32.mrf.mxu0
        %v7278 = vadd.f32 %v7189, %v7277
        %v7279 = vpop.f32.mrf.mxu0
        %v7280 = vadd.f32 %v7191, %v7279
        %7281 = vmatmul.bf16.gmra.mxu0 %v5893
        %v7282 = vpop.f32.mrf.mxu0
        %v7283 = vadd.f32 %v7194, %v7282
        %v7284 = vpop.f32.mrf.mxu0
        %v7285 = vadd.f32 %v7196, %v7284
        %7286 = vmatmul.bf16.gmra.mxu0 %v5896
        %v7287 = vpop.f32.mrf.mxu0
        %v7288 = vadd.f32 %v7199, %v7287
        %v7289 = vpop.f32.mrf.mxu0
        %v7290 = vadd.f32 %v7201, %v7289
        %7291 = vdwg.mxu0
        %v7292 = vadd.f32 %v7213, %v252
        %v7293 = vadd.f32 %v7215, %v253
        %v7294 = vadd.f32 %v7218, %v254
        %v7295 = vadd.f32 %v7220, %v255
        %v7296 = vadd.f32 %v7223, %v256
        %v7297 = vadd.f32 %v7225, %v257
        %v7298 = vadd.f32 %v7228, %v258
        %v7299 = vadd.f32 %v7230, %v259
        %v7300 = vadd.f32 %v7233, %v260
        %v7301 = vadd.f32 %v7235, %v261
        %v7302 = vadd.f32 %v7238, %v262
        %v7303 = vadd.f32 %v7240, %v263
        %v7304 = vadd.f32 %v7243, %v264
        %v7305 = vadd.f32 %v7245, %v265
        %v7306 = vadd.f32 %v7248, %v266
        %v7307 = vadd.f32 %v7250, %v267
        %v7308 = vadd.f32 %v7253, %v268
        %v7309 = vadd.f32 %v7255, %v269
        %v7310 = vadd.f32 %v7258, %v270
        %v7311 = vadd.f32 %v7260, %v271
        %v7312 = vadd.f32 %v7263, %v272
        %v7313 = vadd.f32 %v7265, %v273
        %v7314 = vadd.f32 %v7268, %v274
        %v7315 = vadd.f32 %v7270, %v275
        %v7316 = vadd.f32 %v7273, %v276
        %v7317 = vadd.f32 %v7275, %v277
        %v7318 = vadd.f32 %v7278, %v278
        %v7319 = vadd.f32 %v7280, %v279
        %v7320 = vadd.f32 %v7283, %v280
        %v7321 = vadd.f32 %v7285, %v281
        %v7322 = vadd.f32 %v7288, %v282
        %v7323 = vadd.f32 %v7290, %v283
        %v7324 = vmax.f32 %v7292, 0.0
        %v7325 = vmax.f32 %v7293, 0.0
        %v7326 = vmax.f32 %v7294, 0.0
        %v7327 = vmax.f32 %v7295, 0.0
        %v7328 = vmax.f32 %v7296, 0.0
        %v7329 = vmax.f32 %v7297, 0.0
        %v7330 = vmax.f32 %v7298, 0.0
        %v7331 = vmax.f32 %v7299, 0.0
        %v7332 = vmax.f32 %v7300, 0.0
        %v7333 = vmax.f32 %v7301, 0.0
        %v7334 = vmax.f32 %v7302, 0.0
        %v7335 = vmax.f32 %v7303, 0.0
        %v7336 = vmax.f32 %v7304, 0.0
        %v7337 = vmax.f32 %v7305, 0.0
        %v7338 = vmax.f32 %v7306, 0.0
        %v7339 = vmax.f32 %v7307, 0.0
        %v7340 = vmax.f32 %v7308, 0.0
        %v7341 = vmax.f32 %v7309, 0.0
        %v7342 = vmax.f32 %v7310, 0.0
        %v7343 = vmax.f32 %v7311, 0.0
        %v7344 = vmax.f32 %v7312, 0.0
        %v7345 = vmax.f32 %v7313, 0.0
        %v7346 = vmax.f32 %v7314, 0.0
        %v7347 = vmax.f32 %v7315, 0.0
        %v7348 = vmax.f32 %v7316, 0.0
        %v7349 = vmax.f32 %v7317, 0.0
        %v7350 = vmax.f32 %v7318, 0.0
        %v7351 = vmax.f32 %v7319, 0.0
        %v7352 = vmax.f32 %v7320, 0.0
        %v7353 = vmax.f32 %v7321, 0.0
        %v7354 = vmax.f32 %v7322, 0.0
        %v7355 = vmax.f32 %v7323, 0.0
        %7356 = vst [vmem:[%s250] sm:$0xff] %v7324
        %7357 = vst [vmem:[%s250 + $0x8] sm:$0xff] %v7325
        %7358 = vst [vmem:[%s250 + $0x10] sm:$0xff] %v7326
        %7359 = vst [vmem:[%s250 + $0x18] sm:$0xff] %v7327
        %7360 = vst [vmem:[%s250 + $0x20] sm:$0xff] %v7328
        %7361 = vst [vmem:[%s250 + $0x28] sm:$0xff] %v7329
        %7362 = vst [vmem:[%s250 + $0x30] sm:$0xff] %v7330
        %7363 = vst [vmem:[%s250 + $0x38] sm:$0xff] %v7331
        %7364 = vst [vmem:[%s250 + $0x40] sm:$0xff] %v7332
        %7365 = vst [vmem:[%s250 + $0x48] sm:$0xff] %v7333
        %7366 = vst [vmem:[%s250 + $0x50] sm:$0xff] %v7334
        %7367 = vst [vmem:[%s250 + $0x58] sm:$0xff] %v7335
        %7368 = vst [vmem:[%s250 + $0x60] sm:$0xff] %v7336
        %7369 = vst [vmem:[%s250 + $0x68] sm:$0xff] %v7337
        %7370 = vst [vmem:[%s250 + $0x70] sm:$0xff] %v7338
        %7371 = vst [vmem:[%s250 + $0x78] sm:$0xff] %v7339
        %7372 = vst [vmem:[%s250 + $0x80] sm:$0xff] %v7340
        %7373 = vst [vmem:[%s250 + $0x88] sm:$0xff] %v7341
        %7374 = vst [vmem:[%s250 + $0x90] sm:$0xff] %v7342
        %7375 = vst [vmem:[%s250 + $0x98] sm:$0xff] %v7343
        %7376 = vst [vmem:[%s250 + $0xa0] sm:$0xff] %v7344
        %7377 = vst [vmem:[%s250 + $0xa8] sm:$0xff] %v7345
        %7378 = vst [vmem:[%s250 + $0xb0] sm:$0xff] %v7346
        %7379 = vst [vmem:[%s250 + $0xb8] sm:$0xff] %v7347
        %7380 = vst [vmem:[%s250 + $0xc0] sm:$0xff] %v7348
        %7381 = vst [vmem:[%s250 + $0xc8] sm:$0xff] %v7349
        %7382 = vst [vmem:[%s250 + $0xd0] sm:$0xff] %v7350
        %7383 = vst [vmem:[%s250 + $0xd8] sm:$0xff] %v7351
        %7384 = vst [vmem:[%s250 + $0xe0] sm:$0xff] %v7352
        %7385 = vst [vmem:[%s250 + $0xe8] sm:$0xff] %v7353
        %7386 = vst [vmem:[%s250 + $0xf0] sm:$0xff] %v7354
        %7387 = vst [vmem:[%s250 + $0xf8] sm:$0xff] %v7355
        %s7388 = sand.u32 %s119, 1
        %s7389 = scalar_lea.sflag [#allocation5], %s7388
        %s7390 = sand.u32 %s119, 1
        %s7391 = smul.addr %s7390, 256
        %s7392 = scalar_lea.vmem [#allocation9], %s7391
        // Predicated region
        $region49: #{tpu_custom_call.1} parent=35 // pred_check
          %p7393 = pneg %p129
        $region50: #{tpu_custom_call.1} parent=35 // pred_check_branch
          %7395 = sbr.rel (%p7393) target = $region52
        $region51: #{tpu_custom_call.1} parent=35 // pred_region
          %7397 = vsyncadd %s7389, 0
          %s7398 = smul.addr %s22, 32
          %s7399 = smul.addr %s7398, 8
          %s7400 = scalar_lea.hbm %s4, %s7399
          %s7401 = sshll.u32 %s7392, 4
          %s7402 = int_to_ptr.vmem [resolvable:$true] %s7401
          %s7403 = sshll.u32 %s7400, 4
          %s7404 = int_to_ptr.hbm [resolvable:$true] %s7403
          %7409 = dma.vmem_to_hbm [thread:$0]  %s7402, 4096, %s7404, %s7389, 128, 128, 8
        $region52: #{tpu_custom_call.1} parent=35 // pred_fallthru
          _
      $region36: #{tpu_custom_call.1} parent=5 // pred_fallthru
        _
      %p7410 = scmp.le.s32.totalorder 2, %s17
      // Predicated region
      $region53: #{tpu_custom_call.1} parent=5 // pred_check
        %p7411 = pneg %p7410
      $region54: #{tpu_custom_call.1} parent=5 // pred_check_branch
        %7413 = sbr.rel (%p7411) target = $region56
      $region55: #{tpu_custom_call.1} parent=5 // pred_region
        %s7414 = ssub.s32 %s17, 2
        // Predicated region
        $region57: #{tpu_custom_call.1} parent=55 // pred_check
          %p7415 = pneg %p135
        $region58: #{tpu_custom_call.1} parent=55 // pred_check_branch
          %7417 = sbr.rel (%p7415) target = $region60
        $region59: #{tpu_custom_call.1} parent=55 // pred_region
          %s7418 = sand.u32 %s120, 1
          %s7419 = scalar_lea.sflag [#allocation5], %s7418
          %s7420 = sand.u32 %s120, 1
          %s7421 = smul.addr %s7420, 256
          %s7422 = scalar_lea.vmem [#allocation9], %s7421
          %7424 = dma.done %s7419, 4096
        $region60: #{tpu_custom_call.1} parent=55 // pred_fallthru
          _
      $region56: #{tpu_custom_call.1} parent=5 // pred_fallthru
        _
    $region6: #{tpu_custom_call.1} parent=1 // loop_footer
      %s21 = sadd.s32 1, %s17
    $region7: #{tpu_custom_call.1} parent=1 // loop_footer_branch
      %16 = sbr.rel target = $region3
    $region8: #{tpu_custom_call.1} parent=1 // loop_exit
      _
    %7425 = vsyncpa [#allocation4], 1
    %s7426 = scalar_lea.sflag [#allocation4], 1
    %7427 = vsyncpa %s7426, 1
    %7428 = vsyncpa [#allocation7], 1
    %7429 = vsyncpa [#allocation5], 1
    %s7430 = scalar_lea.sflag [#allocation5], 1
    %7431 = vsyncpa %s7430, 1

</llo_original>
